<compile_context>
chip_gen: v7x
topology: tpu7x:2x2x1
jax: 0.10.0
libtpu: 0.0.40
codegen_flags: <defaults>
</compile_context>

<pallas_src>
import functools

import jax
import jax.numpy as jnp
from jax.experimental import pallas as pl
from jax.experimental.pallas import tpu as pltpu


def _round_up(x, m):
    return (x + m - 1) // m * m


def _tensorcores_per_device():
    """Best-effort count of TensorCores sharing one Pallas grid (megacore)."""
    try:
        info = pltpu.get_tpu_info()
        for name in ("tensorcores_per_chip", "num_tensorcores",
                     "cores_per_chip", "num_cores"):
            n = getattr(info, name, None)
            if n:
                return max(1, min(2, int(n)))
    except Exception:
        pass
    try:
        kind = (jax.devices()[0].device_kind or "").lower()
        if "v5e" in kind or "v5 lite" in kind or "v6" in kind:
            return 1
        if any(t in kind for t in ("v4", "v5p", "v7")):
            return 2
    except Exception:
        pass
    return 1


def _vmem_limit_bytes(default=32 * 1024 * 1024):
    """Scoped-VMEM limit derived from the chip (v7x has only 64 MiB physical)."""
    try:
        cap = getattr(pltpu.get_tpu_info(), "vmem_capacity_bytes", None)
        if cap:
            return max(16 << 20, min(int(cap) // 2, 64 << 20))
    except Exception:
        pass
    return default


def ffn_kernel(x_ref, w_in_ref, b_in_ref, w_hid_ref, b_hid_ref,
               w_out_ref, b_out_ref, o_ref, *, num_layers):
    # Input projection + ReLU (bf16 MXU inputs, f32 accumulation).
    h = jnp.dot(x_ref[...].astype(jnp.bfloat16), w_in_ref[...],
                preferred_element_type=jnp.float32) + b_in_ref[...]
    h = jnp.maximum(h, 0.0)

    # Hidden stack: Linear -> Dropout(eval: identity) -> ReLU.
    # Static unroll is fine at small num_layers.
    # TODO(synk): for large num_layers, stream w_hid one layer per grid step
    #             (per-layer BlockSpec, pl.Buffered(2-3)) instead of loading
    #             the whole (L,128,128) stack into VMEM (v7x: 64 MiB total).
    for l in range(num_layers):
        h = jnp.dot(h.astype(jnp.bfloat16), w_hid_ref[l],
                    preferred_element_type=jnp.float32) + b_hid_ref[l]
        h = jnp.maximum(h, 0.0)

    # Output projection.  Padded class columns have zero weights and a -1e30
    # f32 bias, so exp() underflows to 0 and they don't affect the softmax.
    logits = jnp.dot(h.astype(jnp.bfloat16), w_out_ref[...],
                     preferred_element_type=jnp.float32) + b_out_ref[...]

    # Numerically stable softmax over the (padded) class axis.
    # TODO(synk): if a bundle dump shows the EUP slot saturating, restructure
    #             with classes on the sublane axis to cut exp() pushes 16x.
    m = jnp.max(logits, axis=-1, keepdims=True)
    e = jnp.exp(logits - m)
    denom = jnp.sum(e, axis=-1, keepdims=True)
    o_ref[...] = (e * pl.reciprocal(denom, approx=True)).astype(o_ref.dtype)


def _pad_params(params, num_layers, hidden_pad, classes_pad):
    """Zero-pad feature dims to 128 lanes, cast weights to bf16."""
    w_in, b_in, w_hid, b_hid, w_out, b_out = params
    in_size, hidden = w_in.shape
    num_classes = w_out.shape[1]

    wp_in = jnp.zeros((in_size, hidden_pad), jnp.bfloat16)
    wp_in = wp_in.at[:, :hidden].set(w_in.astype(jnp.bfloat16))
    bp_in = jnp.zeros((1, hidden_pad), jnp.float32).at[:, :hidden].set(b_in)

    if num_layers > 0:
        wp_hid = jnp.zeros((num_layers, hidden_pad, hidden_pad), jnp.bfloat16)
        wp_hid = wp_hid.at[:, :hidden, :hidden].set(w_hid.astype(jnp.bfloat16))
        bp_hid = jnp.zeros((num_layers, 1, hidden_pad), jnp.float32)
        bp_hid = bp_hid.at[:, :, :hidden].set(b_hid)
    else:
        # Guard num_layers == 0: pass a dummy (unused) single layer instead of
        # zero-sized arrays (which may not lower on TPU).
        wp_hid = jnp.zeros((1, hidden_pad, hidden_pad), jnp.bfloat16)
        bp_hid = jnp.zeros((1, 1, hidden_pad), jnp.float32)

    wp_out = jnp.zeros((hidden_pad, classes_pad), jnp.bfloat16)
    wp_out = wp_out.at[:hidden, :num_classes].set(w_out.astype(jnp.bfloat16))
    bp_out = jnp.full((1, classes_pad), -1e30, jnp.float32)
    bp_out = bp_out.at[:, :num_classes].set(b_out)

    return wp_in, bp_in, wp_hid, bp_hid, wp_out, bp_out


def feed_forward(x, params, *, num_layers, num_classes, tile_b=None):
    batch, in_size = x.shape
    hidden = params[0].shape[1]
    hidden_pad = _round_up(hidden, 128)
    classes_pad = _round_up(num_classes, 128)

    w_in, b_in, w_hid, b_hid, w_out, b_out = _pad_params(
        params, num_layers, hidden_pad, classes_pad)
    n_hid_blocks = w_hid.shape[0]

    # Generation-aware batch tile:
    #   * single-TC chips (v5e/v6e): tile_b = batch -> grid=(1,), no per-step
    #     loop overhead and full M presented to the MXU.
    #   * megacore chips (v4/v5p/v7x): one tile per TensorCore so the
    #     "parallel" axis has >= 2 steps and both cores get work.
    # Per-row VMEM footprint is ~1 KiB, so cap at 2048 rows per tile.
    n_tc = _tensorcores_per_device()
    if tile_b is None:
        tile_b = _round_up(-(-batch // n_tc), 8)
    tile_b = max(8, min(int(tile_b), 2048))
    batch_pad = _round_up(batch, tile_b)
    if batch_pad != batch:
        x = jnp.pad(x, ((0, batch_pad - batch), (0, 0)))
    grid = (batch_pad // tile_b,)

    # Advisory cost estimate for the XLA scheduler.
    flops = 2 * batch_pad * (in_size * hidden_pad
                             + num_layers * hidden_pad * hidden_pad
                             + hidden_pad * classes_pad)
    weight_bytes = sum(int(a.size) * a.dtype.itemsize
                       for a in (w_in, b_in, w_hid, b_hid, w_out, b_out))
    bytes_accessed = (int(x.size) * x.dtype.itemsize + weight_bytes
                      + batch_pad * classes_pad * 2)          # bf16 output
    cost = pl.CostEstimate(flops=int(flops),
                           transcendentals=int(batch_pad * classes_pad),
                           bytes_accessed=int(bytes_accessed))

    kernel = functools.partial(ffn_kernel, num_layers=num_layers)
    vmem_limit = _vmem_limit_bytes()

    def build(single_buffer_weights):
        if single_buffer_weights:
            def wspec(shape, index_map):
                # Constant index_map + fetched once -> single buffer is enough.
                return pl.BlockSpec(shape, index_map,
                                    pipeline_mode=pl.Buffered(1))
        else:
            def wspec(shape, index_map):
                return pl.BlockSpec(shape, index_map)

        return pl.pallas_call(
            kernel,
            out_shape=jax.ShapeDtypeStruct((batch_pad, classes_pad),
                                           jnp.bfloat16),
            grid=grid,
            in_specs=[
                # Activations: tiled along batch (auto double-buffered).
                pl.BlockSpec((tile_b, in_size), lambda i: (i, 0)),
                # Weights / biases: full blocks, constant index_map.
                wspec((in_size, hidden_pad), lambda i: (0, 0)),
                wspec((1, hidden_pad), lambda i: (0, 0)),
                wspec((n_hid_blocks, hidden_pad, hidden_pad),
                      lambda i: (0, 0, 0)),
                wspec((n_hid_blocks, 1, hidden_pad), lambda i: (0, 0, 0)),
                wspec((hidden_pad, classes_pad), lambda i: (0, 0)),
                wspec((1, classes_pad), lambda i: (0, 0)),
            ],
            out_specs=pl.BlockSpec((tile_b, classes_pad), lambda i: (i, 0)),
            compiler_params=pltpu.CompilerParams(
                dimension_semantics=("parallel",),   # megacore sharding
                vmem_limit_bytes=vmem_limit,
            ),
            cost_estimate=cost,
        )

    try:
        out = build(True)(x, w_in, b_in, w_hid, b_hid, w_out, b_out)
    except Exception:
        # pipeline_mode / Buffered(1) unsupported in this JAX build:
        # fall back to default double-buffered weight blocks.
        out = build(False)(x, w_in, b_in, w_hid, b_hid, w_out, b_out)

    # Strip batch + class padding, upcast probabilities back to f32.
    return out[:batch, :num_classes].astype(jnp.float32)


def init_params(key, input_size, hidden, num_layers, num_classes):
    """Deterministic synthetic parameters (Linear as W[in,out], b[1,out])."""
    ks = jax.random.split(key, 2 * (num_layers + 2))
    scale_in = 1.0 / jnp.sqrt(input_size)
    scale_h = 1.0 / jnp.sqrt(hidden)

    w_in = jax.random.uniform(ks[0], (input_size, hidden), jnp.float32,
                              -scale_in, scale_in)
    b_in = jax.random.uniform(ks[1], (1, hidden), jnp.float32,
                              -scale_in, scale_in)

    if num_layers > 0:
        w_hid = jnp.stack([
            jax.random.uniform(ks[2 + 2 * l], (hidden, hidden), jnp.float32,
                               -scale_h, scale_h)
            for l in range(num_layers)
        ])
        b_hid = jnp.stack([
            jax.random.uniform(ks[3 + 2 * l], (1, hidden), jnp.float32,
                               -scale_h, scale_h)
            for l in range(num_layers)
        ])
    else:
        w_hid = jnp.zeros((0, hidden, hidden), jnp.float32)
        b_hid = jnp.zeros((0, 1, hidden), jnp.float32)

    w_out = jax.random.uniform(ks[-2], (hidden, num_classes), jnp.float32,
                               -scale_h, scale_h)
    b_out = jax.random.uniform(ks[-1], (1, num_classes), jnp.float32,
                               -scale_h, scale_h)
    return (w_in, b_in, w_hid, b_hid, w_out, b_out)


def reference(x, params, num_layers):
    """Pure-JAX reference using the same bf16-weight / f32-accumulate recipe."""
    w_in, b_in, w_hid, b_hid, w_out, b_out = params

    def lin(h, w, b):
        return jnp.dot(h.astype(jnp.bfloat16), w.astype(jnp.bfloat16),
                       preferred_element_type=jnp.float32) + b

    h = jnp.maximum(lin(x, w_in, b_in), 0.0)
    for l in range(num_layers):
        h = jnp.maximum(lin(h, w_hid[l], b_hid[l]), 0.0)
    logits = lin(h, w_out, b_out)
    return jax.nn.softmax(logits, axis=1)


if __name__ == "__main__":
    # cfg = {'weight': 32, 'num_layers': 2}, input_size=16, num_classes=8
    BATCH, INPUT_SIZE, HIDDEN, NUM_LAYERS, NUM_CLASSES = 256, 16, 32, 2, 8

    key = jax.random.PRNGKey(0)
    k_x, k_p = jax.random.split(key)
    x = jax.random.normal(k_x, (BATCH, INPUT_SIZE), jnp.float32)
    params = init_params(k_p, INPUT_SIZE, HIDDEN, NUM_LAYERS, NUM_CLASSES)

    out = feed_forward(x, params, num_layers=NUM_LAYERS,
                       num_classes=NUM_CLASSES)
    out = jax.block_until_ready(out)

    ref = reference(x, params, NUM_LAYERS)
    assert out.shape == (BATCH, NUM_CLASSES)
    assert jnp.all(jnp.isfinite(out))
    # Tolerances account for bf16 weights, bf16 output store, and the approx
    # reciprocal in the softmax.
    assert jnp.allclose(out, ref, atol=2e-2, rtol=2e-2)
    assert jnp.allclose(jnp.sum(out, axis=1), 1.0, atol=1e-2)

    print("KERNEL_OK")
</pallas_src>

<mosaic_0001>
module attributes {stable_mosaic.version = 11 : i64} {
  func.func @ffn_kernel(%arg0: i32, %arg1: memref<256x16xf32, #tpu.memory_space<vmem>>, %arg2: memref<16x128xbf16, #tpu.memory_space<vmem>>, %arg3: memref<1x128xf32, #tpu.memory_space<vmem>>, %arg4: memref<2x128x128xbf16, #tpu.memory_space<vmem>>, %arg5: memref<2x1x128xf32, #tpu.memory_space<vmem>>, %arg6: memref<128x128xbf16, #tpu.memory_space<vmem>>, %arg7: memref<1x128xf32, #tpu.memory_space<vmem>>, %arg8: memref<256x128xbf16, #tpu.memory_space<vmem>>) attributes {dimension_semantics = [#tpu.dimension_semantics<parallel>], iteration_bounds = array<i64: 1>, scalar_prefetch = 0 : i64, scratch_operands = 0 : i64, tpu.core_type = #tpu.core_type<tc>, window_params = [{transform_indices = @transform_0, window_bounds = array<i64: 256, 16>}, {pipeline_mode = #tpu.pipeline_mode<synchronous>, transform_indices = @transform_1, window_bounds = array<i64: 16, 128>}, {pipeline_mode = #tpu.pipeline_mode<synchronous>, transform_indices = @transform_2, window_bounds = array<i64: 1, 128>}, {pipeline_mode = #tpu.pipeline_mode<synchronous>, transform_indices = @transform_3, window_bounds = array<i64: 2, 128, 128>}, {pipeline_mode = #tpu.pipeline_mode<synchronous>, transform_indices = @transform_4, window_bounds = array<i64: 2, 1, 128>}, {pipeline_mode = #tpu.pipeline_mode<synchronous>, transform_indices = @transform_5, window_bounds = array<i64: 128, 128>}, {pipeline_mode = #tpu.pipeline_mode<synchronous>, transform_indices = @transform_6, window_bounds = array<i64: 1, 128>}, {transform_indices = @transform_7, window_bounds = array<i64: 256, 128>}]} {
    %c0 = arith.constant 0 : index
    %c0_0 = arith.constant 0 : index
    %0 = vector.load %arg1[%c0, %c0_0] : memref<256x16xf32, #tpu.memory_space<vmem>>, vector<256x16xf32>
    %1 = arith.truncf %0 : vector<256x16xf32> to vector<256x16xbf16>
    %c0_1 = arith.constant 0 : index
    %c0_2 = arith.constant 0 : index
    %2 = vector.load %arg2[%c0_1, %c0_2] : memref<16x128xbf16, #tpu.memory_space<vmem>>, vector<16x128xbf16>
    %cst = arith.constant dense<0.000000e+00> : vector<256x128xf32>
    %3 = tpu.matmul %1, %2, %cst {dimension_numbers = #tpu.dot_dimension_numbers<[1], [0], [0], [1], [0, 0, 1, 1], [], []>} : vector<256x16xbf16>, vector<16x128xbf16>, vector<256x128xf32> -> vector<256x128xf32>
    %c0_3 = arith.constant 0 : index
    %c0_4 = arith.constant 0 : index
    %4 = vector.load %arg3[%c0_3, %c0_4] : memref<1x128xf32, #tpu.memory_space<vmem>>, vector<1x128xf32>
    %5 = vector.broadcast %4 : vector<1x128xf32> to vector<256x128xf32>
    %6 = arith.addf %3, %5 : vector<256x128xf32>
    %cst_5 = arith.constant 0.000000e+00 : f32
    %7 = vector.broadcast %cst_5 : f32 to vector<256x128xf32>
    %8 = arith.maximumf %6, %7 : vector<256x128xf32>
    %9 = arith.truncf %8 : vector<256x128xf32> to vector<256x128xbf16>
    %c0_6 = arith.constant 0 : index
    %c0_7 = arith.constant 0 : index
    %c0_8 = arith.constant 0 : index
    %10 = vector.load %arg4[%c0_6, %c0_7, %c0_8] : memref<2x128x128xbf16, #tpu.memory_space<vmem>>, vector<1x128x128xbf16>
    %11 = vector.shape_cast %10 : vector<1x128x128xbf16> to vector<128x128xbf16>
    %cst_9 = arith.constant dense<0.000000e+00> : vector<256x128xf32>
    %12 = tpu.matmul %9, %11, %cst_9 {dimension_numbers = #tpu.dot_dimension_numbers<[1], [0], [0], [1], [0, 0, 1, 1], [], []>} : vector<256x128xbf16>, vector<128x128xbf16>, vector<256x128xf32> -> vector<256x128xf32>
    %c0_10 = arith.constant 0 : index
    %c0_11 = arith.constant 0 : index
    %c0_12 = arith.constant 0 : index
    %13 = vector.load %arg5[%c0_10, %c0_11, %c0_12] : memref<2x1x128xf32, #tpu.memory_space<vmem>>, vector<1x1x128xf32>
    %14 = vector.shape_cast %13 : vector<1x1x128xf32> to vector<1x128xf32>
    %15 = vector.broadcast %14 : vector<1x128xf32> to vector<256x128xf32>
    %16 = arith.addf %12, %15 : vector<256x128xf32>
    %cst_13 = arith.constant 0.000000e+00 : f32
    %17 = vector.broadcast %cst_13 : f32 to vector<256x128xf32>
    %18 = arith.maximumf %16, %17 : vector<256x128xf32>
    %19 = arith.truncf %18 : vector<256x128xf32> to vector<256x128xbf16>
    %c1 = arith.constant 1 : index
    %c0_14 = arith.constant 0 : index
    %c0_15 = arith.constant 0 : index
    %20 = vector.load %arg4[%c1, %c0_14, %c0_15] : memref<2x128x128xbf16, #tpu.memory_space<vmem>>, vector<1x128x128xbf16>
    %21 = vector.shape_cast %20 : vector<1x128x128xbf16> to vector<128x128xbf16>
    %cst_16 = arith.constant dense<0.000000e+00> : vector<256x128xf32>
    %22 = tpu.matmul %19, %21, %cst_16 {dimension_numbers = #tpu.dot_dimension_numbers<[1], [0], [0], [1], [0, 0, 1, 1], [], []>} : vector<256x128xbf16>, vector<128x128xbf16>, vector<256x128xf32> -> vector<256x128xf32>
    %c1_17 = arith.constant 1 : index
    %c0_18 = arith.constant 0 : index
    %c0_19 = arith.constant 0 : index
    %23 = vector.load %arg5[%c1_17, %c0_18, %c0_19] : memref<2x1x128xf32, #tpu.memory_space<vmem>>, vector<1x1x128xf32>
    %24 = vector.shape_cast %23 : vector<1x1x128xf32> to vector<1x128xf32>
    %25 = vector.broadcast %24 : vector<1x128xf32> to vector<256x128xf32>
    %26 = arith.addf %22, %25 : vector<256x128xf32>
    %cst_20 = arith.constant 0.000000e+00 : f32
    %27 = vector.broadcast %cst_20 : f32 to vector<256x128xf32>
    %28 = arith.maximumf %26, %27 : vector<256x128xf32>
    %29 = arith.truncf %28 : vector<256x128xf32> to vector<256x128xbf16>
    %c0_21 = arith.constant 0 : index
    %c0_22 = arith.constant 0 : index
    %30 = vector.load %arg6[%c0_21, %c0_22] : memref<128x128xbf16, #tpu.memory_space<vmem>>, vector<128x128xbf16>
    %cst_23 = arith.constant dense<0.000000e+00> : vector<256x128xf32>
    %31 = tpu.matmul %29, %30, %cst_23 {dimension_numbers = #tpu.dot_dimension_numbers<[1], [0], [0], [1], [0, 0, 1, 1], [], []>} : vector<256x128xbf16>, vector<128x128xbf16>, vector<256x128xf32> -> vector<256x128xf32>
    %c0_24 = arith.constant 0 : index
    %c0_25 = arith.constant 0 : index
    %32 = vector.load %arg7[%c0_24, %c0_25] : memref<1x128xf32, #tpu.memory_space<vmem>>, vector<1x128xf32>
    %33 = vector.broadcast %32 : vector<1x128xf32> to vector<256x128xf32>
    %34 = arith.addf %31, %33 : vector<256x128xf32>
    %cst_26 = arith.constant dense<0xFF800000> : vector<256xf32>
    %35 = vector.multi_reduction <maximumf>, %34, %cst_26 [1] : vector<256x128xf32> to vector<256xf32>
    %36 = vector.shape_cast %35 : vector<256xf32> to vector<256x1xf32>
    %37 = vector.broadcast %36 : vector<256x1xf32> to vector<256x128xf32>
    %38 = arith.subf %34, %37 : vector<256x128xf32>
    %39 = math.exp %38 : vector<256x128xf32>
    %cst_27 = arith.constant dense<0.000000e+00> : vector<256xf32>
    %40 = vector.multi_reduction <add>, %39, %cst_27 [1] : vector<256x128xf32> to vector<256xf32>
    %41 = vector.shape_cast %40 : vector<256xf32> to vector<256x1xf32>
    %42 = tpu.reciprocal %41 {approx = true} : vector<256x1xf32> -> vector<256x1xf32>
    %43 = vector.broadcast %42 : vector<256x1xf32> to vector<256x128xf32>
    %44 = arith.mulf %39, %43 : vector<256x128xf32>
    %45 = arith.truncf %44 : vector<256x128xf32> to vector<256x128xbf16>
    %c0_28 = arith.constant 0 : index
    %c0_29 = arith.constant 0 : index
    %46 = vector.load %arg8[%c0_28, %c0_29] : memref<256x128xbf16, #tpu.memory_space<vmem>>, vector<256x128xbf16>
    tpu.vector_store %arg8[%c0_28, %c0_29], %45 {strides = array<i32>} : memref<256x128xbf16, #tpu.memory_space<vmem>>, vector<256x128xbf16>,
    return
  }
  func.func @transform_0(%arg0: i32) -> (i32, i32) {
    %c0_i32 = arith.constant 0 : i32
    %c0_i32_0 = arith.constant 0 : i32
    return %arg0, %c0_i32 : i32, i32
  }
  func.func @transform_1(%arg0: i32) -> (i32, i32) {
    %c0_i32 = arith.constant 0 : i32
    %c0_i32_0 = arith.constant 0 : i32
    %c0_i32_1 = arith.constant 0 : i32
    return %c0_i32, %c0_i32_0 : i32, i32
  }
  func.func @transform_2(%arg0: i32) -> (i32, i32) {
    %c0_i32 = arith.constant 0 : i32
    %c0_i32_0 = arith.constant 0 : i32
    %c0_i32_1 = arith.constant 0 : i32
    return %c0_i32, %c0_i32_0 : i32, i32
  }
  func.func @transform_3(%arg0: i32) -> (i32, i32, i32) {
    %c0_i32 = arith.constant 0 : i32
    %c0_i32_0 = arith.constant 0 : i32
    %c0_i32_1 = arith.constant 0 : i32
    %c0_i32_2 = arith.constant 0 : i32
    return %c0_i32, %c0_i32_0, %c0_i32_1 : i32, i32, i32
  }
  func.func @transform_4(%arg0: i32) -> (i32, i32, i32) {
    %c0_i32 = arith.constant 0 : i32
    %c0_i32_0 = arith.constant 0 : i32
    %c0_i32_1 = arith.constant 0 : i32
    %c0_i32_2 = arith.constant 0 : i32
    return %c0_i32, %c0_i32_0, %c0_i32_1 : i32, i32, i32
  }
  func.func @transform_5(%arg0: i32) -> (i32, i32) {
    %c0_i32 = arith.constant 0 : i32
    %c0_i32_0 = arith.constant 0 : i32
    %c0_i32_1 = arith.constant 0 : i32
    return %c0_i32, %c0_i32_0 : i32, i32
  }
  func.func @transform_6(%arg0: i32) -> (i32, i32) {
    %c0_i32 = arith.constant 0 : i32
    %c0_i32_0 = arith.constant 0 : i32
    %c0_i32_1 = arith.constant 0 : i32
    return %c0_i32, %c0_i32_0 : i32, i32
  }
  func.func @transform_7(%arg0: i32) -> (i32, i32) {
    %c0_i32 = arith.constant 0 : i32
    %c0_i32_0 = arith.constant 0 : i32
    return %arg0, %c0_i32 : i32, i32
  }
}

module attributes {stable_mosaic.version = 11 : i64} {
  func.func @ffn_kernel(%arg0: i32, %arg1: memref<256x16xf32, #tpu.memory_space<vmem>>, %arg2: memref<16x128xbf16, #tpu.memory_space<vmem>>, %arg3: memref<1x128xf32, #tpu.memory_space<vmem>>, %arg4: memref<2x128x128xbf16, #tpu.memory_space<vmem>>, %arg5: memref<2x1x128xf32, #tpu.memory_space<vmem>>, %arg6: memref<128x128xbf16, #tpu.memory_space<vmem>>, %arg7: memref<1x128xf32, #tpu.memory_space<vmem>>, %arg8: memref<256x128xbf16, #tpu.memory_space<vmem>>) attributes {dimension_semantics = [#tpu.dimension_semantics<parallel>], iteration_bounds = array<i64: 1>, scalar_prefetch = 0 : i64, scratch_operands = 0 : i64, tpu.core_type = #tpu.core_type<tc>, window_params = [{transform_indices = @transform_0, window_bounds = array<i64: 256, 16>}, {pipeline_mode = #tpu.pipeline_mode<synchronous>, transform_indices = @transform_1, window_bounds = array<i64: 16, 128>}, {pipeline_mode = #tpu.pipeline_mode<synchronous>, transform_indices = @transform_2, window_bounds = array<i64: 1, 128>}, {pipeline_mode = #tpu.pipeline_mode<synchronous>, transform_indices = @transform_3, window_bounds = array<i64: 2, 128, 128>}, {pipeline_mode = #tpu.pipeline_mode<synchronous>, transform_indices = @transform_4, window_bounds = array<i64: 2, 1, 128>}, {pipeline_mode = #tpu.pipeline_mode<synchronous>, transform_indices = @transform_5, window_bounds = array<i64: 128, 128>}, {pipeline_mode = #tpu.pipeline_mode<synchronous>, transform_indices = @transform_6, window_bounds = array<i64: 1, 128>}, {transform_indices = @transform_7, window_bounds = array<i64: 256, 128>}]} {
    %c0 = arith.constant 0 : index
    %c0_0 = arith.constant 0 : index
    %0 = vector.load %arg1[%c0, %c0_0] : memref<256x16xf32, #tpu.memory_space<vmem>>, vector<256x16xf32>
    %1 = arith.truncf %0 : vector<256x16xf32> to vector<256x16xbf16>
    %c0_1 = arith.constant 0 : index
    %c0_2 = arith.constant 0 : index
    %2 = vector.load %arg2[%c0_1, %c0_2] : memref<16x128xbf16, #tpu.memory_space<vmem>>, vector<16x128xbf16>
    %cst = arith.constant dense<0.000000e+00> : vector<256x128xf32>
    %3 = tpu.matmul %1, %2, %cst {dimension_numbers = #tpu.dot_dimension_numbers<[1], [0], [0], [1], [0, 0, 1, 1], [], []>} : vector<256x16xbf16>, vector<16x128xbf16>, vector<256x128xf32> -> vector<256x128xf32>
    %c0_3 = arith.constant 0 : index
    %c0_4 = arith.constant 0 : index
    %4 = vector.load %arg3[%c0_3, %c0_4] : memref<1x128xf32, #tpu.memory_space<vmem>>, vector<1x128xf32>
    %5 = vector.broadcast %4 : vector<1x128xf32> to vector<256x128xf32>
    %6 = arith.addf %3, %5 : vector<256x128xf32>
    %cst_5 = arith.constant 0.000000e+00 : f32
    %7 = vector.broadcast %cst_5 : f32 to vector<256x128xf32>
    %8 = arith.maximumf %6, %7 : vector<256x128xf32>
    %9 = arith.truncf %8 : vector<256x128xf32> to vector<256x128xbf16>
    %c0_6 = arith.constant 0 : index
    %c0_7 = arith.constant 0 : index
    %c0_8 = arith.constant 0 : index
    %10 = vector.load %arg4[%c0_6, %c0_7, %c0_8] : memref<2x128x128xbf16, #tpu.memory_space<vmem>>, vector<1x128x128xbf16>
    %11 = vector.shape_cast %10 : vector<1x128x128xbf16> to vector<128x128xbf16>
    %cst_9 = arith.constant dense<0.000000e+00> : vector<256x128xf32>
    %12 = tpu.matmul %9, %11, %cst_9 {dimension_numbers = #tpu.dot_dimension_numbers<[1], [0], [0], [1], [0, 0, 1, 1], [], []>} : vector<256x128xbf16>, vector<128x128xbf16>, vector<256x128xf32> -> vector<256x128xf32>
    %c0_10 = arith.constant 0 : index
    %c0_11 = arith.constant 0 : index
    %c0_12 = arith.constant 0 : index
    %13 = vector.load %arg5[%c0_10, %c0_11, %c0_12] : memref<2x1x128xf32, #tpu.memory_space<vmem>>, vector<1x1x128xf32>
    %14 = vector.shape_cast %13 : vector<1x1x128xf32> to vector<1x128xf32>
    %15 = vector.broadcast %14 : vector<1x128xf32> to vector<256x128xf32>
    %16 = arith.addf %12, %15 : vector<256x128xf32>
    %cst_13 = arith.constant 0.000000e+00 : f32
    %17 = vector.broadcast %cst_13 : f32 to vector<256x128xf32>
    %18 = arith.maximumf %16, %17 : vector<256x128xf32>
    %19 = arith.truncf %18 : vector<256x128xf32> to vector<256x128xbf16>
    %c1 = arith.constant 1 : index
    %c0_14 = arith.constant 0 : index
    %c0_15 = arith.constant 0 : index
    %20 = vector.load %arg4[%c1, %c0_14, %c0_15] : memref<2x128x128xbf16, #tpu.memory_space<vmem>>, vector<1x128x128xbf16>
    %21 = vector.shape_cast %20 : vector<1x128x128xbf16> to vector<128x128xbf16>
    %cst_16 = arith.constant dense<0.000000e+00> : vector<256x128xf32>
    %22 = tpu.matmul %19, %21, %cst_16 {dimension_numbers = #tpu.dot_dimension_numbers<[1], [0], [0], [1], [0, 0, 1, 1], [], []>} : vector<256x128xbf16>, vector<128x128xbf16>, vector<256x128xf32> -> vector<256x128xf32>
    %c1_17 = arith.constant 1 : index
    %c0_18 = arith.constant 0 : index
    %c0_19 = arith.constant 0 : index
    %23 = vector.load %arg5[%c1_17, %c0_18, %c0_19] : memref<2x1x128xf32, #tpu.memory_space<vmem>>, vector<1x1x128xf32>
    %24 = vector.shape_cast %23 : vector<1x1x128xf32> to vector<1x128xf32>
    %25 = vector.broadcast %24 : vector<1x128xf32> to vector<256x128xf32>
    %26 = arith.addf %22, %25 : vector<256x128xf32>
    %cst_20 = arith.constant 0.000000e+00 : f32
    %27 = vector.broadcast %cst_20 : f32 to vector<256x128xf32>
    %28 = arith.maximumf %26, %27 : vector<256x128xf32>
    %29 = arith.truncf %28 : vector<256x128xf32> to vector<256x128xbf16>
    %c0_21 = arith.constant 0 : index
    %c0_22 = arith.constant 0 : index
    %30 = vector.load %arg6[%c0_21, %c0_22] : memref<128x128xbf16, #tpu.memory_space<vmem>>, vector<128x128xbf16>
    %cst_23 = arith.constant dense<0.000000e+00> : vector<256x128xf32>
    %31 = tpu.matmul %29, %30, %cst_23 {dimension_numbers = #tpu.dot_dimension_numbers<[1], [0], [0], [1], [0, 0, 1, 1], [], []>} : vector<256x128xbf16>, vector<128x128xbf16>, vector<256x128xf32> -> vector<256x128xf32>
    %c0_24 = arith.constant 0 : index
    %c0_25 = arith.constant 0 : index
    %32 = vector.load %arg7[%c0_24, %c0_25] : memref<1x128xf32, #tpu.memory_space<vmem>>, vector<1x128xf32>
    %33 = vector.broadcast %32 : vector<1x128xf32> to vector<256x128xf32>
    %34 = arith.addf %31, %33 : vector<256x128xf32>
    %cst_26 = arith.constant dense<0xFF800000> : vector<256xf32>
    %35 = vector.multi_reduction <maximumf>, %34, %cst_26 [1] : vector<256x128xf32> to vector<256xf32>
    %36 = vector.shape_cast %35 : vector<256xf32> to vector<256x1xf32>
    %37 = vector.broadcast %36 : vector<256x1xf32> to vector<256x128xf32>
    %38 = arith.subf %34, %37 : vector<256x128xf32>
    %39 = math.exp %38 : vector<256x128xf32>
    %cst_27 = arith.constant dense<0.000000e+00> : vector<256xf32>
    %40 = vector.multi_reduction <add>, %39, %cst_27 [1] : vector<256x128xf32> to vector<256xf32>
    %41 = vector.shape_cast %40 : vector<256xf32> to vector<256x1xf32>
    %42 = tpu.reciprocal %41 {approx = true} : vector<256x1xf32> -> vector<256x1xf32>
    %43 = vector.broadcast %42 : vector<256x1xf32> to vector<256x128xf32>
    %44 = arith.mulf %39, %43 : vector<256x128xf32>
    %45 = arith.truncf %44 : vector<256x128xf32> to vector<256x128xbf16>
    %c0_28 = arith.constant 0 : index
    %c0_29 = arith.constant 0 : index
    %46 = vector.load %arg8[%c0_28, %c0_29] : memref<256x128xbf16, #tpu.memory_space<vmem>>, vector<256x128xbf16>
    tpu.vector_store %arg8[%c0_28, %c0_29], %45 {strides = array<i32>} : memref<256x128xbf16, #tpu.memory_space<vmem>>, vector<256x128xbf16>,
    return
  }
  func.func @transform_0(%arg0: i32) -> (i32, i32) {
    %c0_i32 = arith.constant 0 : i32
    %c0_i32_0 = arith.constant 0 : i32
    return %arg0, %c0_i32 : i32, i32
  }
  func.func @transform_1(%arg0: i32) -> (i32, i32) {
    %c0_i32 = arith.constant 0 : i32
    %c0_i32_0 = arith.constant 0 : i32
    %c0_i32_1 = arith.constant 0 : i32
    return %c0_i32, %c0_i32_0 : i32, i32
  }
  func.func @transform_2(%arg0: i32) -> (i32, i32) {
    %c0_i32 = arith.constant 0 : i32
    %c0_i32_0 = arith.constant 0 : i32
    %c0_i32_1 = arith.constant 0 : i32
    return %c0_i32, %c0_i32_0 : i32, i32
  }
  func.func @transform_3(%arg0: i32) -> (i32, i32, i32) {
    %c0_i32 = arith.constant 0 : i32
    %c0_i32_0 = arith.constant 0 : i32
    %c0_i32_1 = arith.constant 0 : i32
    %c0_i32_2 = arith.constant 0 : i32
    return %c0_i32, %c0_i32_0, %c0_i32_1 : i32, i32, i32
  }
  func.func @transform_4(%arg0: i32) -> (i32, i32, i32) {
    %c0_i32 = arith.constant 0 : i32
    %c0_i32_0 = arith.constant 0 : i32
    %c0_i32_1 = arith.constant 0 : i32
    %c0_i32_2 = arith.constant 0 : i32
    return %c0_i32, %c0_i32_0, %c0_i32_1 : i32, i32, i32
  }
  func.func @transform_5(%arg0: i32) -> (i32, i32) {
    %c0_i32 = arith.constant 0 : i32
    %c0_i32_0 = arith.constant 0 : i32
    %c0_i32_1 = arith.constant 0 : i32
    return %c0_i32, %c0_i32_0 : i32, i32
  }
  func.func @transform_6(%arg0: i32) -> (i32, i32) {
    %c0_i32 = arith.constant 0 : i32
    %c0_i32_0 = arith.constant 0 : i32
    %c0_i32_1 = arith.constant 0 : i32
    return %c0_i32, %c0_i32_0 : i32, i32
  }
  func.func @transform_7(%arg0: i32) -> (i32, i32) {
    %c0_i32 = arith.constant 0 : i32
    %c0_i32_0 = arith.constant 0 : i32
    return %arg0, %c0_i32 : i32, i32
  }
}

</mosaic_0001>

<llo_original>
// kernel: tpu_custom_call.1
$region0: #{tpu_custom_call.1}
  #allocation0 [shape = 'u32[]', space=smem, size = 0x4, offset = 0x4, fixed_abs, tag = 'smem constant byte address 0x4 - core index']
  #allocation1 [shape = 'u32[144,128]{1,0:T(1,128)}', space=vmem, size = 0x12000, scoped, tag = 'internal scratch']
  %s0 = inlined_call_operand.vmem [shape: f32[256,16], index: 0, kind: input, shape index: {}]
  %s1 = inlined_call_operand.vmem [shape: bf16[16,128], index: 1, kind: input, shape index: {}]
  %s2 = inlined_call_operand.vmem [shape: f32[1,128], index: 2, kind: input, shape index: {}]
  %s3 = inlined_call_operand.vmem [shape: bf16[2,128,128], index: 3, kind: input, shape index: {}]
  %s4 = inlined_call_operand.vmem [shape: f32[2,1,128], index: 4, kind: input, shape index: {}]
  %s5 = inlined_call_operand.vmem [shape: bf16[128,128], index: 5, kind: input, shape index: {}]
  %s6 = inlined_call_operand.vmem [shape: f32[1,128], index: 6, kind: input, shape index: {}]
  %s7 = inlined_call_operand.hbm [shape: bf16[256,128], index: 7, kind: output, shape index: {}]
  %s8 = sld [smem:[#allocation0]]
  $region38: #{tpu_custom_call.1} parent=0
    _
  %s10 = ssub.s32 1, %s8
  %s11 = scalar_select 0, %s10, %s8
  $region1: #{tpu_custom_call.1} parent=0
    #allocation2 [shape = 'u8[65536]{0}', space=vmem, size = 0x10000, scoped, tag = 'output window, operand 0, single buffered']
    #allocation3 [shape = 's32[1]{0}', space=sflag, size = 0x4, scoped, tag = 'scoped memory for tpu_custom_call.1']
    %12 = vsyncpa [#allocation3], 0
    // Predicated region
    $region2: #{tpu_custom_call.1} parent=1 // pred_check
      _
    $region3: #{tpu_custom_call.1} parent=1 // pred_check_branch
      %14 = sbr.rel (0) target = $region5
    $region4: #{tpu_custom_call.1} parent=1 // pred_region
      _
    $region5: #{tpu_custom_call.1} parent=1 // pred_fallthru
      _
    // Predicated region
    $region6: #{tpu_custom_call.1} parent=1 // pred_check
      _
    $region7: #{tpu_custom_call.1} parent=1 // pred_check_branch
      %16 = sbr.rel (0) target = $region9
    $region8: #{tpu_custom_call.1} parent=1 // pred_region
      _
    $region9: #{tpu_custom_call.1} parent=1 // pred_fallthru
      _
    // Predicated region
    $region10: #{tpu_custom_call.1} parent=1 // pred_check
      _
    $region11: #{tpu_custom_call.1} parent=1 // pred_check_branch
      %18 = sbr.rel (0) target = $region13
    $region12: #{tpu_custom_call.1} parent=1 // pred_region
      _
    $region13: #{tpu_custom_call.1} parent=1 // pred_fallthru
      _
    // Predicated region
    $region14: #{tpu_custom_call.1} parent=1 // pred_check
      _
    $region15: #{tpu_custom_call.1} parent=1 // pred_check_branch
      %20 = sbr.rel (0) target = $region17
    $region16: #{tpu_custom_call.1} parent=1 // pred_region
      _
    $region17: #{tpu_custom_call.1} parent=1 // pred_fallthru
      _
    // Predicated region
    $region18: #{tpu_custom_call.1} parent=1 // pred_check
      _
    $region19: #{tpu_custom_call.1} parent=1 // pred_check_branch
      %22 = sbr.rel (0) target = $region21
    $region20: #{tpu_custom_call.1} parent=1 // pred_region
      _
    $region21: #{tpu_custom_call.1} parent=1 // pred_fallthru
      _
    // Predicated region
    $region22: #{tpu_custom_call.1} parent=1 // pred_check
      _
    $region23: #{tpu_custom_call.1} parent=1 // pred_check_branch
      %24 = sbr.rel (0) target = $region25
    $region24: #{tpu_custom_call.1} parent=1 // pred_region
      _
    $region25: #{tpu_custom_call.1} parent=1 // pred_fallthru
      _
    // Predicated region
    $region26: #{tpu_custom_call.1} parent=1 // pred_check
      _
    $region27: #{tpu_custom_call.1} parent=1 // pred_check_branch
      %26 = sbr.rel (0) target = $region29
    $region28: #{tpu_custom_call.1} parent=1 // pred_region
      _
    $region29: #{tpu_custom_call.1} parent=1 // pred_fallthru
      _
    %v28 = vld [vmem:[%s0] sm:$0xff]
    %v29 = vld [vmem:[%s0 + $0x8] sm:$0xff]
    %v30 = vld [vmem:[%s0 + $0x10] sm:$0xff]
    %v31 = vld [vmem:[%s0 + $0x18] sm:$0xff]
    %v32 = vld [vmem:[%s0 + $0x20] sm:$0xff]
    %v33 = vld [vmem:[%s0 + $0x28] sm:$0xff]
    %v34 = vld [vmem:[%s0 + $0x30] sm:$0xff]
    %v35 = vld [vmem:[%s0 + $0x38] sm:$0xff]
    %v36 = vld [vmem:[%s0 + $0x40] sm:$0xff]
    %v37 = vld [vmem:[%s0 + $0x48] sm:$0xff]
    %v38 = vld [vmem:[%s0 + $0x50] sm:$0xff]
    %v39 = vld [vmem:[%s0 + $0x58] sm:$0xff]
    %v40 = vld [vmem:[%s0 + $0x60] sm:$0xff]
    %v41 = vld [vmem:[%s0 + $0x68] sm:$0xff]
    %v42 = vld [vmem:[%s0 + $0x70] sm:$0xff]
    %v43 = vld [vmem:[%s0 + $0x78] sm:$0xff]
    %v44 = vld [vmem:[%s0 + $0x80] sm:$0xff]
    %v45 = vld [vmem:[%s0 + $0x88] sm:$0xff]
    %v46 = vld [vmem:[%s0 + $0x90] sm:$0xff]
    %v47 = vld [vmem:[%s0 + $0x98] sm:$0xff]
    %v48 = vld [vmem:[%s0 + $0xa0] sm:$0xff]
    %v49 = vld [vmem:[%s0 + $0xa8] sm:$0xff]
    %v50 = vld [vmem:[%s0 + $0xb0] sm:$0xff]
    %v51 = vld [vmem:[%s0 + $0xb8] sm:$0xff]
    %v52 = vld [vmem:[%s0 + $0xc0] sm:$0xff]
    %v53 = vld [vmem:[%s0 + $0xc8] sm:$0xff]
    %v54 = vld [vmem:[%s0 + $0xd0] sm:$0xff]
    %v55 = vld [vmem:[%s0 + $0xd8] sm:$0xff]
    %v56 = vld [vmem:[%s0 + $0xe0] sm:$0xff]
    %v57 = vld [vmem:[%s0 + $0xe8] sm:$0xff]
    %v58 = vld [vmem:[%s0 + $0xf0] sm:$0xff]
    %v59 = vld [vmem:[%s0 + $0xf8] sm:$0xff]
    %v60 = vpack.c.bf16 %v29, %v28
    %v61 = vpack.c.bf16 %v31, %v30
    %v62 = vpack.c.bf16 %v33, %v32
    %v63 = vpack.c.bf16 %v35, %v34
    %v64 = vpack.c.bf16 %v37, %v36
    %v65 = vpack.c.bf16 %v39, %v38
    %v66 = vpack.c.bf16 %v41, %v40
    %v67 = vpack.c.bf16 %v43, %v42
    %v68 = vpack.c.bf16 %v45, %v44
    %v69 = vpack.c.bf16 %v47, %v46
    %v70 = vpack.c.bf16 %v49, %v48
    %v71 = vpack.c.bf16 %v51, %v50
    %v72 = vpack.c.bf16 %v53, %v52
    %v73 = vpack.c.bf16 %v55, %v54
    %v74 = vpack.c.bf16 %v57, %v56
    %v75 = vpack.c.bf16 %v59, %v58
    %v76 = vld [vmem:[%s1] sm:$0xf]
    %v77 = vld [vmem:[%s1 + $0x4] sm:$0xf]
    %v78 = vld [vmem:[%s2] sm:$0x1]
    %v80 = vlaneseq
    %v81 = vshrl.u32 %v80, 7
    %v82 = vsub.s32 0, %v81
    %v83 = vrot.slane %v78, %v82
    %v87 = vunpack.c.l.b16 %v76
    %v88 = vunpack.c.l.b16 %v77
    %v89 = vpack.c.b16 %v88, %v87
    %vm91 = vcmask 130048
    %v93 = vsel %vm91, %v60, 0
    %v96 = vsel %vm91, %v61, 0
    %v99 = vsel %vm91, %v62, 0
    %v102 = vsel %vm91, %v63, 0
    %v105 = vsel %vm91, %v64, 0
    %v108 = vsel %vm91, %v65, 0
    %v111 = vsel %vm91, %v66, 0
    %v114 = vsel %vm91, %v67, 0
    %v117 = vsel %vm91, %v68, 0
    %v120 = vsel %vm91, %v69, 0
    %v123 = vsel %vm91, %v70, 0
    %v126 = vsel %vm91, %v71, 0
    %v129 = vsel %vm91, %v72, 0
    %v132 = vsel %vm91, %v73, 0
    %v135 = vsel %vm91, %v74, 0
    %v138 = vsel %vm91, %v75, 0
    %140 = vmatprep.subr.bf16.mxu0 0
    %141 = vmatpush1.bf16.msra.mxu0 %v89
    %142 = vmatprep.subr.bf16.mxu0 0
    %143 = vmatpush1.bf16.msra.mxu0 0
    %144 = vmatprep.subr.bf16.mxu0 0
    %145 = vmatpush1.bf16.msra.mxu0 0
    %146 = vmatprep.subr.bf16.mxu0 0
    %147 = vmatpush1.bf16.msra.mxu0 0
    %148 = vmatprep.subr.bf16.mxu0 0
    %149 = vmatpush1.bf16.msra.mxu0 0
    %150 = vmatprep.subr.bf16.mxu0 0
    %151 = vmatpush1.bf16.msra.mxu0 0
    %152 = vmatprep.subr.bf16.mxu0 0
    %153 = vmatpush1.bf16.msra.mxu0 0
    %154 = vmatprep.subr.bf16.mxu0 0
    %155 = vmatpush1.bf16.msra.mxu0 0
    %156 = vmatprep.subr.bf16.mxu0 0
    %157 = vmatpush1.bf16.msra.mxu0 0
    %158 = vmatprep.subr.bf16.mxu0 0
    %159 = vmatpush1.bf16.msra.mxu0 0
    %160 = vmatprep.subr.bf16.mxu0 0
    %161 = vmatpush1.bf16.msra.mxu0 0
    %162 = vmatprep.subr.bf16.mxu0 0
    %163 = vmatpush1.bf16.msra.mxu0 0
    %164 = vmatprep.subr.bf16.mxu0 0
    %165 = vmatpush1.bf16.msra.mxu0 0
    %166 = vmatprep.subr.bf16.mxu0 0
    %167 = vmatpush1.bf16.msra.mxu0 0
    %168 = vmatprep.subr.bf16.mxu0 0
    %169 = vmatpush1.bf16.msra.mxu0 0
    %170 = vmatprep.subr.bf16.mxu0 0
    %171 = vmatpush1.bf16.msra.mxu0 0
    %172 = vmatprep.mubr.bf16.mxu0 0
    %173 = vmatmul.mubr.bf16.gmra.mrb[0].mxu0 %v93
    %v174 = vpop.f32.mrb[0].mxu0
    %v175 = vadd.f32 %v83, %v174
    %v176 = vpop.f32.mrb[0].mxu0
    %v177 = vpop.f32.mrb[0].mxu0
    %v178 = vadd.f32 %v83, %v177
    %v179 = vpop.f32.mrb[0].mxu0
    %180 = vmatprep.mubr.bf16.mxu0 0
    %181 = vmatmul.mubr.bf16.gmra.mrb[0].mxu0 %v96
    %v182 = vpop.f32.mrb[0].mxu0
    %v183 = vadd.f32 %v83, %v182
    %v184 = vpop.f32.mrb[0].mxu0
    %v185 = vpop.f32.mrb[0].mxu0
    %v186 = vadd.f32 %v83, %v185
    %v187 = vpop.f32.mrb[0].mxu0
    %188 = vmatprep.mubr.bf16.mxu0 0
    %189 = vmatmul.mubr.bf16.gmra.mrb[0].mxu0 %v99
    %v190 = vpop.f32.mrb[0].mxu0
    %v191 = vadd.f32 %v83, %v190
    %v192 = vpop.f32.mrb[0].mxu0
    %v193 = vpop.f32.mrb[0].mxu0
    %v194 = vadd.f32 %v83, %v193
    %v195 = vpop.f32.mrb[0].mxu0
    %196 = vmatprep.mubr.bf16.mxu0 0
    %197 = vmatmul.mubr.bf16.gmra.mrb[0].mxu0 %v102
    %v198 = vpop.f32.mrb[0].mxu0
    %v199 = vadd.f32 %v83, %v198
    %v200 = vpop.f32.mrb[0].mxu0
    %v201 = vpop.f32.mrb[0].mxu0
    %v202 = vadd.f32 %v83, %v201
    %v203 = vpop.f32.mrb[0].mxu0
    %204 = vmatprep.mubr.bf16.mxu0 0
    %205 = vmatmul.mubr.bf16.gmra.mrb[0].mxu0 %v105
    %v206 = vpop.f32.mrb[0].mxu0
    %v207 = vadd.f32 %v83, %v206
    %v208 = vpop.f32.mrb[0].mxu0
    %v209 = vpop.f32.mrb[0].mxu0
    %v210 = vadd.f32 %v83, %v209
    %v211 = vpop.f32.mrb[0].mxu0
    %212 = vmatprep.mubr.bf16.mxu0 0
    %213 = vmatmul.mubr.bf16.gmra.mrb[0].mxu0 %v108
    %v214 = vpop.f32.mrb[0].mxu0
    %v215 = vadd.f32 %v83, %v214
    %v216 = vpop.f32.mrb[0].mxu0
    %v217 = vpop.f32.mrb[0].mxu0
    %v218 = vadd.f32 %v83, %v217
    %v219 = vpop.f32.mrb[0].mxu0
    %220 = vmatprep.mubr.bf16.mxu0 0
    %221 = vmatmul.mubr.bf16.gmra.mrb[0].mxu0 %v111
    %v222 = vpop.f32.mrb[0].mxu0
    %v223 = vadd.f32 %v83, %v222
    %v224 = vpop.f32.mrb[0].mxu0
    %v225 = vpop.f32.mrb[0].mxu0
    %v226 = vadd.f32 %v83, %v225
    %v227 = vpop.f32.mrb[0].mxu0
    %228 = vmatprep.mubr.bf16.mxu0 0
    %229 = vmatmul.mubr.bf16.gmra.mrb[0].mxu0 %v114
    %v230 = vpop.f32.mrb[0].mxu0
    %v231 = vadd.f32 %v83, %v230
    %v232 = vpop.f32.mrb[0].mxu0
    %v233 = vpop.f32.mrb[0].mxu0
    %v234 = vadd.f32 %v83, %v233
    %v235 = vpop.f32.mrb[0].mxu0
    %236 = vmatprep.mubr.bf16.mxu0 0
    %237 = vmatmul.mubr.bf16.gmra.mrb[0].mxu0 %v117
    %v238 = vpop.f32.mrb[0].mxu0
    %v239 = vadd.f32 %v83, %v238
    %v240 = vpop.f32.mrb[0].mxu0
    %v241 = vpop.f32.mrb[0].mxu0
    %v242 = vadd.f32 %v83, %v241
    %v243 = vpop.f32.mrb[0].mxu0
    %244 = vmatprep.mubr.bf16.mxu0 0
    %245 = vmatmul.mubr.bf16.gmra.mrb[0].mxu0 %v120
    %v246 = vpop.f32.mrb[0].mxu0
    %v247 = vadd.f32 %v83, %v246
    %v248 = vpop.f32.mrb[0].mxu0
    %v249 = vpop.f32.mrb[0].mxu0
    %v250 = vadd.f32 %v83, %v249
    %v251 = vpop.f32.mrb[0].mxu0
    %252 = vmatprep.mubr.bf16.mxu0 0
    %253 = vmatmul.mubr.bf16.gmra.mrb[0].mxu0 %v123
    %v254 = vpop.f32.mrb[0].mxu0
    %v255 = vadd.f32 %v83, %v254
    %v256 = vpop.f32.mrb[0].mxu0
    %v257 = vpop.f32.mrb[0].mxu0
    %v258 = vadd.f32 %v83, %v257
    %v259 = vpop.f32.mrb[0].mxu0
    %260 = vmatprep.mubr.bf16.mxu0 0
    %261 = vmatmul.mubr.bf16.gmra.mrb[0].mxu0 %v126
    %v262 = vpop.f32.mrb[0].mxu0
    %v263 = vadd.f32 %v83, %v262
    %v264 = vpop.f32.mrb[0].mxu0
    %v265 = vpop.f32.mrb[0].mxu0
    %v266 = vadd.f32 %v83, %v265
    %v267 = vpop.f32.mrb[0].mxu0
    %268 = vmatprep.mubr.bf16.mxu0 0
    %269 = vmatmul.mubr.bf16.gmra.mrb[0].mxu0 %v129
    %v270 = vpop.f32.mrb[0].mxu0
    %v271 = vadd.f32 %v83, %v270
    %v272 = vpop.f32.mrb[0].mxu0
    %v273 = vpop.f32.mrb[0].mxu0
    %v274 = vadd.f32 %v83, %v273
    %v275 = vpop.f32.mrb[0].mxu0
    %276 = vmatprep.mubr.bf16.mxu0 0
    %277 = vmatmul.mubr.bf16.gmra.mrb[0].mxu0 %v132
    %v278 = vpop.f32.mrb[0].mxu0
    %v279 = vadd.f32 %v83, %v278
    %v280 = vpop.f32.mrb[0].mxu0
    %v281 = vpop.f32.mrb[0].mxu0
    %v282 = vadd.f32 %v83, %v281
    %v283 = vpop.f32.mrb[0].mxu0
    %284 = vmatprep.mubr.bf16.mxu0 0
    %285 = vmatmul.mubr.bf16.gmra.mrb[0].mxu0 %v135
    %v286 = vpop.f32.mrb[0].mxu0
    %v287 = vadd.f32 %v83, %v286
    %v288 = vpop.f32.mrb[0].mxu0
    %v289 = vpop.f32.mrb[0].mxu0
    %v290 = vadd.f32 %v83, %v289
    %v291 = vpop.f32.mrb[0].mxu0
    %292 = vmatprep.mubr.bf16.mxu0 0
    %293 = vmatmul.mubr.bf16.gmra.mrb[0].mxu0 %v138
    %v294 = vpop.f32.mrb[0].mxu0
    %v295 = vadd.f32 %v83, %v294
    %v296 = vpop.f32.mrb[0].mxu0
    %v297 = vpop.f32.mrb[0].mxu0
    %v298 = vadd.f32 %v83, %v297
    %v299 = vpop.f32.mrb[0].mxu0
    %300 = vdwg.mxu0
    %v301 = vmax.f32 %v175, 0.0
    %v302 = vmax.f32 %v178, 0.0
    %v303 = vmax.f32 %v183, 0.0
    %v304 = vmax.f32 %v186, 0.0
    %v305 = vmax.f32 %v191, 0.0
    %v306 = vmax.f32 %v194, 0.0
    %v307 = vmax.f32 %v199, 0.0
    %v308 = vmax.f32 %v202, 0.0
    %v309 = vmax.f32 %v207, 0.0
    %v310 = vmax.f32 %v210, 0.0
    %v311 = vmax.f32 %v215, 0.0
    %v312 = vmax.f32 %v218, 0.0
    %v313 = vmax.f32 %v223, 0.0
    %v314 = vmax.f32 %v226, 0.0
    %v315 = vmax.f32 %v231, 0.0
    %v316 = vmax.f32 %v234, 0.0
    %v317 = vmax.f32 %v239, 0.0
    %v318 = vmax.f32 %v242, 0.0
    %v319 = vmax.f32 %v247, 0.0
    %v320 = vmax.f32 %v250, 0.0
    %v321 = vmax.f32 %v255, 0.0
    %v322 = vmax.f32 %v258, 0.0
    %v323 = vmax.f32 %v263, 0.0
    %v324 = vmax.f32 %v266, 0.0
    %v325 = vmax.f32 %v271, 0.0
    %v326 = vmax.f32 %v274, 0.0
    %v327 = vmax.f32 %v279, 0.0
    %v328 = vmax.f32 %v282, 0.0
    %v329 = vmax.f32 %v287, 0.0
    %v330 = vmax.f32 %v290, 0.0
    %v331 = vmax.f32 %v295, 0.0
    %v332 = vmax.f32 %v298, 0.0
    %v333 = vpack.c.bf16 %v302, %v301
    %v334 = vpack.c.bf16 %v304, %v303
    %v335 = vpack.c.bf16 %v306, %v305
    %v336 = vpack.c.bf16 %v308, %v307
    %v337 = vpack.c.bf16 %v310, %v309
    %v338 = vpack.c.bf16 %v312, %v311
    %v339 = vpack.c.bf16 %v314, %v313
    %v340 = vpack.c.bf16 %v316, %v315
    %v341 = vpack.c.bf16 %v318, %v317
    %v342 = vpack.c.bf16 %v320, %v319
    %v343 = vpack.c.bf16 %v322, %v321
    %v344 = vpack.c.bf16 %v324, %v323
    %v345 = vpack.c.bf16 %v326, %v325
    %v346 = vpack.c.bf16 %v328, %v327
    %v347 = vpack.c.bf16 %v330, %v329
    %v348 = vpack.c.bf16 %v332, %v331
    %v349 = vld [vmem:[%s3] sm:$0xf]
    %v350 = vld [vmem:[%s3 + $0x4] sm:$0xf]
    %v351 = vld [vmem:[%s3 + $0x8] sm:$0xf]
    %v352 = vld [vmem:[%s3 + $0xc] sm:$0xf]
    %v353 = vld [vmem:[%s3 + $0x10] sm:$0xf]
    %v354 = vld [vmem:[%s3 + $0x14] sm:$0xf]
    %v355 = vld [vmem:[%s3 + $0x18] sm:$0xf]
    %v356 = vld [vmem:[%s3 + $0x1c] sm:$0xf]
    %v357 = vld [vmem:[%s3 + $0x20] sm:$0xf]
    %v358 = vld [vmem:[%s3 + $0x24] sm:$0xf]
    %v359 = vld [vmem:[%s3 + $0x28] sm:$0xf]
    %v360 = vld [vmem:[%s3 + $0x2c] sm:$0xf]
    %v361 = vld [vmem:[%s3 + $0x30] sm:$0xf]
    %v362 = vld [vmem:[%s3 + $0x34] sm:$0xf]
    %v363 = vld [vmem:[%s3 + $0x38] sm:$0xf]
    %v364 = vld [vmem:[%s3 + $0x3c] sm:$0xf]
    %v365 = vld [vmem:[%s4] sm:$0x1]
    %v367 = vlaneseq
    %v368 = vshrl.u32 %v367, 7
    %v369 = vsub.s32 0, %v368
    %v370 = vrot.slane %v365, %v369
    %v388 = vunpack.c.l.b16 %v349
    %v389 = vunpack.c.l.b16 %v350
    %v390 = vunpack.c.l.b16 %v351
    %v391 = vunpack.c.l.b16 %v352
    %v392 = vunpack.c.l.b16 %v353
    %v393 = vunpack.c.l.b16 %v354
    %v394 = vunpack.c.l.b16 %v355
    %v395 = vunpack.c.l.b16 %v356
    %v396 = vunpack.c.l.b16 %v357
    %v397 = vunpack.c.l.b16 %v358
    %v398 = vunpack.c.l.b16 %v359
    %v399 = vunpack.c.l.b16 %v360
    %v400 = vunpack.c.l.b16 %v361
    %v401 = vunpack.c.l.b16 %v362
    %v402 = vunpack.c.l.b16 %v363
    %v403 = vunpack.c.l.b16 %v364
    %v404 = vpack.c.b16 %v389, %v388
    %v405 = vpack.c.b16 %v391, %v390
    %v406 = vpack.c.b16 %v393, %v392
    %v407 = vpack.c.b16 %v395, %v394
    %v408 = vpack.c.b16 %v397, %v396
    %v409 = vpack.c.b16 %v399, %v398
    %v410 = vpack.c.b16 %v401, %v400
    %v411 = vpack.c.b16 %v403, %v402
    %420 = vmatprep.subr.bf16.mxu0 0
    %421 = vmatpush1.bf16.msra.mxu0 %v404
    %422 = vmatprep.subr.bf16.mxu0 0
    %423 = vmatpush1.bf16.msra.mxu0 %v405
    %424 = vmatprep.subr.bf16.mxu0 0
    %425 = vmatpush1.bf16.msra.mxu0 %v406
    %426 = vmatprep.subr.bf16.mxu0 0
    %427 = vmatpush1.bf16.msra.mxu0 %v407
    %428 = vmatprep.subr.bf16.mxu0 0
    %429 = vmatpush1.bf16.msra.mxu0 %v408
    %430 = vmatprep.subr.bf16.mxu0 0
    %431 = vmatpush1.bf16.msra.mxu0 %v409
    %432 = vmatprep.subr.bf16.mxu0 0
    %433 = vmatpush1.bf16.msra.mxu0 %v410
    %434 = vmatprep.subr.bf16.mxu0 0
    %435 = vmatpush1.bf16.msra.mxu0 %v411
    %436 = vmatprep.subr.bf16.mxu0 0
    %437 = vmatpush1.bf16.msra.mxu0 0
    %438 = vmatprep.subr.bf16.mxu0 0
    %439 = vmatpush1.bf16.msra.mxu0 0
    %440 = vmatprep.subr.bf16.mxu0 0
    %441 = vmatpush1.bf16.msra.mxu0 0
    %442 = vmatprep.subr.bf16.mxu0 0
    %443 = vmatpush1.bf16.msra.mxu0 0
    %444 = vmatprep.subr.bf16.mxu0 0
    %445 = vmatpush1.bf16.msra.mxu0 0
    %446 = vmatprep.subr.bf16.mxu0 0
    %447 = vmatpush1.bf16.msra.mxu0 0
    %448 = vmatprep.subr.bf16.mxu0 0
    %449 = vmatpush1.bf16.msra.mxu0 0
    %450 = vmatprep.subr.bf16.mxu0 0
    %451 = vmatpush1.bf16.msra.mxu0 0
    %452 = vmatprep.mubr.bf16.mxu0 0
    %453 = vmatmul.mubr.bf16.gmra.mrb[0].mxu0 %v333
    %v454 = vpop.f32.mrb[0].mxu0
    %v455 = vadd.f32 %v370, %v454
    %v456 = vpop.f32.mrb[0].mxu0
    %v457 = vpop.f32.mrb[0].mxu0
    %v458 = vadd.f32 %v370, %v457
    %v459 = vpop.f32.mrb[0].mxu0
    %460 = vmatprep.mubr.bf16.mxu0 0
    %461 = vmatmul.mubr.bf16.gmra.mrb[0].mxu0 %v334
    %v462 = vpop.f32.mrb[0].mxu0
    %v463 = vadd.f32 %v370, %v462
    %v464 = vpop.f32.mrb[0].mxu0
    %v465 = vpop.f32.mrb[0].mxu0
    %v466 = vadd.f32 %v370, %v465
    %v467 = vpop.f32.mrb[0].mxu0
    %468 = vmatprep.mubr.bf16.mxu0 0
    %469 = vmatmul.mubr.bf16.gmra.mrb[0].mxu0 %v335
    %v470 = vpop.f32.mrb[0].mxu0
    %v471 = vadd.f32 %v370, %v470
    %v472 = vpop.f32.mrb[0].mxu0
    %v473 = vpop.f32.mrb[0].mxu0
    %v474 = vadd.f32 %v370, %v473
    %v475 = vpop.f32.mrb[0].mxu0
    %476 = vmatprep.mubr.bf16.mxu0 0
    %477 = vmatmul.mubr.bf16.gmra.mrb[0].mxu0 %v336
    %v478 = vpop.f32.mrb[0].mxu0
    %v479 = vadd.f32 %v370, %v478
    %v480 = vpop.f32.mrb[0].mxu0
    %v481 = vpop.f32.mrb[0].mxu0
    %v482 = vadd.f32 %v370, %v481
    %v483 = vpop.f32.mrb[0].mxu0
    %484 = vmatprep.mubr.bf16.mxu0 0
    %485 = vmatmul.mubr.bf16.gmra.mrb[0].mxu0 %v337
    %v486 = vpop.f32.mrb[0].mxu0
    %v487 = vadd.f32 %v370, %v486
    %v488 = vpop.f32.mrb[0].mxu0
    %v489 = vpop.f32.mrb[0].mxu0
    %v490 = vadd.f32 %v370, %v489
    %v491 = vpop.f32.mrb[0].mxu0
    %492 = vmatprep.mubr.bf16.mxu0 0
    %493 = vmatmul.mubr.bf16.gmra.mrb[0].mxu0 %v338
    %v494 = vpop.f32.mrb[0].mxu0
    %v495 = vadd.f32 %v370, %v494
    %v496 = vpop.f32.mrb[0].mxu0
    %v497 = vpop.f32.mrb[0].mxu0
    %v498 = vadd.f32 %v370, %v497
    %v499 = vpop.f32.mrb[0].mxu0
    %500 = vmatprep.mubr.bf16.mxu0 0
    %501 = vmatmul.mubr.bf16.gmra.mrb[0].mxu0 %v339
    %v502 = vpop.f32.mrb[0].mxu0
    %v503 = vadd.f32 %v370, %v502
    %v504 = vpop.f32.mrb[0].mxu0
    %v505 = vpop.f32.mrb[0].mxu0
    %v506 = vadd.f32 %v370, %v505
    %v507 = vpop.f32.mrb[0].mxu0
    %508 = vmatprep.mubr.bf16.mxu0 0
    %509 = vmatmul.mubr.bf16.gmra.mrb[0].mxu0 %v340
    %v510 = vpop.f32.mrb[0].mxu0
    %v511 = vadd.f32 %v370, %v510
    %v512 = vpop.f32.mrb[0].mxu0
    %v513 = vpop.f32.mrb[0].mxu0
    %v514 = vadd.f32 %v370, %v513
    %v515 = vpop.f32.mrb[0].mxu0
    %516 = vmatprep.mubr.bf16.mxu0 0
    %517 = vmatmul.mubr.bf16.gmra.mrb[0].mxu0 %v341
    %v518 = vpop.f32.mrb[0].mxu0
    %v519 = vadd.f32 %v370, %v518
    %v520 = vpop.f32.mrb[0].mxu0
    %v521 = vpop.f32.mrb[0].mxu0
    %v522 = vadd.f32 %v370, %v521
    %v523 = vpop.f32.mrb[0].mxu0
    %524 = vmatprep.mubr.bf16.mxu0 0
    %525 = vmatmul.mubr.bf16.gmra.mrb[0].mxu0 %v342
    %v526 = vpop.f32.mrb[0].mxu0
    %v527 = vadd.f32 %v370, %v526
    %v528 = vpop.f32.mrb[0].mxu0
    %v529 = vpop.f32.mrb[0].mxu0
    %v530 = vadd.f32 %v370, %v529
    %v531 = vpop.f32.mrb[0].mxu0
    %532 = vmatprep.mubr.bf16.mxu0 0
    %533 = vmatmul.mubr.bf16.gmra.mrb[0].mxu0 %v343
    %v534 = vpop.f32.mrb[0].mxu0
    %v535 = vadd.f32 %v370, %v534
    %v536 = vpop.f32.mrb[0].mxu0
    %v537 = vpop.f32.mrb[0].mxu0
    %v538 = vadd.f32 %v370, %v537
    %v539 = vpop.f32.mrb[0].mxu0
    %540 = vmatprep.mubr.bf16.mxu0 0
    %541 = vmatmul.mubr.bf16.gmra.mrb[0].mxu0 %v344
    %v542 = vpop.f32.mrb[0].mxu0
    %v543 = vadd.f32 %v370, %v542
    %v544 = vpop.f32.mrb[0].mxu0
    %v545 = vpop.f32.mrb[0].mxu0
    %v546 = vadd.f32 %v370, %v545
    %v547 = vpop.f32.mrb[0].mxu0
    %548 = vmatprep.mubr.bf16.mxu0 0
    %549 = vmatmul.mubr.bf16.gmra.mrb[0].mxu0 %v345
    %v550 = vpop.f32.mrb[0].mxu0
    %v551 = vadd.f32 %v370, %v550
    %v552 = vpop.f32.mrb[0].mxu0
    %v553 = vpop.f32.mrb[0].mxu0
    %v554 = vadd.f32 %v370, %v553
    %v555 = vpop.f32.mrb[0].mxu0
    %556 = vmatprep.mubr.bf16.mxu0 0
    %557 = vmatmul.mubr.bf16.gmra.mrb[0].mxu0 %v346
    %v558 = vpop.f32.mrb[0].mxu0
    %v559 = vadd.f32 %v370, %v558
    %v560 = vpop.f32.mrb[0].mxu0
    %v561 = vpop.f32.mrb[0].mxu0
    %v562 = vadd.f32 %v370, %v561
    %v563 = vpop.f32.mrb[0].mxu0
    %564 = vmatprep.mubr.bf16.mxu0 0
    %565 = vmatmul.mubr.bf16.gmra.mrb[0].mxu0 %v347
    %v566 = vpop.f32.mrb[0].mxu0
    %v567 = vadd.f32 %v370, %v566
    %v568 = vpop.f32.mrb[0].mxu0
    %v569 = vpop.f32.mrb[0].mxu0
    %v570 = vadd.f32 %v370, %v569
    %v571 = vpop.f32.mrb[0].mxu0
    %572 = vmatprep.mubr.bf16.mxu0 0
    %573 = vmatmul.mubr.bf16.gmra.mrb[0].mxu0 %v348
    %v574 = vpop.f32.mrb[0].mxu0
    %v575 = vadd.f32 %v370, %v574
    %v576 = vpop.f32.mrb[0].mxu0
    %v577 = vpop.f32.mrb[0].mxu0
    %v578 = vadd.f32 %v370, %v577
    %v579 = vpop.f32.mrb[0].mxu0
    %580 = vdwg.mxu0
    %v581 = vmax.f32 %v455, 0.0
    %v582 = vmax.f32 %v458, 0.0
    %v583 = vmax.f32 %v463, 0.0
    %v584 = vmax.f32 %v466, 0.0
    %v585 = vmax.f32 %v471, 0.0
    %v586 = vmax.f32 %v474, 0.0
    %v587 = vmax.f32 %v479, 0.0
    %v588 = vmax.f32 %v482, 0.0
    %v589 = vmax.f32 %v487, 0.0
    %v590 = vmax.f32 %v490, 0.0
    %v591 = vmax.f32 %v495, 0.0
    %v592 = vmax.f32 %v498, 0.0
    %v593 = vmax.f32 %v503, 0.0
    %v594 = vmax.f32 %v506, 0.0
    %v595 = vmax.f32 %v511, 0.0
    %v596 = vmax.f32 %v514, 0.0
    %v597 = vmax.f32 %v519, 0.0
    %v598 = vmax.f32 %v522, 0.0
    %v599 = vmax.f32 %v527, 0.0
    %v600 = vmax.f32 %v530, 0.0
    %v601 = vmax.f32 %v535, 0.0
    %v602 = vmax.f32 %v538, 0.0
    %v603 = vmax.f32 %v543, 0.0
    %v604 = vmax.f32 %v546, 0.0
    %v605 = vmax.f32 %v551, 0.0
    %v606 = vmax.f32 %v554, 0.0
    %v607 = vmax.f32 %v559, 0.0
    %v608 = vmax.f32 %v562, 0.0
    %v609 = vmax.f32 %v567, 0.0
    %v610 = vmax.f32 %v570, 0.0
    %v611 = vmax.f32 %v575, 0.0
    %v612 = vmax.f32 %v578, 0.0
    %v613 = vpack.c.bf16 %v582, %v581
    %v614 = vpack.c.bf16 %v584, %v583
    %v615 = vpack.c.bf16 %v586, %v585
    %v616 = vpack.c.bf16 %v588, %v587
    %v617 = vpack.c.bf16 %v590, %v589
    %v618 = vpack.c.bf16 %v592, %v591
    %v619 = vpack.c.bf16 %v594, %v593
    %v620 = vpack.c.bf16 %v596, %v595
    %v621 = vpack.c.bf16 %v598, %v597
    %v622 = vpack.c.bf16 %v600, %v599
    %v623 = vpack.c.bf16 %v602, %v601
    %v624 = vpack.c.bf16 %v604, %v603
    %v625 = vpack.c.bf16 %v606, %v605
    %v626 = vpack.c.bf16 %v608, %v607
    %v627 = vpack.c.bf16 %v610, %v609
    %v628 = vpack.c.bf16 %v612, %v611
    %s629 = scalar_lea.vmem %s3, 64
    %v630 = vld [vmem:[%s629] sm:$0xf]
    %v631 = vld [vmem:[%s629 + $0x4] sm:$0xf]
    %v632 = vld [vmem:[%s629 + $0x8] sm:$0xf]
    %v633 = vld [vmem:[%s629 + $0xc] sm:$0xf]
    %v634 = vld [vmem:[%s629 + $0x10] sm:$0xf]
    %v635 = vld [vmem:[%s629 + $0x14] sm:$0xf]
    %v636 = vld [vmem:[%s629 + $0x18] sm:$0xf]
    %v637 = vld [vmem:[%s629 + $0x1c] sm:$0xf]
    %v638 = vld [vmem:[%s629 + $0x20] sm:$0xf]
    %v639 = vld [vmem:[%s629 + $0x24] sm:$0xf]
    %v640 = vld [vmem:[%s629 + $0x28] sm:$0xf]
    %v641 = vld [vmem:[%s629 + $0x2c] sm:$0xf]
    %v642 = vld [vmem:[%s629 + $0x30] sm:$0xf]
    %v643 = vld [vmem:[%s629 + $0x34] sm:$0xf]
    %v644 = vld [vmem:[%s629 + $0x38] sm:$0xf]
    %v645 = vld [vmem:[%s629 + $0x3c] sm:$0xf]
    %s646 = scalar_lea.vmem %s4, 1
    %v647 = vld [vmem:[%s646] sm:$0x1]
    %v649 = vlaneseq
    %v650 = vshrl.u32 %v649, 7
    %v651 = vsub.s32 0, %v650
    %v652 = vrot.slane %v647, %v651
    %v670 = vunpack.c.l.b16 %v630
    %v671 = vunpack.c.l.b16 %v631
    %v672 = vunpack.c.l.b16 %v632
    %v673 = vunpack.c.l.b16 %v633
    %v674 = vunpack.c.l.b16 %v634
    %v675 = vunpack.c.l.b16 %v635
    %v676 = vunpack.c.l.b16 %v636
    %v677 = vunpack.c.l.b16 %v637
    %v678 = vunpack.c.l.b16 %v638
    %v679 = vunpack.c.l.b16 %v639
    %v680 = vunpack.c.l.b16 %v640
    %v681 = vunpack.c.l.b16 %v641
    %v682 = vunpack.c.l.b16 %v642
    %v683 = vunpack.c.l.b16 %v643
    %v684 = vunpack.c.l.b16 %v644
    %v685 = vunpack.c.l.b16 %v645
    %v686 = vpack.c.b16 %v671, %v670
    %v687 = vpack.c.b16 %v673, %v672
    %v688 = vpack.c.b16 %v675, %v674
    %v689 = vpack.c.b16 %v677, %v676
    %v690 = vpack.c.b16 %v679, %v678
    %v691 = vpack.c.b16 %v681, %v680
    %v692 = vpack.c.b16 %v683, %v682
    %v693 = vpack.c.b16 %v685, %v684
    %702 = vmatprep.subr.bf16.mxu0 0
    %703 = vmatpush1.bf16.msra.mxu0 %v686
    %704 = vmatprep.subr.bf16.mxu0 0
    %705 = vmatpush1.bf16.msra.mxu0 %v687
    %706 = vmatprep.subr.bf16.mxu0 0
    %707 = vmatpush1.bf16.msra.mxu0 %v688
    %708 = vmatprep.subr.bf16.mxu0 0
    %709 = vmatpush1.bf16.msra.mxu0 %v689
    %710 = vmatprep.subr.bf16.mxu0 0
    %711 = vmatpush1.bf16.msra.mxu0 %v690
    %712 = vmatprep.subr.bf16.mxu0 0
    %713 = vmatpush1.bf16.msra.mxu0 %v691
    %714 = vmatprep.subr.bf16.mxu0 0
    %715 = vmatpush1.bf16.msra.mxu0 %v692
    %716 = vmatprep.subr.bf16.mxu0 0
    %717 = vmatpush1.bf16.msra.mxu0 %v693
    %718 = vmatprep.subr.bf16.mxu0 0
    %719 = vmatpush1.bf16.msra.mxu0 0
    %720 = vmatprep.subr.bf16.mxu0 0
    %721 = vmatpush1.bf16.msra.mxu0 0
    %722 = vmatprep.subr.bf16.mxu0 0
    %723 = vmatpush1.bf16.msra.mxu0 0
    %724 = vmatprep.subr.bf16.mxu0 0
    %725 = vmatpush1.bf16.msra.mxu0 0
    %726 = vmatprep.subr.bf16.mxu0 0
    %727 = vmatpush1.bf16.msra.mxu0 0
    %728 = vmatprep.subr.bf16.mxu0 0
    %729 = vmatpush1.bf16.msra.mxu0 0
    %730 = vmatprep.subr.bf16.mxu0 0
    %731 = vmatpush1.bf16.msra.mxu0 0
    %732 = vmatprep.subr.bf16.mxu0 0
    %733 = vmatpush1.bf16.msra.mxu0 0
    %734 = vmatprep.mubr.bf16.mxu0 0
    %735 = vmatmul.mubr.bf16.gmra.mrb[0].mxu0 %v613
    %v736 = vpop.f32.mrb[0].mxu0
    %v737 = vadd.f32 %v652, %v736
    %v738 = vpop.f32.mrb[0].mxu0
    %v739 = vpop.f32.mrb[0].mxu0
    %v740 = vadd.f32 %v652, %v739
    %v741 = vpop.f32.mrb[0].mxu0
    %742 = vmatprep.mubr.bf16.mxu0 0
    %743 = vmatmul.mubr.bf16.gmra.mrb[0].mxu0 %v614
    %v744 = vpop.f32.mrb[0].mxu0
    %v745 = vadd.f32 %v652, %v744
    %v746 = vpop.f32.mrb[0].mxu0
    %v747 = vpop.f32.mrb[0].mxu0
    %v748 = vadd.f32 %v652, %v747
    %v749 = vpop.f32.mrb[0].mxu0
    %750 = vmatprep.mubr.bf16.mxu0 0
    %751 = vmatmul.mubr.bf16.gmra.mrb[0].mxu0 %v615
    %v752 = vpop.f32.mrb[0].mxu0
    %v753 = vadd.f32 %v652, %v752
    %v754 = vpop.f32.mrb[0].mxu0
    %v755 = vpop.f32.mrb[0].mxu0
    %v756 = vadd.f32 %v652, %v755
    %v757 = vpop.f32.mrb[0].mxu0
    %758 = vmatprep.mubr.bf16.mxu0 0
    %759 = vmatmul.mubr.bf16.gmra.mrb[0].mxu0 %v616
    %v760 = vpop.f32.mrb[0].mxu0
    %v761 = vadd.f32 %v652, %v760
    %v762 = vpop.f32.mrb[0].mxu0
    %v763 = vpop.f32.mrb[0].mxu0
    %v764 = vadd.f32 %v652, %v763
    %v765 = vpop.f32.mrb[0].mxu0
    %766 = vmatprep.mubr.bf16.mxu0 0
    %767 = vmatmul.mubr.bf16.gmra.mrb[0].mxu0 %v617
    %v768 = vpop.f32.mrb[0].mxu0
    %v769 = vadd.f32 %v652, %v768
    %v770 = vpop.f32.mrb[0].mxu0
    %v771 = vpop.f32.mrb[0].mxu0
    %v772 = vadd.f32 %v652, %v771
    %v773 = vpop.f32.mrb[0].mxu0
    %774 = vmatprep.mubr.bf16.mxu0 0
    %775 = vmatmul.mubr.bf16.gmra.mrb[0].mxu0 %v618
    %v776 = vpop.f32.mrb[0].mxu0
    %v777 = vadd.f32 %v652, %v776
    %v778 = vpop.f32.mrb[0].mxu0
    %v779 = vpop.f32.mrb[0].mxu0
    %v780 = vadd.f32 %v652, %v779
    %v781 = vpop.f32.mrb[0].mxu0
    %782 = vmatprep.mubr.bf16.mxu0 0
    %783 = vmatmul.mubr.bf16.gmra.mrb[0].mxu0 %v619
    %v784 = vpop.f32.mrb[0].mxu0
    %v785 = vadd.f32 %v652, %v784
    %v786 = vpop.f32.mrb[0].mxu0
    %v787 = vpop.f32.mrb[0].mxu0
    %v788 = vadd.f32 %v652, %v787
    %v789 = vpop.f32.mrb[0].mxu0
    %790 = vmatprep.mubr.bf16.mxu0 0
    %791 = vmatmul.mubr.bf16.gmra.mrb[0].mxu0 %v620
    %v792 = vpop.f32.mrb[0].mxu0
    %v793 = vadd.f32 %v652, %v792
    %v794 = vpop.f32.mrb[0].mxu0
    %v795 = vpop.f32.mrb[0].mxu0
    %v796 = vadd.f32 %v652, %v795
    %v797 = vpop.f32.mrb[0].mxu0
    %798 = vmatprep.mubr.bf16.mxu0 0
    %799 = vmatmul.mubr.bf16.gmra.mrb[0].mxu0 %v621
    %v800 = vpop.f32.mrb[0].mxu0
    %v801 = vadd.f32 %v652, %v800
    %v802 = vpop.f32.mrb[0].mxu0
    %v803 = vpop.f32.mrb[0].mxu0
    %v804 = vadd.f32 %v652, %v803
    %v805 = vpop.f32.mrb[0].mxu0
    %806 = vmatprep.mubr.bf16.mxu0 0
    %807 = vmatmul.mubr.bf16.gmra.mrb[0].mxu0 %v622
    %v808 = vpop.f32.mrb[0].mxu0
    %v809 = vadd.f32 %v652, %v808
    %v810 = vpop.f32.mrb[0].mxu0
    %v811 = vpop.f32.mrb[0].mxu0
    %v812 = vadd.f32 %v652, %v811
    %v813 = vpop.f32.mrb[0].mxu0
    %814 = vmatprep.mubr.bf16.mxu0 0
    %815 = vmatmul.mubr.bf16.gmra.mrb[0].mxu0 %v623
    %v816 = vpop.f32.mrb[0].mxu0
    %v817 = vadd.f32 %v652, %v816
    %v818 = vpop.f32.mrb[0].mxu0
    %v819 = vpop.f32.mrb[0].mxu0
    %v820 = vadd.f32 %v652, %v819
    %v821 = vpop.f32.mrb[0].mxu0
    %822 = vmatprep.mubr.bf16.mxu0 0
    %823 = vmatmul.mubr.bf16.gmra.mrb[0].mxu0 %v624
    %v824 = vpop.f32.mrb[0].mxu0
    %v825 = vadd.f32 %v652, %v824
    %v826 = vpop.f32.mrb[0].mxu0
    %v827 = vpop.f32.mrb[0].mxu0
    %v828 = vadd.f32 %v652, %v827
    %v829 = vpop.f32.mrb[0].mxu0
    %830 = vmatprep.mubr.bf16.mxu0 0
    %831 = vmatmul.mubr.bf16.gmra.mrb[0].mxu0 %v625
    %v832 = vpop.f32.mrb[0].mxu0
    %v833 = vadd.f32 %v652, %v832
    %v834 = vpop.f32.mrb[0].mxu0
    %v835 = vpop.f32.mrb[0].mxu0
    %v836 = vadd.f32 %v652, %v835
    %v837 = vpop.f32.mrb[0].mxu0
    %838 = vmatprep.mubr.bf16.mxu0 0
    %839 = vmatmul.mubr.bf16.gmra.mrb[0].mxu0 %v626
    %v840 = vpop.f32.mrb[0].mxu0
    %v841 = vadd.f32 %v652, %v840
    %v842 = vpop.f32.mrb[0].mxu0
    %v843 = vpop.f32.mrb[0].mxu0
    %v844 = vadd.f32 %v652, %v843
    %v845 = vpop.f32.mrb[0].mxu0
    %846 = vmatprep.mubr.bf16.mxu0 0
    %847 = vmatmul.mubr.bf16.gmra.mrb[0].mxu0 %v627
    %v848 = vpop.f32.mrb[0].mxu0
    %v849 = vadd.f32 %v652, %v848
    %v850 = vpop.f32.mrb[0].mxu0
    %v851 = vpop.f32.mrb[0].mxu0
    %v852 = vadd.f32 %v652, %v851
    %v853 = vpop.f32.mrb[0].mxu0
    %854 = vmatprep.mubr.bf16.mxu0 0
    %855 = vmatmul.mubr.bf16.gmra.mrb[0].mxu0 %v628
    %v856 = vpop.f32.mrb[0].mxu0
    %v857 = vadd.f32 %v652, %v856
    %v858 = vpop.f32.mrb[0].mxu0
    %v859 = vpop.f32.mrb[0].mxu0
    %v860 = vadd.f32 %v652, %v859
    %v861 = vpop.f32.mrb[0].mxu0
    %862 = vdwg.mxu0
    %v863 = vmax.f32 %v737, 0.0
    %v864 = vmax.f32 %v740, 0.0
    %v865 = vmax.f32 %v745, 0.0
    %v866 = vmax.f32 %v748, 0.0
    %v867 = vmax.f32 %v753, 0.0
    %v868 = vmax.f32 %v756, 0.0
    %v869 = vmax.f32 %v761, 0.0
    %v870 = vmax.f32 %v764, 0.0
    %v871 = vmax.f32 %v769, 0.0
    %v872 = vmax.f32 %v772, 0.0
    %v873 = vmax.f32 %v777, 0.0
    %v874 = vmax.f32 %v780, 0.0
    %v875 = vmax.f32 %v785, 0.0
    %v876 = vmax.f32 %v788, 0.0
    %v877 = vmax.f32 %v793, 0.0
    %v878 = vmax.f32 %v796, 0.0
    %v879 = vmax.f32 %v801, 0.0
    %v880 = vmax.f32 %v804, 0.0
    %v881 = vmax.f32 %v809, 0.0
    %v882 = vmax.f32 %v812, 0.0
    %v883 = vmax.f32 %v817, 0.0
    %v884 = vmax.f32 %v820, 0.0
    %v885 = vmax.f32 %v825, 0.0
    %v886 = vmax.f32 %v828, 0.0
    %v887 = vmax.f32 %v833, 0.0
    %v888 = vmax.f32 %v836, 0.0
    %v889 = vmax.f32 %v841, 0.0
    %v890 = vmax.f32 %v844, 0.0
    %v891 = vmax.f32 %v849, 0.0
    %v892 = vmax.f32 %v852, 0.0
    %v893 = vmax.f32 %v857, 0.0
    %v894 = vmax.f32 %v860, 0.0
    %v895 = vpack.c.bf16 %v864, %v863
    %v896 = vpack.c.bf16 %v866, %v865
    %v897 = vpack.c.bf16 %v868, %v867
    %v898 = vpack.c.bf16 %v870, %v869
    %v899 = vpack.c.bf16 %v872, %v871
    %v900 = vpack.c.bf16 %v874, %v873
    %v901 = vpack.c.bf16 %v876, %v875
    %v902 = vpack.c.bf16 %v878, %v877
    %v903 = vpack.c.bf16 %v880, %v879
    %v904 = vpack.c.bf16 %v882, %v881
    %v905 = vpack.c.bf16 %v884, %v883
    %v906 = vpack.c.bf16 %v886, %v885
    %v907 = vpack.c.bf16 %v888, %v887
    %v908 = vpack.c.bf16 %v890, %v889
    %v909 = vpack.c.bf16 %v892, %v891
    %v910 = vpack.c.bf16 %v894, %v893
    %v911 = vld [vmem:[%s5] sm:$0xf]
    %v912 = vld [vmem:[%s5 + $0x4] sm:$0xf]
    %v913 = vld [vmem:[%s5 + $0x8] sm:$0xf]
    %v914 = vld [vmem:[%s5 + $0xc] sm:$0xf]
    %v915 = vld [vmem:[%s5 + $0x10] sm:$0xf]
    %v916 = vld [vmem:[%s5 + $0x14] sm:$0xf]
    %v917 = vld [vmem:[%s5 + $0x18] sm:$0xf]
    %v918 = vld [vmem:[%s5 + $0x1c] sm:$0xf]
    %v919 = vld [vmem:[%s5 + $0x20] sm:$0xf]
    %v920 = vld [vmem:[%s5 + $0x24] sm:$0xf]
    %v921 = vld [vmem:[%s5 + $0x28] sm:$0xf]
    %v922 = vld [vmem:[%s5 + $0x2c] sm:$0xf]
    %v923 = vld [vmem:[%s5 + $0x30] sm:$0xf]
    %v924 = vld [vmem:[%s5 + $0x34] sm:$0xf]
    %v925 = vld [vmem:[%s5 + $0x38] sm:$0xf]
    %v926 = vld [vmem:[%s5 + $0x3c] sm:$0xf]
    %v927 = vld [vmem:[%s6] sm:$0x1]
    %v929 = vlaneseq
    %v930 = vshrl.u32 %v929, 7
    %v931 = vsub.s32 0, %v930
    %v932 = vrot.slane %v927, %v931
    %v950 = vunpack.c.l.b16 %v911
    %v951 = vunpack.c.l.b16 %v912
    %v952 = vunpack.c.l.b16 %v913
    %v953 = vunpack.c.l.b16 %v914
    %v954 = vunpack.c.l.b16 %v915
    %v955 = vunpack.c.l.b16 %v916
    %v956 = vunpack.c.l.b16 %v917
    %v957 = vunpack.c.l.b16 %v918
    %v958 = vunpack.c.l.b16 %v919
    %v959 = vunpack.c.l.b16 %v920
    %v960 = vunpack.c.l.b16 %v921
    %v961 = vunpack.c.l.b16 %v922
    %v962 = vunpack.c.l.b16 %v923
    %v963 = vunpack.c.l.b16 %v924
    %v964 = vunpack.c.l.b16 %v925
    %v965 = vunpack.c.l.b16 %v926
    %v966 = vpack.c.b16 %v951, %v950
    %v967 = vpack.c.b16 %v953, %v952
    %v968 = vpack.c.b16 %v955, %v954
    %v969 = vpack.c.b16 %v957, %v956
    %v970 = vpack.c.b16 %v959, %v958
    %v971 = vpack.c.b16 %v961, %v960
    %v972 = vpack.c.b16 %v963, %v962
    %v973 = vpack.c.b16 %v965, %v964
    %982 = vmatprep.subr.bf16.mxu0 0
    %983 = vmatpush1.bf16.msra.mxu0 %v966
    %984 = vmatprep.subr.bf16.mxu0 0
    %985 = vmatpush1.bf16.msra.mxu0 %v967
    %986 = vmatprep.subr.bf16.mxu0 0
    %987 = vmatpush1.bf16.msra.mxu0 %v968
    %988 = vmatprep.subr.bf16.mxu0 0
    %989 = vmatpush1.bf16.msra.mxu0 %v969
    %990 = vmatprep.subr.bf16.mxu0 0
    %991 = vmatpush1.bf16.msra.mxu0 %v970
    %992 = vmatprep.subr.bf16.mxu0 0
    %993 = vmatpush1.bf16.msra.mxu0 %v971
    %994 = vmatprep.subr.bf16.mxu0 0
    %995 = vmatpush1.bf16.msra.mxu0 %v972
    %996 = vmatprep.subr.bf16.mxu0 0
    %997 = vmatpush1.bf16.msra.mxu0 %v973
    %998 = vmatprep.subr.bf16.mxu0 0
    %999 = vmatpush1.bf16.msra.mxu0 0
    %1000 = vmatprep.subr.bf16.mxu0 0
    %1001 = vmatpush1.bf16.msra.mxu0 0
    %1002 = vmatprep.subr.bf16.mxu0 0
    %1003 = vmatpush1.bf16.msra.mxu0 0
    %1004 = vmatprep.subr.bf16.mxu0 0
    %1005 = vmatpush1.bf16.msra.mxu0 0
    %1006 = vmatprep.subr.bf16.mxu0 0
    %1007 = vmatpush1.bf16.msra.mxu0 0
    %1008 = vmatprep.subr.bf16.mxu0 0
    %1009 = vmatpush1.bf16.msra.mxu0 0
    %1010 = vmatprep.subr.bf16.mxu0 0
    %1011 = vmatpush1.bf16.msra.mxu0 0
    %1012 = vmatprep.subr.bf16.mxu0 0
    %1013 = vmatpush1.bf16.msra.mxu0 0
    %1014 = vmatprep.mubr.bf16.mxu0 0
    %1015 = vmatmul.mubr.bf16.gmra.mrb[0].mxu0 %v895
    %v1016 = vpop.f32.mrb[0].mxu0
    %v1017 = vadd.f32 %v932, %v1016
    %v1018 = vpop.f32.mrb[0].mxu0
    %v1019 = vpop.f32.mrb[0].mxu0
    %v1020 = vadd.f32 %v932, %v1019
    %v1021 = vpop.f32.mrb[0].mxu0
    %1022 = vmatprep.mubr.bf16.mxu0 0
    %1023 = vmatmul.mubr.bf16.gmra.mrb[0].mxu0 %v896
    %v1024 = vpop.f32.mrb[0].mxu0
    %v1025 = vadd.f32 %v932, %v1024
    %v1026 = vpop.f32.mrb[0].mxu0
    %v1027 = vpop.f32.mrb[0].mxu0
    %v1028 = vadd.f32 %v932, %v1027
    %v1029 = vpop.f32.mrb[0].mxu0
    %1030 = vmatprep.mubr.bf16.mxu0 0
    %1031 = vmatmul.mubr.bf16.gmra.mrb[0].mxu0 %v897
    %v1032 = vpop.f32.mrb[0].mxu0
    %v1033 = vadd.f32 %v932, %v1032
    %v1034 = vpop.f32.mrb[0].mxu0
    %v1035 = vpop.f32.mrb[0].mxu0
    %v1036 = vadd.f32 %v932, %v1035
    %v1037 = vpop.f32.mrb[0].mxu0
    %1038 = vmatprep.mubr.bf16.mxu0 0
    %1039 = vmatmul.mubr.bf16.gmra.mrb[0].mxu0 %v898
    %v1040 = vpop.f32.mrb[0].mxu0
    %v1041 = vadd.f32 %v932, %v1040
    %v1042 = vpop.f32.mrb[0].mxu0
    %v1043 = vpop.f32.mrb[0].mxu0
    %v1044 = vadd.f32 %v932, %v1043
    %v1045 = vpop.f32.mrb[0].mxu0
    %1046 = vmatprep.mubr.bf16.mxu0 0
    %1047 = vmatmul.mubr.bf16.gmra.mrb[0].mxu0 %v899
    %v1048 = vpop.f32.mrb[0].mxu0
    %v1049 = vadd.f32 %v932, %v1048
    %v1050 = vpop.f32.mrb[0].mxu0
    %v1051 = vpop.f32.mrb[0].mxu0
    %v1052 = vadd.f32 %v932, %v1051
    %v1053 = vpop.f32.mrb[0].mxu0
    %1054 = vmatprep.mubr.bf16.mxu0 0
    %1055 = vmatmul.mubr.bf16.gmra.mrb[0].mxu0 %v900
    %v1056 = vpop.f32.mrb[0].mxu0
    %v1057 = vadd.f32 %v932, %v1056
    %v1058 = vpop.f32.mrb[0].mxu0
    %v1059 = vpop.f32.mrb[0].mxu0
    %v1060 = vadd.f32 %v932, %v1059
    %v1061 = vpop.f32.mrb[0].mxu0
    %1062 = vmatprep.mubr.bf16.mxu0 0
    %1063 = vmatmul.mubr.bf16.gmra.mrb[0].mxu0 %v901
    %v1064 = vpop.f32.mrb[0].mxu0
    %v1065 = vadd.f32 %v932, %v1064
    %v1066 = vpop.f32.mrb[0].mxu0
    %v1067 = vpop.f32.mrb[0].mxu0
    %v1068 = vadd.f32 %v932, %v1067
    %v1069 = vpop.f32.mrb[0].mxu0
    %1070 = vmatprep.mubr.bf16.mxu0 0
    %1071 = vmatmul.mubr.bf16.gmra.mrb[0].mxu0 %v902
    %v1072 = vpop.f32.mrb[0].mxu0
    %v1073 = vadd.f32 %v932, %v1072
    %v1074 = vpop.f32.mrb[0].mxu0
    %v1075 = vpop.f32.mrb[0].mxu0
    %v1076 = vadd.f32 %v932, %v1075
    %v1077 = vpop.f32.mrb[0].mxu0
    %1078 = vmatprep.mubr.bf16.mxu0 0
    %1079 = vmatmul.mubr.bf16.gmra.mrb[0].mxu0 %v903
    %v1080 = vpop.f32.mrb[0].mxu0
    %v1081 = vadd.f32 %v932, %v1080
    %v1082 = vpop.f32.mrb[0].mxu0
    %v1083 = vpop.f32.mrb[0].mxu0
    %v1084 = vadd.f32 %v932, %v1083
    %v1085 = vpop.f32.mrb[0].mxu0
    %1086 = vmatprep.mubr.bf16.mxu0 0
    %1087 = vmatmul.mubr.bf16.gmra.mrb[0].mxu0 %v904
    %v1088 = vpop.f32.mrb[0].mxu0
    %v1089 = vadd.f32 %v932, %v1088
    %v1090 = vpop.f32.mrb[0].mxu0
    %v1091 = vpop.f32.mrb[0].mxu0
    %v1092 = vadd.f32 %v932, %v1091
    %v1093 = vpop.f32.mrb[0].mxu0
    %1094 = vmatprep.mubr.bf16.mxu0 0
    %1095 = vmatmul.mubr.bf16.gmra.mrb[0].mxu0 %v905
    %v1096 = vpop.f32.mrb[0].mxu0
    %v1097 = vadd.f32 %v932, %v1096
    %v1098 = vpop.f32.mrb[0].mxu0
    %v1099 = vpop.f32.mrb[0].mxu0
    %v1100 = vadd.f32 %v932, %v1099
    %v1101 = vpop.f32.mrb[0].mxu0
    %1102 = vmatprep.mubr.bf16.mxu0 0
    %1103 = vmatmul.mubr.bf16.gmra.mrb[0].mxu0 %v906
    %v1104 = vpop.f32.mrb[0].mxu0
    %v1105 = vadd.f32 %v932, %v1104
    %v1106 = vpop.f32.mrb[0].mxu0
    %v1107 = vpop.f32.mrb[0].mxu0
    %v1108 = vadd.f32 %v932, %v1107
    %v1109 = vpop.f32.mrb[0].mxu0
    %1110 = vmatprep.mubr.bf16.mxu0 0
    %1111 = vmatmul.mubr.bf16.gmra.mrb[0].mxu0 %v907
    %v1112 = vpop.f32.mrb[0].mxu0
    %v1113 = vadd.f32 %v932, %v1112
    %v1114 = vpop.f32.mrb[0].mxu0
    %v1115 = vpop.f32.mrb[0].mxu0
    %v1116 = vadd.f32 %v932, %v1115
    %v1117 = vpop.f32.mrb[0].mxu0
    %1118 = vmatprep.mubr.bf16.mxu0 0
    %1119 = vmatmul.mubr.bf16.gmra.mrb[0].mxu0 %v908
    %v1120 = vpop.f32.mrb[0].mxu0
    %v1121 = vadd.f32 %v932, %v1120
    %v1122 = vpop.f32.mrb[0].mxu0
    %v1123 = vpop.f32.mrb[0].mxu0
    %v1124 = vadd.f32 %v932, %v1123
    %v1125 = vpop.f32.mrb[0].mxu0
    %1126 = vmatprep.mubr.bf16.mxu0 0
    %1127 = vmatmul.mubr.bf16.gmra.mrb[0].mxu0 %v909
    %v1128 = vpop.f32.mrb[0].mxu0
    %v1129 = vadd.f32 %v932, %v1128
    %v1130 = vpop.f32.mrb[0].mxu0
    %v1131 = vpop.f32.mrb[0].mxu0
    %v1132 = vadd.f32 %v932, %v1131
    %v1133 = vpop.f32.mrb[0].mxu0
    %1134 = vmatprep.mubr.bf16.mxu0 0
    %1135 = vmatmul.mubr.bf16.gmra.mrb[0].mxu0 %v910
    %v1136 = vpop.f32.mrb[0].mxu0
    %v1137 = vadd.f32 %v932, %v1136
    %v1138 = vpop.f32.mrb[0].mxu0
    %v1139 = vpop.f32.mrb[0].mxu0
    %v1140 = vadd.f32 %v932, %v1139
    %v1141 = vpop.f32.mrb[0].mxu0
    %1142 = vdwg.mxu0
    %1143 = vmax.xlane.f32.xlu0 %v1017
    %v1144 = vpop.xlane.xlu0 %1143
    %1145 = vmax.xlane.f32.xlu0 %v1020
    %v1146 = vpop.xlane.xlu0 %1145
    %1147 = vmax.xlane.f32.xlu0 %v1025
    %v1148 = vpop.xlane.xlu0 %1147
    %1149 = vmax.xlane.f32.xlu0 %v1028
    %v1150 = vpop.xlane.xlu0 %1149
    %1151 = vmax.xlane.f32.xlu0 %v1033
    %v1152 = vpop.xlane.xlu0 %1151
    %1153 = vmax.xlane.f32.xlu0 %v1036
    %v1154 = vpop.xlane.xlu0 %1153
    %1155 = vmax.xlane.f32.xlu0 %v1041
    %v1156 = vpop.xlane.xlu0 %1155
    %1157 = vmax.xlane.f32.xlu0 %v1044
    %v1158 = vpop.xlane.xlu0 %1157
    %1159 = vmax.xlane.f32.xlu0 %v1049
    %v1160 = vpop.xlane.xlu0 %1159
    %1161 = vmax.xlane.f32.xlu0 %v1052
    %v1162 = vpop.xlane.xlu0 %1161
    %1163 = vmax.xlane.f32.xlu0 %v1057
    %v1164 = vpop.xlane.xlu0 %1163
    %1165 = vmax.xlane.f32.xlu0 %v1060
    %v1166 = vpop.xlane.xlu0 %1165
    %1167 = vmax.xlane.f32.xlu0 %v1065
    %v1168 = vpop.xlane.xlu0 %1167
    %1169 = vmax.xlane.f32.xlu0 %v1068
    %v1170 = vpop.xlane.xlu0 %1169
    %1171 = vmax.xlane.f32.xlu0 %v1073
    %v1172 = vpop.xlane.xlu0 %1171
    %1173 = vmax.xlane.f32.xlu0 %v1076
    %v1174 = vpop.xlane.xlu0 %1173
    %1175 = vmax.xlane.f32.xlu0 %v1081
    %v1176 = vpop.xlane.xlu0 %1175
    %1177 = vmax.xlane.f32.xlu0 %v1084
    %v1178 = vpop.xlane.xlu0 %1177
    %1179 = vmax.xlane.f32.xlu0 %v1089
    %v1180 = vpop.xlane.xlu0 %1179
    %1181 = vmax.xlane.f32.xlu0 %v1092
    %v1182 = vpop.xlane.xlu0 %1181
    %1183 = vmax.xlane.f32.xlu0 %v1097
    %v1184 = vpop.xlane.xlu0 %1183
    %1185 = vmax.xlane.f32.xlu0 %v1100
    %v1186 = vpop.xlane.xlu0 %1185
    %1187 = vmax.xlane.f32.xlu0 %v1105
    %v1188 = vpop.xlane.xlu0 %1187
    %1189 = vmax.xlane.f32.xlu0 %v1108
    %v1190 = vpop.xlane.xlu0 %1189
    %1191 = vmax.xlane.f32.xlu0 %v1113
    %v1192 = vpop.xlane.xlu0 %1191
    %1193 = vmax.xlane.f32.xlu0 %v1116
    %v1194 = vpop.xlane.xlu0 %1193
    %1195 = vmax.xlane.f32.xlu0 %v1121
    %v1196 = vpop.xlane.xlu0 %1195
    %1197 = vmax.xlane.f32.xlu0 %v1124
    %v1198 = vpop.xlane.xlu0 %1197
    %1199 = vmax.xlane.f32.xlu0 %v1129
    %v1200 = vpop.xlane.xlu0 %1199
    %1201 = vmax.xlane.f32.xlu0 %v1132
    %v1202 = vpop.xlane.xlu0 %1201
    %1203 = vmax.xlane.f32.xlu0 %v1137
    %v1204 = vpop.xlane.xlu0 %1203
    %1205 = vmax.xlane.f32.xlu0 %v1140
    %v1206 = vpop.xlane.xlu0 %1205
    %v1207 = vsub.f32 %v1017, %v1144
    %v1208 = vsub.f32 %v1020, %v1146
    %v1209 = vsub.f32 %v1025, %v1148
    %v1210 = vsub.f32 %v1028, %v1150
    %v1211 = vsub.f32 %v1033, %v1152
    %v1212 = vsub.f32 %v1036, %v1154
    %v1213 = vsub.f32 %v1041, %v1156
    %v1214 = vsub.f32 %v1044, %v1158
    %v1215 = vsub.f32 %v1049, %v1160
    %v1216 = vsub.f32 %v1052, %v1162
    %v1217 = vsub.f32 %v1057, %v1164
    %v1218 = vsub.f32 %v1060, %v1166
    %v1219 = vsub.f32 %v1065, %v1168
    %v1220 = vsub.f32 %v1068, %v1170
    %v1221 = vsub.f32 %v1073, %v1172
    %v1222 = vsub.f32 %v1076, %v1174
    %v1223 = vsub.f32 %v1081, %v1176
    %v1224 = vsub.f32 %v1084, %v1178
    %v1225 = vsub.f32 %v1089, %v1180
    %v1226 = vsub.f32 %v1092, %v1182
    %v1227 = vsub.f32 %v1097, %v1184
    %v1228 = vsub.f32 %v1100, %v1186
    %v1229 = vsub.f32 %v1105, %v1188
    %v1230 = vsub.f32 %v1108, %v1190
    %v1231 = vsub.f32 %v1113, %v1192
    %v1232 = vsub.f32 %v1116, %v1194
    %v1233 = vsub.f32 %v1121, %v1196
    %v1234 = vsub.f32 %v1124, %v1198
    %v1235 = vsub.f32 %v1129, %v1200
    %v1236 = vsub.f32 %v1132, %v1202
    %v1237 = vsub.f32 %v1137, %v1204
    %v1238 = vsub.f32 %v1140, %v1206
    %v1239 = vmul.f32 %v1207, 1.442695
    %v1240 = vpow.pop %v1239
    %v1241 = vmul.f32 %v1208, 1.442695
    %v1242 = vpow.pop %v1241
    %v1243 = vmul.f32 %v1209, 1.442695
    %v1244 = vpow.pop %v1243
    %v1245 = vmul.f32 %v1210, 1.442695
    %v1246 = vpow.pop %v1245
    %v1247 = vmul.f32 %v1211, 1.442695
    %v1248 = vpow.pop %v1247
    %v1249 = vmul.f32 %v1212, 1.442695
    %v1250 = vpow.pop %v1249
    %v1251 = vmul.f32 %v1213, 1.442695
    %v1252 = vpow.pop %v1251
    %v1253 = vmul.f32 %v1214, 1.442695
    %v1254 = vpow.pop %v1253
    %v1255 = vmul.f32 %v1215, 1.442695
    %v1256 = vpow.pop %v1255
    %v1257 = vmul.f32 %v1216, 1.442695
    %v1258 = vpow.pop %v1257
    %v1259 = vmul.f32 %v1217, 1.442695
    %v1260 = vpow.pop %v1259
    %v1261 = vmul.f32 %v1218, 1.442695
    %v1262 = vpow.pop %v1261
    %v1263 = vmul.f32 %v1219, 1.442695
    %v1264 = vpow.pop %v1263
    %v1265 = vmul.f32 %v1220, 1.442695
    %v1266 = vpow.pop %v1265
    %v1267 = vmul.f32 %v1221, 1.442695
    %v1268 = vpow.pop %v1267
    %v1269 = vmul.f32 %v1222, 1.442695
    %v1270 = vpow.pop %v1269
    %v1271 = vmul.f32 %v1223, 1.442695
    %v1272 = vpow.pop %v1271
    %v1273 = vmul.f32 %v1224, 1.442695
    %v1274 = vpow.pop %v1273
    %v1275 = vmul.f32 %v1225, 1.442695
    %v1276 = vpow.pop %v1275
    %v1277 = vmul.f32 %v1226, 1.442695
    %v1278 = vpow.pop %v1277
    %v1279 = vmul.f32 %v1227, 1.442695
    %v1280 = vpow.pop %v1279
    %v1281 = vmul.f32 %v1228, 1.442695
    %v1282 = vpow.pop %v1281
    %v1283 = vmul.f32 %v1229, 1.442695
    %v1284 = vpow.pop %v1283
    %v1285 = vmul.f32 %v1230, 1.442695
    %v1286 = vpow.pop %v1285
    %v1287 = vmul.f32 %v1231, 1.442695
    %v1288 = vpow.pop %v1287
    %v1289 = vmul.f32 %v1232, 1.442695
    %v1290 = vpow.pop %v1289
    %v1291 = vmul.f32 %v1233, 1.442695
    %v1292 = vpow.pop %v1291
    %v1293 = vmul.f32 %v1234, 1.442695
    %v1294 = vpow.pop %v1293
    %v1295 = vmul.f32 %v1235, 1.442695
    %v1296 = vpow.pop %v1295
    %v1297 = vmul.f32 %v1236, 1.442695
    %v1298 = vpow.pop %v1297
    %v1299 = vmul.f32 %v1237, 1.442695
    %v1300 = vpow.pop %v1299
    %v1301 = vmul.f32 %v1238, 1.442695
    %v1302 = vpow.pop %v1301
    %1303 = vadd.xlane.f32.xlu0 %v1240
    %v1304 = vpop.xlane.xlu0 %1303
    %1305 = vadd.xlane.f32.xlu0 %v1242
    %v1306 = vpop.xlane.xlu0 %1305
    %1307 = vadd.xlane.f32.xlu0 %v1244
    %v1308 = vpop.xlane.xlu0 %1307
    %1309 = vadd.xlane.f32.xlu0 %v1246
    %v1310 = vpop.xlane.xlu0 %1309
    %1311 = vadd.xlane.f32.xlu0 %v1248
    %v1312 = vpop.xlane.xlu0 %1311
    %1313 = vadd.xlane.f32.xlu0 %v1250
    %v1314 = vpop.xlane.xlu0 %1313
    %1315 = vadd.xlane.f32.xlu0 %v1252
    %v1316 = vpop.xlane.xlu0 %1315
    %1317 = vadd.xlane.f32.xlu0 %v1254
    %v1318 = vpop.xlane.xlu0 %1317
    %1319 = vadd.xlane.f32.xlu0 %v1256
    %v1320 = vpop.xlane.xlu0 %1319
    %1321 = vadd.xlane.f32.xlu0 %v1258
    %v1322 = vpop.xlane.xlu0 %1321
    %1323 = vadd.xlane.f32.xlu0 %v1260
    %v1324 = vpop.xlane.xlu0 %1323
    %1325 = vadd.xlane.f32.xlu0 %v1262
    %v1326 = vpop.xlane.xlu0 %1325
    %1327 = vadd.xlane.f32.xlu0 %v1264
    %v1328 = vpop.xlane.xlu0 %1327
    %1329 = vadd.xlane.f32.xlu0 %v1266
    %v1330 = vpop.xlane.xlu0 %1329
    %1331 = vadd.xlane.f32.xlu0 %v1268
    %v1332 = vpop.xlane.xlu0 %1331
    %1333 = vadd.xlane.f32.xlu0 %v1270
    %v1334 = vpop.xlane.xlu0 %1333
    %1335 = vadd.xlane.f32.xlu0 %v1272
    %v1336 = vpop.xlane.xlu0 %1335
    %1337 = vadd.xlane.f32.xlu0 %v1274
    %v1338 = vpop.xlane.xlu0 %1337
    %1339 = vadd.xlane.f32.xlu0 %v1276
    %v1340 = vpop.xlane.xlu0 %1339
    %1341 = vadd.xlane.f32.xlu0 %v1278
    %v1342 = vpop.xlane.xlu0 %1341
    %1343 = vadd.xlane.f32.xlu0 %v1280
    %v1344 = vpop.xlane.xlu0 %1343
    %1345 = vadd.xlane.f32.xlu0 %v1282
    %v1346 = vpop.xlane.xlu0 %1345
    %1347 = vadd.xlane.f32.xlu0 %v1284
    %v1348 = vpop.xlane.xlu0 %1347
    %1349 = vadd.xlane.f32.xlu0 %v1286
    %v1350 = vpop.xlane.xlu0 %1349
    %1351 = vadd.xlane.f32.xlu0 %v1288
    %v1352 = vpop.xlane.xlu0 %1351
    %1353 = vadd.xlane.f32.xlu0 %v1290
    %v1354 = vpop.xlane.xlu0 %1353
    %1355 = vadd.xlane.f32.xlu0 %v1292
    %v1356 = vpop.xlane.xlu0 %1355
    %1357 = vadd.xlane.f32.xlu0 %v1294
    %v1358 = vpop.xlane.xlu0 %1357
    %1359 = vadd.xlane.f32.xlu0 %v1296
    %v1360 = vpop.xlane.xlu0 %1359
    %1361 = vadd.xlane.f32.xlu0 %v1298
    %v1362 = vpop.xlane.xlu0 %1361
    %1363 = vadd.xlane.f32.xlu0 %v1300
    %v1364 = vpop.xlane.xlu0 %1363
    %1365 = vadd.xlane.f32.xlu0 %v1302
    %v1366 = vpop.xlane.xlu0 %1365
    %v1367 = vrcp.pop %v1304
    %v1368 = vrcp.pop %v1306
    %v1369 = vrcp.pop %v1308
    %v1370 = vrcp.pop %v1310
    %v1371 = vrcp.pop %v1312
    %v1372 = vrcp.pop %v1314
    %v1373 = vrcp.pop %v1316
    %v1374 = vrcp.pop %v1318
    %v1375 = vrcp.pop %v1320
    %v1376 = vrcp.pop %v1322
    %v1377 = vrcp.pop %v1324
    %v1378 = vrcp.pop %v1326
    %v1379 = vrcp.pop %v1328
    %v1380 = vrcp.pop %v1330
    %v1381 = vrcp.pop %v1332
    %v1382 = vrcp.pop %v1334
    %v1383 = vrcp.pop %v1336
    %v1384 = vrcp.pop %v1338
    %v1385 = vrcp.pop %v1340
    %v1386 = vrcp.pop %v1342
    %v1387 = vrcp.pop %v1344
    %v1388 = vrcp.pop %v1346
    %v1389 = vrcp.pop %v1348
    %v1390 = vrcp.pop %v1350
    %v1391 = vrcp.pop %v1352
    %v1392 = vrcp.pop %v1354
    %v1393 = vrcp.pop %v1356
    %v1394 = vrcp.pop %v1358
    %v1395 = vrcp.pop %v1360
    %v1396 = vrcp.pop %v1362
    %v1397 = vrcp.pop %v1364
    %v1398 = vrcp.pop %v1366
    %v1399 = vmul.f32 %v1240, %v1367
    %v1400 = vmul.f32 %v1242, %v1368
    %v1401 = vmul.f32 %v1244, %v1369
    %v1402 = vmul.f32 %v1246, %v1370
    %v1403 = vmul.f32 %v1248, %v1371
    %v1404 = vmul.f32 %v1250, %v1372
    %v1405 = vmul.f32 %v1252, %v1373
    %v1406 = vmul.f32 %v1254, %v1374
    %v1407 = vmul.f32 %v1256, %v1375
    %v1408 = vmul.f32 %v1258, %v1376
    %v1409 = vmul.f32 %v1260, %v1377
    %v1410 = vmul.f32 %v1262, %v1378
    %v1411 = vmul.f32 %v1264, %v1379
    %v1412 = vmul.f32 %v1266, %v1380
    %v1413 = vmul.f32 %v1268, %v1381
    %v1414 = vmul.f32 %v1270, %v1382
    %v1415 = vmul.f32 %v1272, %v1383
    %v1416 = vmul.f32 %v1274, %v1384
    %v1417 = vmul.f32 %v1276, %v1385
    %v1418 = vmul.f32 %v1278, %v1386
    %v1419 = vmul.f32 %v1280, %v1387
    %v1420 = vmul.f32 %v1282, %v1388
    %v1421 = vmul.f32 %v1284, %v1389
    %v1422 = vmul.f32 %v1286, %v1390
    %v1423 = vmul.f32 %v1288, %v1391
    %v1424 = vmul.f32 %v1290, %v1392
    %v1425 = vmul.f32 %v1292, %v1393
    %v1426 = vmul.f32 %v1294, %v1394
    %v1427 = vmul.f32 %v1296, %v1395
    %v1428 = vmul.f32 %v1298, %v1396
    %v1429 = vmul.f32 %v1300, %v1397
    %v1430 = vmul.f32 %v1302, %v1398
    %v1431 = vpack.c.bf16 %v1400, %v1399
    %v1432 = vpack.c.bf16 %v1402, %v1401
    %v1433 = vpack.c.bf16 %v1404, %v1403
    %v1434 = vpack.c.bf16 %v1406, %v1405
    %v1435 = vpack.c.bf16 %v1408, %v1407
    %v1436 = vpack.c.bf16 %v1410, %v1409
    %v1437 = vpack.c.bf16 %v1412, %v1411
    %v1438 = vpack.c.bf16 %v1414, %v1413
    %v1439 = vpack.c.bf16 %v1416, %v1415
    %v1440 = vpack.c.bf16 %v1418, %v1417
    %v1441 = vpack.c.bf16 %v1420, %v1419
    %v1442 = vpack.c.bf16 %v1422, %v1421
    %v1443 = vpack.c.bf16 %v1424, %v1423
    %v1444 = vpack.c.bf16 %v1426, %v1425
    %v1445 = vpack.c.bf16 %v1428, %v1427
    %v1446 = vpack.c.bf16 %v1430, %v1429
    %v1463 = vunpack.c.l.b16 %v1431
    %v1464 = vunpack.c.h.b16 %v1431
    %v1465 = vunpack.c.l.b16 %v1432
    %v1466 = vunpack.c.h.b16 %v1432
    %v1467 = vunpack.c.l.b16 %v1433
    %v1468 = vunpack.c.h.b16 %v1433
    %v1469 = vunpack.c.l.b16 %v1434
    %v1470 = vunpack.c.h.b16 %v1434
    %v1471 = vunpack.c.l.b16 %v1435
    %v1472 = vunpack.c.h.b16 %v1435
    %v1473 = vunpack.c.l.b16 %v1436
    %v1474 = vunpack.c.h.b16 %v1436
    %v1475 = vunpack.c.l.b16 %v1437
    %v1476 = vunpack.c.h.b16 %v1437
    %v1477 = vunpack.c.l.b16 %v1438
    %v1478 = vunpack.c.h.b16 %v1438
    %v1479 = vunpack.c.l.b16 %v1439
    %v1480 = vunpack.c.h.b16 %v1439
    %v1481 = vunpack.c.l.b16 %v1440
    %v1482 = vunpack.c.h.b16 %v1440
    %v1483 = vunpack.c.l.b16 %v1441
    %v1484 = vunpack.c.h.b16 %v1441
    %v1485 = vunpack.c.l.b16 %v1442
    %v1486 = vunpack.c.h.b16 %v1442
    %v1487 = vunpack.c.l.b16 %v1443
    %v1488 = vunpack.c.h.b16 %v1443
    %v1489 = vunpack.c.l.b16 %v1444
    %v1490 = vunpack.c.h.b16 %v1444
    %v1491 = vunpack.c.l.b16 %v1445
    %v1492 = vunpack.c.h.b16 %v1445
    %v1493 = vunpack.c.l.b16 %v1446
    %v1494 = vunpack.c.h.b16 %v1446
    %v1495 = vpack.c.b16 %v1463, %v1463
    %v1496 = vpack.c.b16 %v1464, %v1464
    %v1497 = vpack.c.b16 %v1465, %v1465
    %v1498 = vpack.c.b16 %v1466, %v1466
    %v1499 = vpack.c.b16 %v1467, %v1467
    %v1500 = vpack.c.b16 %v1468, %v1468
    %v1501 = vpack.c.b16 %v1469, %v1469
    %v1502 = vpack.c.b16 %v1470, %v1470
    %v1503 = vpack.c.b16 %v1471, %v1471
    %v1504 = vpack.c.b16 %v1472, %v1472
    %v1505 = vpack.c.b16 %v1473, %v1473
    %v1506 = vpack.c.b16 %v1474, %v1474
    %v1507 = vpack.c.b16 %v1475, %v1475
    %v1508 = vpack.c.b16 %v1476, %v1476
    %v1509 = vpack.c.b16 %v1477, %v1477
    %v1510 = vpack.c.b16 %v1478, %v1478
    %v1511 = vpack.c.b16 %v1479, %v1479
    %v1512 = vpack.c.b16 %v1480, %v1480
    %v1513 = vpack.c.b16 %v1481, %v1481
    %v1514 = vpack.c.b16 %v1482, %v1482
    %v1515 = vpack.c.b16 %v1483, %v1483
    %v1516 = vpack.c.b16 %v1484, %v1484
    %v1517 = vpack.c.b16 %v1485, %v1485
    %v1518 = vpack.c.b16 %v1486, %v1486
    %v1519 = vpack.c.b16 %v1487, %v1487
    %v1520 = vpack.c.b16 %v1488, %v1488
    %v1521 = vpack.c.b16 %v1489, %v1489
    %v1522 = vpack.c.b16 %v1490, %v1490
    %v1523 = vpack.c.b16 %v1491, %v1491
    %v1524 = vpack.c.b16 %v1492, %v1492
    %v1525 = vpack.c.b16 %v1493, %v1493
    %v1526 = vpack.c.b16 %v1494, %v1494
    %1559 = vst [vmem:[#allocation2] sm:$0xf] %v1495
    %1560 = vst [vmem:[#allocation2 + $0x4] sm:$0xf] %v1496
    %1561 = vst [vmem:[#allocation2 + $0x8] sm:$0xf] %v1497
    %1562 = vst [vmem:[#allocation2 + $0xc] sm:$0xf] %v1498
    %1563 = vst [vmem:[#allocation2 + $0x10] sm:$0xf] %v1499
    %1564 = vst [vmem:[#allocation2 + $0x14] sm:$0xf] %v1500
    %1565 = vst [vmem:[#allocation2 + $0x18] sm:$0xf] %v1501
    %1566 = vst [vmem:[#allocation2 + $0x1c] sm:$0xf] %v1502
    %1567 = vst [vmem:[#allocation2 + $0x20] sm:$0xf] %v1503
    %1568 = vst [vmem:[#allocation2 + $0x24] sm:$0xf] %v1504
    %1569 = vst [vmem:[#allocation2 + $0x28] sm:$0xf] %v1505
    %1570 = vst [vmem:[#allocation2 + $0x2c] sm:$0xf] %v1506
    %1571 = vst [vmem:[#allocation2 + $0x30] sm:$0xf] %v1507
    %1572 = vst [vmem:[#allocation2 + $0x34] sm:$0xf] %v1508
    %1573 = vst [vmem:[#allocation2 + $0x38] sm:$0xf] %v1509
    %1574 = vst [vmem:[#allocation2 + $0x3c] sm:$0xf] %v1510
    %1575 = vst [vmem:[#allocation2 + $0x40] sm:$0xf] %v1511
    %1576 = vst [vmem:[#allocation2 + $0x44] sm:$0xf] %v1512
    %1577 = vst [vmem:[#allocation2 + $0x48] sm:$0xf] %v1513
    %1578 = vst [vmem:[#allocation2 + $0x4c] sm:$0xf] %v1514
    %1579 = vst [vmem:[#allocation2 + $0x50] sm:$0xf] %v1515
    %1580 = vst [vmem:[#allocation2 + $0x54] sm:$0xf] %v1516
    %1581 = vst [vmem:[#allocation2 + $0x58] sm:$0xf] %v1517
    %1582 = vst [vmem:[#allocation2 + $0x5c] sm:$0xf] %v1518
    %1583 = vst [vmem:[#allocation2 + $0x60] sm:$0xf] %v1519
    %1584 = vst [vmem:[#allocation2 + $0x64] sm:$0xf] %v1520
    %1585 = vst [vmem:[#allocation2 + $0x68] sm:$0xf] %v1521
    %1586 = vst [vmem:[#allocation2 + $0x6c] sm:$0xf] %v1522
    %1587 = vst [vmem:[#allocation2 + $0x70] sm:$0xf] %v1523
    %1588 = vst [vmem:[#allocation2 + $0x74] sm:$0xf] %v1524
    %1589 = vst [vmem:[#allocation2 + $0x78] sm:$0xf] %v1525
    %1590 = vst [vmem:[#allocation2 + $0x7c] sm:$0xf] %v1526
    // Predicated region
    $region30: #{tpu_custom_call.1} parent=1 // pred_check
      _
    $region31: #{tpu_custom_call.1} parent=1 // pred_check_branch
      %1592 = sbr.rel (0) target = $region33
    $region32: #{tpu_custom_call.1} parent=1 // pred_region
      %s1594 = ssub.s32 2048, 2048
      %1595 = vsyncadd [#allocation3], %s1594
      %s1596 = sshll.u32 [#allocation2], 4
      %s1597 = int_to_ptr.vmem [resolvable:$true] %s1596
      %1602 = dma.vmem_to_hbm [thread:$0]  %s1597, 2048, %s7, [#allocation3], 64, 64, 4
    $region33: #{tpu_custom_call.1} parent=1 // pred_fallthru
      _
    // Predicated region
    $region34: #{tpu_custom_call.1} parent=1 // pred_check
      _
    $region35: #{tpu_custom_call.1} parent=1 // pred_check_branch
      %1604 = sbr.rel (0) target = $region37
    $region36: #{tpu_custom_call.1} parent=1 // pred_region
      %1605 = dma.done [#allocation3], 2048
    $region37: #{tpu_custom_call.1} parent=1 // pred_fallthru
      _
    %1606 = vsyncpa [#allocation3], 1

// kernel: tpu_custom_call.1
$region0: #{tpu_custom_call.1}
  #allocation0 [shape = 'u32[]', space=smem, size = 0x4, offset = 0x4, fixed_abs, tag = 'smem constant byte address 0x4 - core index']
  #allocation1 [shape = 'u32[144,128]{1,0:T(1,128)}', space=vmem, size = 0x12000, scoped, tag = 'internal scratch']
  %s0 = inlined_call_operand.vmem [shape: f32[256,16], index: 0, kind: input, shape index: {}]
  %s1 = inlined_call_operand.vmem [shape: bf16[16,128], index: 1, kind: input, shape index: {}]
  %s2 = inlined_call_operand.vmem [shape: f32[1,128], index: 2, kind: input, shape index: {}]
  %s3 = inlined_call_operand.vmem [shape: bf16[2,128,128], index: 3, kind: input, shape index: {}]
  %s4 = inlined_call_operand.vmem [shape: f32[2,1,128], index: 4, kind: input, shape index: {}]
  %s5 = inlined_call_operand.vmem [shape: bf16[128,128], index: 5, kind: input, shape index: {}]
  %s6 = inlined_call_operand.vmem [shape: f32[1,128], index: 6, kind: input, shape index: {}]
  %s7 = inlined_call_operand.hbm [shape: bf16[256,128], index: 7, kind: output, shape index: {}]
  %s8 = sld [smem:[#allocation0]]
  $region38: #{tpu_custom_call.1} parent=0
    _
  %s10 = ssub.s32 1, %s8
  %s11 = scalar_select 0, %s10, %s8
  $region1: #{tpu_custom_call.1} parent=0
    #allocation2 [shape = 'u8[65536]{0}', space=vmem, size = 0x10000, scoped, tag = 'output window, operand 0, single buffered']
    #allocation3 [shape = 's32[1]{0}', space=sflag, size = 0x4, scoped, tag = 'scoped memory for tpu_custom_call.1']
    %12 = vsyncpa [#allocation3], 0
    // Predicated region
    $region2: #{tpu_custom_call.1} parent=1 // pred_check
      _
    $region3: #{tpu_custom_call.1} parent=1 // pred_check_branch
      %14 = sbr.rel (0) target = $region5
    $region4: #{tpu_custom_call.1} parent=1 // pred_region
      _
    $region5: #{tpu_custom_call.1} parent=1 // pred_fallthru
      _
    // Predicated region
    $region6: #{tpu_custom_call.1} parent=1 // pred_check
      _
    $region7: #{tpu_custom_call.1} parent=1 // pred_check_branch
      %16 = sbr.rel (0) target = $region9
    $region8: #{tpu_custom_call.1} parent=1 // pred_region
      _
    $region9: #{tpu_custom_call.1} parent=1 // pred_fallthru
      _
    // Predicated region
    $region10: #{tpu_custom_call.1} parent=1 // pred_check
      _
    $region11: #{tpu_custom_call.1} parent=1 // pred_check_branch
      %18 = sbr.rel (0) target = $region13
    $region12: #{tpu_custom_call.1} parent=1 // pred_region
      _
    $region13: #{tpu_custom_call.1} parent=1 // pred_fallthru
      _
    // Predicated region
    $region14: #{tpu_custom_call.1} parent=1 // pred_check
      _
    $region15: #{tpu_custom_call.1} parent=1 // pred_check_branch
      %20 = sbr.rel (0) target = $region17
    $region16: #{tpu_custom_call.1} parent=1 // pred_region
      _
    $region17: #{tpu_custom_call.1} parent=1 // pred_fallthru
      _
    // Predicated region
    $region18: #{tpu_custom_call.1} parent=1 // pred_check
      _
    $region19: #{tpu_custom_call.1} parent=1 // pred_check_branch
      %22 = sbr.rel (0) target = $region21
    $region20: #{tpu_custom_call.1} parent=1 // pred_region
      _
    $region21: #{tpu_custom_call.1} parent=1 // pred_fallthru
      _
    // Predicated region
    $region22: #{tpu_custom_call.1} parent=1 // pred_check
      _
    $region23: #{tpu_custom_call.1} parent=1 // pred_check_branch
      %24 = sbr.rel (0) target = $region25
    $region24: #{tpu_custom_call.1} parent=1 // pred_region
      _
    $region25: #{tpu_custom_call.1} parent=1 // pred_fallthru
      _
    // Predicated region
    $region26: #{tpu_custom_call.1} parent=1 // pred_check
      _
    $region27: #{tpu_custom_call.1} parent=1 // pred_check_branch
      %26 = sbr.rel (0) target = $region29
    $region28: #{tpu_custom_call.1} parent=1 // pred_region
      _
    $region29: #{tpu_custom_call.1} parent=1 // pred_fallthru
      _
    %v28 = vld [vmem:[%s0] sm:$0xff]
    %v29 = vld [vmem:[%s0 + $0x8] sm:$0xff]
    %v30 = vld [vmem:[%s0 + $0x10] sm:$0xff]
    %v31 = vld [vmem:[%s0 + $0x18] sm:$0xff]
    %v32 = vld [vmem:[%s0 + $0x20] sm:$0xff]
    %v33 = vld [vmem:[%s0 + $0x28] sm:$0xff]
    %v34 = vld [vmem:[%s0 + $0x30] sm:$0xff]
    %v35 = vld [vmem:[%s0 + $0x38] sm:$0xff]
    %v36 = vld [vmem:[%s0 + $0x40] sm:$0xff]
    %v37 = vld [vmem:[%s0 + $0x48] sm:$0xff]
    %v38 = vld [vmem:[%s0 + $0x50] sm:$0xff]
    %v39 = vld [vmem:[%s0 + $0x58] sm:$0xff]
    %v40 = vld [vmem:[%s0 + $0x60] sm:$0xff]
    %v41 = vld [vmem:[%s0 + $0x68] sm:$0xff]
    %v42 = vld [vmem:[%s0 + $0x70] sm:$0xff]
    %v43 = vld [vmem:[%s0 + $0x78] sm:$0xff]
    %v44 = vld [vmem:[%s0 + $0x80] sm:$0xff]
    %v45 = vld [vmem:[%s0 + $0x88] sm:$0xff]
    %v46 = vld [vmem:[%s0 + $0x90] sm:$0xff]
    %v47 = vld [vmem:[%s0 + $0x98] sm:$0xff]
    %v48 = vld [vmem:[%s0 + $0xa0] sm:$0xff]
    %v49 = vld [vmem:[%s0 + $0xa8] sm:$0xff]
    %v50 = vld [vmem:[%s0 + $0xb0] sm:$0xff]
    %v51 = vld [vmem:[%s0 + $0xb8] sm:$0xff]
    %v52 = vld [vmem:[%s0 + $0xc0] sm:$0xff]
    %v53 = vld [vmem:[%s0 + $0xc8] sm:$0xff]
    %v54 = vld [vmem:[%s0 + $0xd0] sm:$0xff]
    %v55 = vld [vmem:[%s0 + $0xd8] sm:$0xff]
    %v56 = vld [vmem:[%s0 + $0xe0] sm:$0xff]
    %v57 = vld [vmem:[%s0 + $0xe8] sm:$0xff]
    %v58 = vld [vmem:[%s0 + $0xf0] sm:$0xff]
    %v59 = vld [vmem:[%s0 + $0xf8] sm:$0xff]
    %v60 = vpack.c.bf16 %v29, %v28
    %v61 = vpack.c.bf16 %v31, %v30
    %v62 = vpack.c.bf16 %v33, %v32
    %v63 = vpack.c.bf16 %v35, %v34
    %v64 = vpack.c.bf16 %v37, %v36
    %v65 = vpack.c.bf16 %v39, %v38
    %v66 = vpack.c.bf16 %v41, %v40
    %v67 = vpack.c.bf16 %v43, %v42
    %v68 = vpack.c.bf16 %v45, %v44
    %v69 = vpack.c.bf16 %v47, %v46
    %v70 = vpack.c.bf16 %v49, %v48
    %v71 = vpack.c.bf16 %v51, %v50
    %v72 = vpack.c.bf16 %v53, %v52
    %v73 = vpack.c.bf16 %v55, %v54
    %v74 = vpack.c.bf16 %v57, %v56
    %v75 = vpack.c.bf16 %v59, %v58
    %v76 = vld [vmem:[%s1] sm:$0xf]
    %v77 = vld [vmem:[%s1 + $0x4] sm:$0xf]
    %v78 = vld [vmem:[%s2] sm:$0x1]
    %v80 = vlaneseq
    %v81 = vshrl.u32 %v80, 7
    %v82 = vsub.s32 0, %v81
    %v83 = vrot.slane %v78, %v82
    %v87 = vunpack.c.l.b16 %v76
    %v88 = vunpack.c.l.b16 %v77
    %v89 = vpack.c.b16 %v88, %v87
    %vm91 = vcmask 130048
    %v93 = vsel %vm91, %v60, 0
    %v96 = vsel %vm91, %v61, 0
    %v99 = vsel %vm91, %v62, 0
    %v102 = vsel %vm91, %v63, 0
    %v105 = vsel %vm91, %v64, 0
    %v108 = vsel %vm91, %v65, 0
    %v111 = vsel %vm91, %v66, 0
    %v114 = vsel %vm91, %v67, 0
    %v117 = vsel %vm91, %v68, 0
    %v120 = vsel %vm91, %v69, 0
    %v123 = vsel %vm91, %v70, 0
    %v126 = vsel %vm91, %v71, 0
    %v129 = vsel %vm91, %v72, 0
    %v132 = vsel %vm91, %v73, 0
    %v135 = vsel %vm91, %v74, 0
    %v138 = vsel %vm91, %v75, 0
    %140 = vmatprep.subr.bf16.mxu0 0
    %141 = vmatpush1.bf16.msra.mxu0 %v89
    %142 = vmatprep.subr.bf16.mxu0 0
    %143 = vmatpush1.bf16.msra.mxu0 0
    %144 = vmatprep.subr.bf16.mxu0 0
    %145 = vmatpush1.bf16.msra.mxu0 0
    %146 = vmatprep.subr.bf16.mxu0 0
    %147 = vmatpush1.bf16.msra.mxu0 0
    %148 = vmatprep.subr.bf16.mxu0 0
    %149 = vmatpush1.bf16.msra.mxu0 0
    %150 = vmatprep.subr.bf16.mxu0 0
    %151 = vmatpush1.bf16.msra.mxu0 0
    %152 = vmatprep.subr.bf16.mxu0 0
    %153 = vmatpush1.bf16.msra.mxu0 0
    %154 = vmatprep.subr.bf16.mxu0 0
    %155 = vmatpush1.bf16.msra.mxu0 0
    %156 = vmatprep.subr.bf16.mxu0 0
    %157 = vmatpush1.bf16.msra.mxu0 0
    %158 = vmatprep.subr.bf16.mxu0 0
    %159 = vmatpush1.bf16.msra.mxu0 0
    %160 = vmatprep.subr.bf16.mxu0 0
    %161 = vmatpush1.bf16.msra.mxu0 0
    %162 = vmatprep.subr.bf16.mxu0 0
    %163 = vmatpush1.bf16.msra.mxu0 0
    %164 = vmatprep.subr.bf16.mxu0 0
    %165 = vmatpush1.bf16.msra.mxu0 0
    %166 = vmatprep.subr.bf16.mxu0 0
    %167 = vmatpush1.bf16.msra.mxu0 0
    %168 = vmatprep.subr.bf16.mxu0 0
    %169 = vmatpush1.bf16.msra.mxu0 0
    %170 = vmatprep.subr.bf16.mxu0 0
    %171 = vmatpush1.bf16.msra.mxu0 0
    %172 = vmatprep.mubr.bf16.mxu0 0
    %173 = vmatmul.mubr.bf16.gmra.mrb[0].mxu0 %v93
    %v174 = vpop.f32.mrb[0].mxu0
    %v175 = vadd.f32 %v83, %v174
    %v176 = vpop.f32.mrb[0].mxu0
    %v177 = vpop.f32.mrb[0].mxu0
    %v178 = vadd.f32 %v83, %v177
    %v179 = vpop.f32.mrb[0].mxu0
    %180 = vmatprep.mubr.bf16.mxu0 0
    %181 = vmatmul.mubr.bf16.gmra.mrb[0].mxu0 %v96
    %v182 = vpop.f32.mrb[0].mxu0
    %v183 = vadd.f32 %v83, %v182
    %v184 = vpop.f32.mrb[0].mxu0
    %v185 = vpop.f32.mrb[0].mxu0
    %v186 = vadd.f32 %v83, %v185
    %v187 = vpop.f32.mrb[0].mxu0
    %188 = vmatprep.mubr.bf16.mxu0 0
    %189 = vmatmul.mubr.bf16.gmra.mrb[0].mxu0 %v99
    %v190 = vpop.f32.mrb[0].mxu0
    %v191 = vadd.f32 %v83, %v190
    %v192 = vpop.f32.mrb[0].mxu0
    %v193 = vpop.f32.mrb[0].mxu0
    %v194 = vadd.f32 %v83, %v193
    %v195 = vpop.f32.mrb[0].mxu0
    %196 = vmatprep.mubr.bf16.mxu0 0
    %197 = vmatmul.mubr.bf16.gmra.mrb[0].mxu0 %v102
    %v198 = vpop.f32.mrb[0].mxu0
    %v199 = vadd.f32 %v83, %v198
    %v200 = vpop.f32.mrb[0].mxu0
    %v201 = vpop.f32.mrb[0].mxu0
    %v202 = vadd.f32 %v83, %v201
    %v203 = vpop.f32.mrb[0].mxu0
    %204 = vmatprep.mubr.bf16.mxu0 0
    %205 = vmatmul.mubr.bf16.gmra.mrb[0].mxu0 %v105
    %v206 = vpop.f32.mrb[0].mxu0
    %v207 = vadd.f32 %v83, %v206
    %v208 = vpop.f32.mrb[0].mxu0
    %v209 = vpop.f32.mrb[0].mxu0
    %v210 = vadd.f32 %v83, %v209
    %v211 = vpop.f32.mrb[0].mxu0
    %212 = vmatprep.mubr.bf16.mxu0 0
    %213 = vmatmul.mubr.bf16.gmra.mrb[0].mxu0 %v108
    %v214 = vpop.f32.mrb[0].mxu0
    %v215 = vadd.f32 %v83, %v214
    %v216 = vpop.f32.mrb[0].mxu0
    %v217 = vpop.f32.mrb[0].mxu0
    %v218 = vadd.f32 %v83, %v217
    %v219 = vpop.f32.mrb[0].mxu0
    %220 = vmatprep.mubr.bf16.mxu0 0
    %221 = vmatmul.mubr.bf16.gmra.mrb[0].mxu0 %v111
    %v222 = vpop.f32.mrb[0].mxu0
    %v223 = vadd.f32 %v83, %v222
    %v224 = vpop.f32.mrb[0].mxu0
    %v225 = vpop.f32.mrb[0].mxu0
    %v226 = vadd.f32 %v83, %v225
    %v227 = vpop.f32.mrb[0].mxu0
    %228 = vmatprep.mubr.bf16.mxu0 0
    %229 = vmatmul.mubr.bf16.gmra.mrb[0].mxu0 %v114
    %v230 = vpop.f32.mrb[0].mxu0
    %v231 = vadd.f32 %v83, %v230
    %v232 = vpop.f32.mrb[0].mxu0
    %v233 = vpop.f32.mrb[0].mxu0
    %v234 = vadd.f32 %v83, %v233
    %v235 = vpop.f32.mrb[0].mxu0
    %236 = vmatprep.mubr.bf16.mxu0 0
    %237 = vmatmul.mubr.bf16.gmra.mrb[0].mxu0 %v117
    %v238 = vpop.f32.mrb[0].mxu0
    %v239 = vadd.f32 %v83, %v238
    %v240 = vpop.f32.mrb[0].mxu0
    %v241 = vpop.f32.mrb[0].mxu0
    %v242 = vadd.f32 %v83, %v241
    %v243 = vpop.f32.mrb[0].mxu0
    %244 = vmatprep.mubr.bf16.mxu0 0
    %245 = vmatmul.mubr.bf16.gmra.mrb[0].mxu0 %v120
    %v246 = vpop.f32.mrb[0].mxu0
    %v247 = vadd.f32 %v83, %v246
    %v248 = vpop.f32.mrb[0].mxu0
    %v249 = vpop.f32.mrb[0].mxu0
    %v250 = vadd.f32 %v83, %v249
    %v251 = vpop.f32.mrb[0].mxu0
    %252 = vmatprep.mubr.bf16.mxu0 0
    %253 = vmatmul.mubr.bf16.gmra.mrb[0].mxu0 %v123
    %v254 = vpop.f32.mrb[0].mxu0
    %v255 = vadd.f32 %v83, %v254
    %v256 = vpop.f32.mrb[0].mxu0
    %v257 = vpop.f32.mrb[0].mxu0
    %v258 = vadd.f32 %v83, %v257
    %v259 = vpop.f32.mrb[0].mxu0
    %260 = vmatprep.mubr.bf16.mxu0 0
    %261 = vmatmul.mubr.bf16.gmra.mrb[0].mxu0 %v126
    %v262 = vpop.f32.mrb[0].mxu0
    %v263 = vadd.f32 %v83, %v262
    %v264 = vpop.f32.mrb[0].mxu0
    %v265 = vpop.f32.mrb[0].mxu0
    %v266 = vadd.f32 %v83, %v265
    %v267 = vpop.f32.mrb[0].mxu0
    %268 = vmatprep.mubr.bf16.mxu0 0
    %269 = vmatmul.mubr.bf16.gmra.mrb[0].mxu0 %v129
    %v270 = vpop.f32.mrb[0].mxu0
    %v271 = vadd.f32 %v83, %v270
    %v272 = vpop.f32.mrb[0].mxu0
    %v273 = vpop.f32.mrb[0].mxu0
    %v274 = vadd.f32 %v83, %v273
    %v275 = vpop.f32.mrb[0].mxu0
    %276 = vmatprep.mubr.bf16.mxu0 0
    %277 = vmatmul.mubr.bf16.gmra.mrb[0].mxu0 %v132
    %v278 = vpop.f32.mrb[0].mxu0
    %v279 = vadd.f32 %v83, %v278
    %v280 = vpop.f32.mrb[0].mxu0
    %v281 = vpop.f32.mrb[0].mxu0
    %v282 = vadd.f32 %v83, %v281
    %v283 = vpop.f32.mrb[0].mxu0
    %284 = vmatprep.mubr.bf16.mxu0 0
    %285 = vmatmul.mubr.bf16.gmra.mrb[0].mxu0 %v135
    %v286 = vpop.f32.mrb[0].mxu0
    %v287 = vadd.f32 %v83, %v286
    %v288 = vpop.f32.mrb[0].mxu0
    %v289 = vpop.f32.mrb[0].mxu0
    %v290 = vadd.f32 %v83, %v289
    %v291 = vpop.f32.mrb[0].mxu0
    %292 = vmatprep.mubr.bf16.mxu0 0
    %293 = vmatmul.mubr.bf16.gmra.mrb[0].mxu0 %v138
    %v294 = vpop.f32.mrb[0].mxu0
    %v295 = vadd.f32 %v83, %v294
    %v296 = vpop.f32.mrb[0].mxu0
    %v297 = vpop.f32.mrb[0].mxu0
    %v298 = vadd.f32 %v83, %v297
    %v299 = vpop.f32.mrb[0].mxu0
    %300 = vdwg.mxu0
    %v301 = vmax.f32 %v175, 0.0
    %v302 = vmax.f32 %v178, 0.0
    %v303 = vmax.f32 %v183, 0.0
    %v304 = vmax.f32 %v186, 0.0
    %v305 = vmax.f32 %v191, 0.0
    %v306 = vmax.f32 %v194, 0.0
    %v307 = vmax.f32 %v199, 0.0
    %v308 = vmax.f32 %v202, 0.0
    %v309 = vmax.f32 %v207, 0.0
    %v310 = vmax.f32 %v210, 0.0
    %v311 = vmax.f32 %v215, 0.0
    %v312 = vmax.f32 %v218, 0.0
    %v313 = vmax.f32 %v223, 0.0
    %v314 = vmax.f32 %v226, 0.0
    %v315 = vmax.f32 %v231, 0.0
    %v316 = vmax.f32 %v234, 0.0
    %v317 = vmax.f32 %v239, 0.0
    %v318 = vmax.f32 %v242, 0.0
    %v319 = vmax.f32 %v247, 0.0
    %v320 = vmax.f32 %v250, 0.0
    %v321 = vmax.f32 %v255, 0.0
    %v322 = vmax.f32 %v258, 0.0
    %v323 = vmax.f32 %v263, 0.0
    %v324 = vmax.f32 %v266, 0.0
    %v325 = vmax.f32 %v271, 0.0
    %v326 = vmax.f32 %v274, 0.0
    %v327 = vmax.f32 %v279, 0.0
    %v328 = vmax.f32 %v282, 0.0
    %v329 = vmax.f32 %v287, 0.0
    %v330 = vmax.f32 %v290, 0.0
    %v331 = vmax.f32 %v295, 0.0
    %v332 = vmax.f32 %v298, 0.0
    %v333 = vpack.c.bf16 %v302, %v301
    %v334 = vpack.c.bf16 %v304, %v303
    %v335 = vpack.c.bf16 %v306, %v305
    %v336 = vpack.c.bf16 %v308, %v307
    %v337 = vpack.c.bf16 %v310, %v309
    %v338 = vpack.c.bf16 %v312, %v311
    %v339 = vpack.c.bf16 %v314, %v313
    %v340 = vpack.c.bf16 %v316, %v315
    %v341 = vpack.c.bf16 %v318, %v317
    %v342 = vpack.c.bf16 %v320, %v319
    %v343 = vpack.c.bf16 %v322, %v321
    %v344 = vpack.c.bf16 %v324, %v323
    %v345 = vpack.c.bf16 %v326, %v325
    %v346 = vpack.c.bf16 %v328, %v327
    %v347 = vpack.c.bf16 %v330, %v329
    %v348 = vpack.c.bf16 %v332, %v331
    %v349 = vld [vmem:[%s3] sm:$0xf]
    %v350 = vld [vmem:[%s3 + $0x4] sm:$0xf]
    %v351 = vld [vmem:[%s3 + $0x8] sm:$0xf]
    %v352 = vld [vmem:[%s3 + $0xc] sm:$0xf]
    %v353 = vld [vmem:[%s3 + $0x10] sm:$0xf]
    %v354 = vld [vmem:[%s3 + $0x14] sm:$0xf]
    %v355 = vld [vmem:[%s3 + $0x18] sm:$0xf]
    %v356 = vld [vmem:[%s3 + $0x1c] sm:$0xf]
    %v357 = vld [vmem:[%s3 + $0x20] sm:$0xf]
    %v358 = vld [vmem:[%s3 + $0x24] sm:$0xf]
    %v359 = vld [vmem:[%s3 + $0x28] sm:$0xf]
    %v360 = vld [vmem:[%s3 + $0x2c] sm:$0xf]
    %v361 = vld [vmem:[%s3 + $0x30] sm:$0xf]
    %v362 = vld [vmem:[%s3 + $0x34] sm:$0xf]
    %v363 = vld [vmem:[%s3 + $0x38] sm:$0xf]
    %v364 = vld [vmem:[%s3 + $0x3c] sm:$0xf]
    %v365 = vld [vmem:[%s4] sm:$0x1]
    %v367 = vlaneseq
    %v368 = vshrl.u32 %v367, 7
    %v369 = vsub.s32 0, %v368
    %v370 = vrot.slane %v365, %v369
    %v388 = vunpack.c.l.b16 %v349
    %v389 = vunpack.c.l.b16 %v350
    %v390 = vunpack.c.l.b16 %v351
    %v391 = vunpack.c.l.b16 %v352
    %v392 = vunpack.c.l.b16 %v353
    %v393 = vunpack.c.l.b16 %v354
    %v394 = vunpack.c.l.b16 %v355
    %v395 = vunpack.c.l.b16 %v356
    %v396 = vunpack.c.l.b16 %v357
    %v397 = vunpack.c.l.b16 %v358
    %v398 = vunpack.c.l.b16 %v359
    %v399 = vunpack.c.l.b16 %v360
    %v400 = vunpack.c.l.b16 %v361
    %v401 = vunpack.c.l.b16 %v362
    %v402 = vunpack.c.l.b16 %v363
    %v403 = vunpack.c.l.b16 %v364
    %v404 = vpack.c.b16 %v389, %v388
    %v405 = vpack.c.b16 %v391, %v390
    %v406 = vpack.c.b16 %v393, %v392
    %v407 = vpack.c.b16 %v395, %v394
    %v408 = vpack.c.b16 %v397, %v396
    %v409 = vpack.c.b16 %v399, %v398
    %v410 = vpack.c.b16 %v401, %v400
    %v411 = vpack.c.b16 %v403, %v402
    %420 = vmatprep.subr.bf16.mxu0 0
    %421 = vmatpush1.bf16.msra.mxu0 %v404
    %422 = vmatprep.subr.bf16.mxu0 0
    %423 = vmatpush1.bf16.msra.mxu0 %v405
    %424 = vmatprep.subr.bf16.mxu0 0
    %425 = vmatpush1.bf16.msra.mxu0 %v406
    %426 = vmatprep.subr.bf16.mxu0 0
    %427 = vmatpush1.bf16.msra.mxu0 %v407
    %428 = vmatprep.subr.bf16.mxu0 0
    %429 = vmatpush1.bf16.msra.mxu0 %v408
    %430 = vmatprep.subr.bf16.mxu0 0
    %431 = vmatpush1.bf16.msra.mxu0 %v409
    %432 = vmatprep.subr.bf16.mxu0 0
    %433 = vmatpush1.bf16.msra.mxu0 %v410
    %434 = vmatprep.subr.bf16.mxu0 0
    %435 = vmatpush1.bf16.msra.mxu0 %v411
    %436 = vmatprep.subr.bf16.mxu0 0
    %437 = vmatpush1.bf16.msra.mxu0 0
    %438 = vmatprep.subr.bf16.mxu0 0
    %439 = vmatpush1.bf16.msra.mxu0 0
    %440 = vmatprep.subr.bf16.mxu0 0
    %441 = vmatpush1.bf16.msra.mxu0 0
    %442 = vmatprep.subr.bf16.mxu0 0
    %443 = vmatpush1.bf16.msra.mxu0 0
    %444 = vmatprep.subr.bf16.mxu0 0
    %445 = vmatpush1.bf16.msra.mxu0 0
    %446 = vmatprep.subr.bf16.mxu0 0
    %447 = vmatpush1.bf16.msra.mxu0 0
    %448 = vmatprep.subr.bf16.mxu0 0
    %449 = vmatpush1.bf16.msra.mxu0 0
    %450 = vmatprep.subr.bf16.mxu0 0
    %451 = vmatpush1.bf16.msra.mxu0 0
    %452 = vmatprep.mubr.bf16.mxu0 0
    %453 = vmatmul.mubr.bf16.gmra.mrb[0].mxu0 %v333
    %v454 = vpop.f32.mrb[0].mxu0
    %v455 = vadd.f32 %v370, %v454
    %v456 = vpop.f32.mrb[0].mxu0
    %v457 = vpop.f32.mrb[0].mxu0
    %v458 = vadd.f32 %v370, %v457
    %v459 = vpop.f32.mrb[0].mxu0
    %460 = vmatprep.mubr.bf16.mxu0 0
    %461 = vmatmul.mubr.bf16.gmra.mrb[0].mxu0 %v334
    %v462 = vpop.f32.mrb[0].mxu0
    %v463 = vadd.f32 %v370, %v462
    %v464 = vpop.f32.mrb[0].mxu0
    %v465 = vpop.f32.mrb[0].mxu0
    %v466 = vadd.f32 %v370, %v465
    %v467 = vpop.f32.mrb[0].mxu0
    %468 = vmatprep.mubr.bf16.mxu0 0
    %469 = vmatmul.mubr.bf16.gmra.mrb[0].mxu0 %v335
    %v470 = vpop.f32.mrb[0].mxu0
    %v471 = vadd.f32 %v370, %v470
    %v472 = vpop.f32.mrb[0].mxu0
    %v473 = vpop.f32.mrb[0].mxu0
    %v474 = vadd.f32 %v370, %v473
    %v475 = vpop.f32.mrb[0].mxu0
    %476 = vmatprep.mubr.bf16.mxu0 0
    %477 = vmatmul.mubr.bf16.gmra.mrb[0].mxu0 %v336
    %v478 = vpop.f32.mrb[0].mxu0
    %v479 = vadd.f32 %v370, %v478
    %v480 = vpop.f32.mrb[0].mxu0
    %v481 = vpop.f32.mrb[0].mxu0
    %v482 = vadd.f32 %v370, %v481
    %v483 = vpop.f32.mrb[0].mxu0
    %484 = vmatprep.mubr.bf16.mxu0 0
    %485 = vmatmul.mubr.bf16.gmra.mrb[0].mxu0 %v337
    %v486 = vpop.f32.mrb[0].mxu0
    %v487 = vadd.f32 %v370, %v486
    %v488 = vpop.f32.mrb[0].mxu0
    %v489 = vpop.f32.mrb[0].mxu0
    %v490 = vadd.f32 %v370, %v489
    %v491 = vpop.f32.mrb[0].mxu0
    %492 = vmatprep.mubr.bf16.mxu0 0
    %493 = vmatmul.mubr.bf16.gmra.mrb[0].mxu0 %v338
    %v494 = vpop.f32.mrb[0].mxu0
    %v495 = vadd.f32 %v370, %v494
    %v496 = vpop.f32.mrb[0].mxu0
    %v497 = vpop.f32.mrb[0].mxu0
    %v498 = vadd.f32 %v370, %v497
    %v499 = vpop.f32.mrb[0].mxu0
    %500 = vmatprep.mubr.bf16.mxu0 0
    %501 = vmatmul.mubr.bf16.gmra.mrb[0].mxu0 %v339
    %v502 = vpop.f32.mrb[0].mxu0
    %v503 = vadd.f32 %v370, %v502
    %v504 = vpop.f32.mrb[0].mxu0
    %v505 = vpop.f32.mrb[0].mxu0
    %v506 = vadd.f32 %v370, %v505
    %v507 = vpop.f32.mrb[0].mxu0
    %508 = vmatprep.mubr.bf16.mxu0 0
    %509 = vmatmul.mubr.bf16.gmra.mrb[0].mxu0 %v340
    %v510 = vpop.f32.mrb[0].mxu0
    %v511 = vadd.f32 %v370, %v510
    %v512 = vpop.f32.mrb[0].mxu0
    %v513 = vpop.f32.mrb[0].mxu0
    %v514 = vadd.f32 %v370, %v513
    %v515 = vpop.f32.mrb[0].mxu0
    %516 = vmatprep.mubr.bf16.mxu0 0
    %517 = vmatmul.mubr.bf16.gmra.mrb[0].mxu0 %v341
    %v518 = vpop.f32.mrb[0].mxu0
    %v519 = vadd.f32 %v370, %v518
    %v520 = vpop.f32.mrb[0].mxu0
    %v521 = vpop.f32.mrb[0].mxu0
    %v522 = vadd.f32 %v370, %v521
    %v523 = vpop.f32.mrb[0].mxu0
    %524 = vmatprep.mubr.bf16.mxu0 0
    %525 = vmatmul.mubr.bf16.gmra.mrb[0].mxu0 %v342
    %v526 = vpop.f32.mrb[0].mxu0
    %v527 = vadd.f32 %v370, %v526
    %v528 = vpop.f32.mrb[0].mxu0
    %v529 = vpop.f32.mrb[0].mxu0
    %v530 = vadd.f32 %v370, %v529
    %v531 = vpop.f32.mrb[0].mxu0
    %532 = vmatprep.mubr.bf16.mxu0 0
    %533 = vmatmul.mubr.bf16.gmra.mrb[0].mxu0 %v343
    %v534 = vpop.f32.mrb[0].mxu0
    %v535 = vadd.f32 %v370, %v534
    %v536 = vpop.f32.mrb[0].mxu0
    %v537 = vpop.f32.mrb[0].mxu0
    %v538 = vadd.f32 %v370, %v537
    %v539 = vpop.f32.mrb[0].mxu0
    %540 = vmatprep.mubr.bf16.mxu0 0
    %541 = vmatmul.mubr.bf16.gmra.mrb[0].mxu0 %v344
    %v542 = vpop.f32.mrb[0].mxu0
    %v543 = vadd.f32 %v370, %v542
    %v544 = vpop.f32.mrb[0].mxu0
    %v545 = vpop.f32.mrb[0].mxu0
    %v546 = vadd.f32 %v370, %v545
    %v547 = vpop.f32.mrb[0].mxu0
    %548 = vmatprep.mubr.bf16.mxu0 0
    %549 = vmatmul.mubr.bf16.gmra.mrb[0].mxu0 %v345
    %v550 = vpop.f32.mrb[0].mxu0
    %v551 = vadd.f32 %v370, %v550
    %v552 = vpop.f32.mrb[0].mxu0
    %v553 = vpop.f32.mrb[0].mxu0
    %v554 = vadd.f32 %v370, %v553
    %v555 = vpop.f32.mrb[0].mxu0
    %556 = vmatprep.mubr.bf16.mxu0 0
    %557 = vmatmul.mubr.bf16.gmra.mrb[0].mxu0 %v346
    %v558 = vpop.f32.mrb[0].mxu0
    %v559 = vadd.f32 %v370, %v558
    %v560 = vpop.f32.mrb[0].mxu0
    %v561 = vpop.f32.mrb[0].mxu0
    %v562 = vadd.f32 %v370, %v561
    %v563 = vpop.f32.mrb[0].mxu0
    %564 = vmatprep.mubr.bf16.mxu0 0
    %565 = vmatmul.mubr.bf16.gmra.mrb[0].mxu0 %v347
    %v566 = vpop.f32.mrb[0].mxu0
    %v567 = vadd.f32 %v370, %v566
    %v568 = vpop.f32.mrb[0].mxu0
    %v569 = vpop.f32.mrb[0].mxu0
    %v570 = vadd.f32 %v370, %v569
    %v571 = vpop.f32.mrb[0].mxu0
    %572 = vmatprep.mubr.bf16.mxu0 0
    %573 = vmatmul.mubr.bf16.gmra.mrb[0].mxu0 %v348
    %v574 = vpop.f32.mrb[0].mxu0
    %v575 = vadd.f32 %v370, %v574
    %v576 = vpop.f32.mrb[0].mxu0
    %v577 = vpop.f32.mrb[0].mxu0
    %v578 = vadd.f32 %v370, %v577
    %v579 = vpop.f32.mrb[0].mxu0
    %580 = vdwg.mxu0
    %v581 = vmax.f32 %v455, 0.0
    %v582 = vmax.f32 %v458, 0.0
    %v583 = vmax.f32 %v463, 0.0
    %v584 = vmax.f32 %v466, 0.0
    %v585 = vmax.f32 %v471, 0.0
    %v586 = vmax.f32 %v474, 0.0
    %v587 = vmax.f32 %v479, 0.0
    %v588 = vmax.f32 %v482, 0.0
    %v589 = vmax.f32 %v487, 0.0
    %v590 = vmax.f32 %v490, 0.0
    %v591 = vmax.f32 %v495, 0.0
    %v592 = vmax.f32 %v498, 0.0
    %v593 = vmax.f32 %v503, 0.0
    %v594 = vmax.f32 %v506, 0.0
    %v595 = vmax.f32 %v511, 0.0
    %v596 = vmax.f32 %v514, 0.0
    %v597 = vmax.f32 %v519, 0.0
    %v598 = vmax.f32 %v522, 0.0
    %v599 = vmax.f32 %v527, 0.0
    %v600 = vmax.f32 %v530, 0.0
    %v601 = vmax.f32 %v535, 0.0
    %v602 = vmax.f32 %v538, 0.0
    %v603 = vmax.f32 %v543, 0.0
    %v604 = vmax.f32 %v546, 0.0
    %v605 = vmax.f32 %v551, 0.0
    %v606 = vmax.f32 %v554, 0.0
    %v607 = vmax.f32 %v559, 0.0
    %v608 = vmax.f32 %v562, 0.0
    %v609 = vmax.f32 %v567, 0.0
    %v610 = vmax.f32 %v570, 0.0
    %v611 = vmax.f32 %v575, 0.0
    %v612 = vmax.f32 %v578, 0.0
    %v613 = vpack.c.bf16 %v582, %v581
    %v614 = vpack.c.bf16 %v584, %v583
    %v615 = vpack.c.bf16 %v586, %v585
    %v616 = vpack.c.bf16 %v588, %v587
    %v617 = vpack.c.bf16 %v590, %v589
    %v618 = vpack.c.bf16 %v592, %v591
    %v619 = vpack.c.bf16 %v594, %v593
    %v620 = vpack.c.bf16 %v596, %v595
    %v621 = vpack.c.bf16 %v598, %v597
    %v622 = vpack.c.bf16 %v600, %v599
    %v623 = vpack.c.bf16 %v602, %v601
    %v624 = vpack.c.bf16 %v604, %v603
    %v625 = vpack.c.bf16 %v606, %v605
    %v626 = vpack.c.bf16 %v608, %v607
    %v627 = vpack.c.bf16 %v610, %v609
    %v628 = vpack.c.bf16 %v612, %v611
    %s629 = scalar_lea.vmem %s3, 64
    %v630 = vld [vmem:[%s629] sm:$0xf]
    %v631 = vld [vmem:[%s629 + $0x4] sm:$0xf]
    %v632 = vld [vmem:[%s629 + $0x8] sm:$0xf]
    %v633 = vld [vmem:[%s629 + $0xc] sm:$0xf]
    %v634 = vld [vmem:[%s629 + $0x10] sm:$0xf]
    %v635 = vld [vmem:[%s629 + $0x14] sm:$0xf]
    %v636 = vld [vmem:[%s629 + $0x18] sm:$0xf]
    %v637 = vld [vmem:[%s629 + $0x1c] sm:$0xf]
    %v638 = vld [vmem:[%s629 + $0x20] sm:$0xf]
    %v639 = vld [vmem:[%s629 + $0x24] sm:$0xf]
    %v640 = vld [vmem:[%s629 + $0x28] sm:$0xf]
    %v641 = vld [vmem:[%s629 + $0x2c] sm:$0xf]
    %v642 = vld [vmem:[%s629 + $0x30] sm:$0xf]
    %v643 = vld [vmem:[%s629 + $0x34] sm:$0xf]
    %v644 = vld [vmem:[%s629 + $0x38] sm:$0xf]
    %v645 = vld [vmem:[%s629 + $0x3c] sm:$0xf]
    %s646 = scalar_lea.vmem %s4, 1
    %v647 = vld [vmem:[%s646] sm:$0x1]
    %v649 = vlaneseq
    %v650 = vshrl.u32 %v649, 7
    %v651 = vsub.s32 0, %v650
    %v652 = vrot.slane %v647, %v651
    %v670 = vunpack.c.l.b16 %v630
    %v671 = vunpack.c.l.b16 %v631
    %v672 = vunpack.c.l.b16 %v632
    %v673 = vunpack.c.l.b16 %v633
    %v674 = vunpack.c.l.b16 %v634
    %v675 = vunpack.c.l.b16 %v635
    %v676 = vunpack.c.l.b16 %v636
    %v677 = vunpack.c.l.b16 %v637
    %v678 = vunpack.c.l.b16 %v638
    %v679 = vunpack.c.l.b16 %v639
    %v680 = vunpack.c.l.b16 %v640
    %v681 = vunpack.c.l.b16 %v641
    %v682 = vunpack.c.l.b16 %v642
    %v683 = vunpack.c.l.b16 %v643
    %v684 = vunpack.c.l.b16 %v644
    %v685 = vunpack.c.l.b16 %v645
    %v686 = vpack.c.b16 %v671, %v670
    %v687 = vpack.c.b16 %v673, %v672
    %v688 = vpack.c.b16 %v675, %v674
    %v689 = vpack.c.b16 %v677, %v676
    %v690 = vpack.c.b16 %v679, %v678
    %v691 = vpack.c.b16 %v681, %v680
    %v692 = vpack.c.b16 %v683, %v682
    %v693 = vpack.c.b16 %v685, %v684
    %702 = vmatprep.subr.bf16.mxu0 0
    %703 = vmatpush1.bf16.msra.mxu0 %v686
    %704 = vmatprep.subr.bf16.mxu0 0
    %705 = vmatpush1.bf16.msra.mxu0 %v687
    %706 = vmatprep.subr.bf16.mxu0 0
    %707 = vmatpush1.bf16.msra.mxu0 %v688
    %708 = vmatprep.subr.bf16.mxu0 0
    %709 = vmatpush1.bf16.msra.mxu0 %v689
    %710 = vmatprep.subr.bf16.mxu0 0
    %711 = vmatpush1.bf16.msra.mxu0 %v690
    %712 = vmatprep.subr.bf16.mxu0 0
    %713 = vmatpush1.bf16.msra.mxu0 %v691
    %714 = vmatprep.subr.bf16.mxu0 0
    %715 = vmatpush1.bf16.msra.mxu0 %v692
    %716 = vmatprep.subr.bf16.mxu0 0
    %717 = vmatpush1.bf16.msra.mxu0 %v693
    %718 = vmatprep.subr.bf16.mxu0 0
    %719 = vmatpush1.bf16.msra.mxu0 0
    %720 = vmatprep.subr.bf16.mxu0 0
    %721 = vmatpush1.bf16.msra.mxu0 0
    %722 = vmatprep.subr.bf16.mxu0 0
    %723 = vmatpush1.bf16.msra.mxu0 0
    %724 = vmatprep.subr.bf16.mxu0 0
    %725 = vmatpush1.bf16.msra.mxu0 0
    %726 = vmatprep.subr.bf16.mxu0 0
    %727 = vmatpush1.bf16.msra.mxu0 0
    %728 = vmatprep.subr.bf16.mxu0 0
    %729 = vmatpush1.bf16.msra.mxu0 0
    %730 = vmatprep.subr.bf16.mxu0 0
    %731 = vmatpush1.bf16.msra.mxu0 0
    %732 = vmatprep.subr.bf16.mxu0 0
    %733 = vmatpush1.bf16.msra.mxu0 0
    %734 = vmatprep.mubr.bf16.mxu0 0
    %735 = vmatmul.mubr.bf16.gmra.mrb[0].mxu0 %v613
    %v736 = vpop.f32.mrb[0].mxu0
    %v737 = vadd.f32 %v652, %v736
    %v738 = vpop.f32.mrb[0].mxu0
    %v739 = vpop.f32.mrb[0].mxu0
    %v740 = vadd.f32 %v652, %v739
    %v741 = vpop.f32.mrb[0].mxu0
    %742 = vmatprep.mubr.bf16.mxu0 0
    %743 = vmatmul.mubr.bf16.gmra.mrb[0].mxu0 %v614
    %v744 = vpop.f32.mrb[0].mxu0
    %v745 = vadd.f32 %v652, %v744
    %v746 = vpop.f32.mrb[0].mxu0
    %v747 = vpop.f32.mrb[0].mxu0
    %v748 = vadd.f32 %v652, %v747
    %v749 = vpop.f32.mrb[0].mxu0
    %750 = vmatprep.mubr.bf16.mxu0 0
    %751 = vmatmul.mubr.bf16.gmra.mrb[0].mxu0 %v615
    %v752 = vpop.f32.mrb[0].mxu0
    %v753 = vadd.f32 %v652, %v752
    %v754 = vpop.f32.mrb[0].mxu0
    %v755 = vpop.f32.mrb[0].mxu0
    %v756 = vadd.f32 %v652, %v755
    %v757 = vpop.f32.mrb[0].mxu0
    %758 = vmatprep.mubr.bf16.mxu0 0
    %759 = vmatmul.mubr.bf16.gmra.mrb[0].mxu0 %v616
    %v760 = vpop.f32.mrb[0].mxu0
    %v761 = vadd.f32 %v652, %v760
    %v762 = vpop.f32.mrb[0].mxu0
    %v763 = vpop.f32.mrb[0].mxu0
    %v764 = vadd.f32 %v652, %v763
    %v765 = vpop.f32.mrb[0].mxu0
    %766 = vmatprep.mubr.bf16.mxu0 0
    %767 = vmatmul.mubr.bf16.gmra.mrb[0].mxu0 %v617
    %v768 = vpop.f32.mrb[0].mxu0
    %v769 = vadd.f32 %v652, %v768
    %v770 = vpop.f32.mrb[0].mxu0
    %v771 = vpop.f32.mrb[0].mxu0
    %v772 = vadd.f32 %v652, %v771
    %v773 = vpop.f32.mrb[0].mxu0
    %774 = vmatprep.mubr.bf16.mxu0 0
    %775 = vmatmul.mubr.bf16.gmra.mrb[0].mxu0 %v618
    %v776 = vpop.f32.mrb[0].mxu0
    %v777 = vadd.f32 %v652, %v776
    %v778 = vpop.f32.mrb[0].mxu0
    %v779 = vpop.f32.mrb[0].mxu0
    %v780 = vadd.f32 %v652, %v779
    %v781 = vpop.f32.mrb[0].mxu0
    %782 = vmatprep.mubr.bf16.mxu0 0
    %783 = vmatmul.mubr.bf16.gmra.mrb[0].mxu0 %v619
    %v784 = vpop.f32.mrb[0].mxu0
    %v785 = vadd.f32 %v652, %v784
    %v786 = vpop.f32.mrb[0].mxu0
    %v787 = vpop.f32.mrb[0].mxu0
    %v788 = vadd.f32 %v652, %v787
    %v789 = vpop.f32.mrb[0].mxu0
    %790 = vmatprep.mubr.bf16.mxu0 0
    %791 = vmatmul.mubr.bf16.gmra.mrb[0].mxu0 %v620
    %v792 = vpop.f32.mrb[0].mxu0
    %v793 = vadd.f32 %v652, %v792
    %v794 = vpop.f32.mrb[0].mxu0
    %v795 = vpop.f32.mrb[0].mxu0
    %v796 = vadd.f32 %v652, %v795
    %v797 = vpop.f32.mrb[0].mxu0
    %798 = vmatprep.mubr.bf16.mxu0 0
    %799 = vmatmul.mubr.bf16.gmra.mrb[0].mxu0 %v621
    %v800 = vpop.f32.mrb[0].mxu0
    %v801 = vadd.f32 %v652, %v800
    %v802 = vpop.f32.mrb[0].mxu0
    %v803 = vpop.f32.mrb[0].mxu0
    %v804 = vadd.f32 %v652, %v803
    %v805 = vpop.f32.mrb[0].mxu0
    %806 = vmatprep.mubr.bf16.mxu0 0
    %807 = vmatmul.mubr.bf16.gmra.mrb[0].mxu0 %v622
    %v808 = vpop.f32.mrb[0].mxu0
    %v809 = vadd.f32 %v652, %v808
    %v810 = vpop.f32.mrb[0].mxu0
    %v811 = vpop.f32.mrb[0].mxu0
    %v812 = vadd.f32 %v652, %v811
    %v813 = vpop.f32.mrb[0].mxu0
    %814 = vmatprep.mubr.bf16.mxu0 0
    %815 = vmatmul.mubr.bf16.gmra.mrb[0].mxu0 %v623
    %v816 = vpop.f32.mrb[0].mxu0
    %v817 = vadd.f32 %v652, %v816
    %v818 = vpop.f32.mrb[0].mxu0
    %v819 = vpop.f32.mrb[0].mxu0
    %v820 = vadd.f32 %v652, %v819
    %v821 = vpop.f32.mrb[0].mxu0
    %822 = vmatprep.mubr.bf16.mxu0 0
    %823 = vmatmul.mubr.bf16.gmra.mrb[0].mxu0 %v624
    %v824 = vpop.f32.mrb[0].mxu0
    %v825 = vadd.f32 %v652, %v824
    %v826 = vpop.f32.mrb[0].mxu0
    %v827 = vpop.f32.mrb[0].mxu0
    %v828 = vadd.f32 %v652, %v827
    %v829 = vpop.f32.mrb[0].mxu0
    %830 = vmatprep.mubr.bf16.mxu0 0
    %831 = vmatmul.mubr.bf16.gmra.mrb[0].mxu0 %v625
    %v832 = vpop.f32.mrb[0].mxu0
    %v833 = vadd.f32 %v652, %v832
    %v834 = vpop.f32.mrb[0].mxu0
    %v835 = vpop.f32.mrb[0].mxu0
    %v836 = vadd.f32 %v652, %v835
    %v837 = vpop.f32.mrb[0].mxu0
    %838 = vmatprep.mubr.bf16.mxu0 0
    %839 = vmatmul.mubr.bf16.gmra.mrb[0].mxu0 %v626
    %v840 = vpop.f32.mrb[0].mxu0
    %v841 = vadd.f32 %v652, %v840
    %v842 = vpop.f32.mrb[0].mxu0
    %v843 = vpop.f32.mrb[0].mxu0
    %v844 = vadd.f32 %v652, %v843
    %v845 = vpop.f32.mrb[0].mxu0
    %846 = vmatprep.mubr.bf16.mxu0 0
    %847 = vmatmul.mubr.bf16.gmra.mrb[0].mxu0 %v627
    %v848 = vpop.f32.mrb[0].mxu0
    %v849 = vadd.f32 %v652, %v848
    %v850 = vpop.f32.mrb[0].mxu0
    %v851 = vpop.f32.mrb[0].mxu0
    %v852 = vadd.f32 %v652, %v851
    %v853 = vpop.f32.mrb[0].mxu0
    %854 = vmatprep.mubr.bf16.mxu0 0
    %855 = vmatmul.mubr.bf16.gmra.mrb[0].mxu0 %v628
    %v856 = vpop.f32.mrb[0].mxu0
    %v857 = vadd.f32 %v652, %v856
    %v858 = vpop.f32.mrb[0].mxu0
    %v859 = vpop.f32.mrb[0].mxu0
    %v860 = vadd.f32 %v652, %v859
    %v861 = vpop.f32.mrb[0].mxu0
    %862 = vdwg.mxu0
    %v863 = vmax.f32 %v737, 0.0
    %v864 = vmax.f32 %v740, 0.0
    %v865 = vmax.f32 %v745, 0.0
    %v866 = vmax.f32 %v748, 0.0
    %v867 = vmax.f32 %v753, 0.0
    %v868 = vmax.f32 %v756, 0.0
    %v869 = vmax.f32 %v761, 0.0
    %v870 = vmax.f32 %v764, 0.0
    %v871 = vmax.f32 %v769, 0.0
    %v872 = vmax.f32 %v772, 0.0
    %v873 = vmax.f32 %v777, 0.0
    %v874 = vmax.f32 %v780, 0.0
    %v875 = vmax.f32 %v785, 0.0
    %v876 = vmax.f32 %v788, 0.0
    %v877 = vmax.f32 %v793, 0.0
    %v878 = vmax.f32 %v796, 0.0
    %v879 = vmax.f32 %v801, 0.0
    %v880 = vmax.f32 %v804, 0.0
    %v881 = vmax.f32 %v809, 0.0
    %v882 = vmax.f32 %v812, 0.0
    %v883 = vmax.f32 %v817, 0.0
    %v884 = vmax.f32 %v820, 0.0
    %v885 = vmax.f32 %v825, 0.0
    %v886 = vmax.f32 %v828, 0.0
    %v887 = vmax.f32 %v833, 0.0
    %v888 = vmax.f32 %v836, 0.0
    %v889 = vmax.f32 %v841, 0.0
    %v890 = vmax.f32 %v844, 0.0
    %v891 = vmax.f32 %v849, 0.0
    %v892 = vmax.f32 %v852, 0.0
    %v893 = vmax.f32 %v857, 0.0
    %v894 = vmax.f32 %v860, 0.0
    %v895 = vpack.c.bf16 %v864, %v863
    %v896 = vpack.c.bf16 %v866, %v865
    %v897 = vpack.c.bf16 %v868, %v867
    %v898 = vpack.c.bf16 %v870, %v869
    %v899 = vpack.c.bf16 %v872, %v871
    %v900 = vpack.c.bf16 %v874, %v873
    %v901 = vpack.c.bf16 %v876, %v875
    %v902 = vpack.c.bf16 %v878, %v877
    %v903 = vpack.c.bf16 %v880, %v879
    %v904 = vpack.c.bf16 %v882, %v881
    %v905 = vpack.c.bf16 %v884, %v883
    %v906 = vpack.c.bf16 %v886, %v885
    %v907 = vpack.c.bf16 %v888, %v887
    %v908 = vpack.c.bf16 %v890, %v889
    %v909 = vpack.c.bf16 %v892, %v891
    %v910 = vpack.c.bf16 %v894, %v893
    %v911 = vld [vmem:[%s5] sm:$0xf]
    %v912 = vld [vmem:[%s5 + $0x4] sm:$0xf]
    %v913 = vld [vmem:[%s5 + $0x8] sm:$0xf]
    %v914 = vld [vmem:[%s5 + $0xc] sm:$0xf]
    %v915 = vld [vmem:[%s5 + $0x10] sm:$0xf]
    %v916 = vld [vmem:[%s5 + $0x14] sm:$0xf]
    %v917 = vld [vmem:[%s5 + $0x18] sm:$0xf]
    %v918 = vld [vmem:[%s5 + $0x1c] sm:$0xf]
    %v919 = vld [vmem:[%s5 + $0x20] sm:$0xf]
    %v920 = vld [vmem:[%s5 + $0x24] sm:$0xf]
    %v921 = vld [vmem:[%s5 + $0x28] sm:$0xf]
    %v922 = vld [vmem:[%s5 + $0x2c] sm:$0xf]
    %v923 = vld [vmem:[%s5 + $0x30] sm:$0xf]
    %v924 = vld [vmem:[%s5 + $0x34] sm:$0xf]
    %v925 = vld [vmem:[%s5 + $0x38] sm:$0xf]
    %v926 = vld [vmem:[%s5 + $0x3c] sm:$0xf]
    %v927 = vld [vmem:[%s6] sm:$0x1]
    %v929 = vlaneseq
    %v930 = vshrl.u32 %v929, 7
    %v931 = vsub.s32 0, %v930
    %v932 = vrot.slane %v927, %v931
    %v950 = vunpack.c.l.b16 %v911
    %v951 = vunpack.c.l.b16 %v912
    %v952 = vunpack.c.l.b16 %v913
    %v953 = vunpack.c.l.b16 %v914
    %v954 = vunpack.c.l.b16 %v915
    %v955 = vunpack.c.l.b16 %v916
    %v956 = vunpack.c.l.b16 %v917
    %v957 = vunpack.c.l.b16 %v918
    %v958 = vunpack.c.l.b16 %v919
    %v959 = vunpack.c.l.b16 %v920
    %v960 = vunpack.c.l.b16 %v921
    %v961 = vunpack.c.l.b16 %v922
    %v962 = vunpack.c.l.b16 %v923
    %v963 = vunpack.c.l.b16 %v924
    %v964 = vunpack.c.l.b16 %v925
    %v965 = vunpack.c.l.b16 %v926
    %v966 = vpack.c.b16 %v951, %v950
    %v967 = vpack.c.b16 %v953, %v952
    %v968 = vpack.c.b16 %v955, %v954
    %v969 = vpack.c.b16 %v957, %v956
    %v970 = vpack.c.b16 %v959, %v958
    %v971 = vpack.c.b16 %v961, %v960
    %v972 = vpack.c.b16 %v963, %v962
    %v973 = vpack.c.b16 %v965, %v964
    %982 = vmatprep.subr.bf16.mxu0 0
    %983 = vmatpush1.bf16.msra.mxu0 %v966
    %984 = vmatprep.subr.bf16.mxu0 0
    %985 = vmatpush1.bf16.msra.mxu0 %v967
    %986 = vmatprep.subr.bf16.mxu0 0
    %987 = vmatpush1.bf16.msra.mxu0 %v968
    %988 = vmatprep.subr.bf16.mxu0 0
    %989 = vmatpush1.bf16.msra.mxu0 %v969
    %990 = vmatprep.subr.bf16.mxu0 0
    %991 = vmatpush1.bf16.msra.mxu0 %v970
    %992 = vmatprep.subr.bf16.mxu0 0
    %993 = vmatpush1.bf16.msra.mxu0 %v971
    %994 = vmatprep.subr.bf16.mxu0 0
    %995 = vmatpush1.bf16.msra.mxu0 %v972
    %996 = vmatprep.subr.bf16.mxu0 0
    %997 = vmatpush1.bf16.msra.mxu0 %v973
    %998 = vmatprep.subr.bf16.mxu0 0
    %999 = vmatpush1.bf16.msra.mxu0 0
    %1000 = vmatprep.subr.bf16.mxu0 0
    %1001 = vmatpush1.bf16.msra.mxu0 0
    %1002 = vmatprep.subr.bf16.mxu0 0
    %1003 = vmatpush1.bf16.msra.mxu0 0
    %1004 = vmatprep.subr.bf16.mxu0 0
    %1005 = vmatpush1.bf16.msra.mxu0 0
    %1006 = vmatprep.subr.bf16.mxu0 0
    %1007 = vmatpush1.bf16.msra.mxu0 0
    %1008 = vmatprep.subr.bf16.mxu0 0
    %1009 = vmatpush1.bf16.msra.mxu0 0
    %1010 = vmatprep.subr.bf16.mxu0 0
    %1011 = vmatpush1.bf16.msra.mxu0 0
    %1012 = vmatprep.subr.bf16.mxu0 0
    %1013 = vmatpush1.bf16.msra.mxu0 0
    %1014 = vmatprep.mubr.bf16.mxu0 0
    %1015 = vmatmul.mubr.bf16.gmra.mrb[0].mxu0 %v895
    %v1016 = vpop.f32.mrb[0].mxu0
    %v1017 = vadd.f32 %v932, %v1016
    %v1018 = vpop.f32.mrb[0].mxu0
    %v1019 = vpop.f32.mrb[0].mxu0
    %v1020 = vadd.f32 %v932, %v1019
    %v1021 = vpop.f32.mrb[0].mxu0
    %1022 = vmatprep.mubr.bf16.mxu0 0
    %1023 = vmatmul.mubr.bf16.gmra.mrb[0].mxu0 %v896
    %v1024 = vpop.f32.mrb[0].mxu0
    %v1025 = vadd.f32 %v932, %v1024
    %v1026 = vpop.f32.mrb[0].mxu0
    %v1027 = vpop.f32.mrb[0].mxu0
    %v1028 = vadd.f32 %v932, %v1027
    %v1029 = vpop.f32.mrb[0].mxu0
    %1030 = vmatprep.mubr.bf16.mxu0 0
    %1031 = vmatmul.mubr.bf16.gmra.mrb[0].mxu0 %v897
    %v1032 = vpop.f32.mrb[0].mxu0
    %v1033 = vadd.f32 %v932, %v1032
    %v1034 = vpop.f32.mrb[0].mxu0
    %v1035 = vpop.f32.mrb[0].mxu0
    %v1036 = vadd.f32 %v932, %v1035
    %v1037 = vpop.f32.mrb[0].mxu0
    %1038 = vmatprep.mubr.bf16.mxu0 0
    %1039 = vmatmul.mubr.bf16.gmra.mrb[0].mxu0 %v898
    %v1040 = vpop.f32.mrb[0].mxu0
    %v1041 = vadd.f32 %v932, %v1040
    %v1042 = vpop.f32.mrb[0].mxu0
    %v1043 = vpop.f32.mrb[0].mxu0
    %v1044 = vadd.f32 %v932, %v1043
    %v1045 = vpop.f32.mrb[0].mxu0
    %1046 = vmatprep.mubr.bf16.mxu0 0
    %1047 = vmatmul.mubr.bf16.gmra.mrb[0].mxu0 %v899
    %v1048 = vpop.f32.mrb[0].mxu0
    %v1049 = vadd.f32 %v932, %v1048
    %v1050 = vpop.f32.mrb[0].mxu0
    %v1051 = vpop.f32.mrb[0].mxu0
    %v1052 = vadd.f32 %v932, %v1051
    %v1053 = vpop.f32.mrb[0].mxu0
    %1054 = vmatprep.mubr.bf16.mxu0 0
    %1055 = vmatmul.mubr.bf16.gmra.mrb[0].mxu0 %v900
    %v1056 = vpop.f32.mrb[0].mxu0
    %v1057 = vadd.f32 %v932, %v1056
    %v1058 = vpop.f32.mrb[0].mxu0
    %v1059 = vpop.f32.mrb[0].mxu0
    %v1060 = vadd.f32 %v932, %v1059
    %v1061 = vpop.f32.mrb[0].mxu0
    %1062 = vmatprep.mubr.bf16.mxu0 0
    %1063 = vmatmul.mubr.bf16.gmra.mrb[0].mxu0 %v901
    %v1064 = vpop.f32.mrb[0].mxu0
    %v1065 = vadd.f32 %v932, %v1064
    %v1066 = vpop.f32.mrb[0].mxu0
    %v1067 = vpop.f32.mrb[0].mxu0
    %v1068 = vadd.f32 %v932, %v1067
    %v1069 = vpop.f32.mrb[0].mxu0
    %1070 = vmatprep.mubr.bf16.mxu0 0
    %1071 = vmatmul.mubr.bf16.gmra.mrb[0].mxu0 %v902
    %v1072 = vpop.f32.mrb[0].mxu0
    %v1073 = vadd.f32 %v932, %v1072
    %v1074 = vpop.f32.mrb[0].mxu0
    %v1075 = vpop.f32.mrb[0].mxu0
    %v1076 = vadd.f32 %v932, %v1075
    %v1077 = vpop.f32.mrb[0].mxu0
    %1078 = vmatprep.mubr.bf16.mxu0 0
    %1079 = vmatmul.mubr.bf16.gmra.mrb[0].mxu0 %v903
    %v1080 = vpop.f32.mrb[0].mxu0
    %v1081 = vadd.f32 %v932, %v1080
    %v1082 = vpop.f32.mrb[0].mxu0
    %v1083 = vpop.f32.mrb[0].mxu0
    %v1084 = vadd.f32 %v932, %v1083
    %v1085 = vpop.f32.mrb[0].mxu0
    %1086 = vmatprep.mubr.bf16.mxu0 0
    %1087 = vmatmul.mubr.bf16.gmra.mrb[0].mxu0 %v904
    %v1088 = vpop.f32.mrb[0].mxu0
    %v1089 = vadd.f32 %v932, %v1088
    %v1090 = vpop.f32.mrb[0].mxu0
    %v1091 = vpop.f32.mrb[0].mxu0
    %v1092 = vadd.f32 %v932, %v1091
    %v1093 = vpop.f32.mrb[0].mxu0
    %1094 = vmatprep.mubr.bf16.mxu0 0
    %1095 = vmatmul.mubr.bf16.gmra.mrb[0].mxu0 %v905
    %v1096 = vpop.f32.mrb[0].mxu0
    %v1097 = vadd.f32 %v932, %v1096
    %v1098 = vpop.f32.mrb[0].mxu0
    %v1099 = vpop.f32.mrb[0].mxu0
    %v1100 = vadd.f32 %v932, %v1099
    %v1101 = vpop.f32.mrb[0].mxu0
    %1102 = vmatprep.mubr.bf16.mxu0 0
    %1103 = vmatmul.mubr.bf16.gmra.mrb[0].mxu0 %v906
    %v1104 = vpop.f32.mrb[0].mxu0
    %v1105 = vadd.f32 %v932, %v1104
    %v1106 = vpop.f32.mrb[0].mxu0
    %v1107 = vpop.f32.mrb[0].mxu0
    %v1108 = vadd.f32 %v932, %v1107
    %v1109 = vpop.f32.mrb[0].mxu0
    %1110 = vmatprep.mubr.bf16.mxu0 0
    %1111 = vmatmul.mubr.bf16.gmra.mrb[0].mxu0 %v907
    %v1112 = vpop.f32.mrb[0].mxu0
    %v1113 = vadd.f32 %v932, %v1112
    %v1114 = vpop.f32.mrb[0].mxu0
    %v1115 = vpop.f32.mrb[0].mxu0
    %v1116 = vadd.f32 %v932, %v1115
    %v1117 = vpop.f32.mrb[0].mxu0
    %1118 = vmatprep.mubr.bf16.mxu0 0
    %1119 = vmatmul.mubr.bf16.gmra.mrb[0].mxu0 %v908
    %v1120 = vpop.f32.mrb[0].mxu0
    %v1121 = vadd.f32 %v932, %v1120
    %v1122 = vpop.f32.mrb[0].mxu0
    %v1123 = vpop.f32.mrb[0].mxu0
    %v1124 = vadd.f32 %v932, %v1123
    %v1125 = vpop.f32.mrb[0].mxu0
    %1126 = vmatprep.mubr.bf16.mxu0 0
    %1127 = vmatmul.mubr.bf16.gmra.mrb[0].mxu0 %v909
    %v1128 = vpop.f32.mrb[0].mxu0
    %v1129 = vadd.f32 %v932, %v1128
    %v1130 = vpop.f32.mrb[0].mxu0
    %v1131 = vpop.f32.mrb[0].mxu0
    %v1132 = vadd.f32 %v932, %v1131
    %v1133 = vpop.f32.mrb[0].mxu0
    %1134 = vmatprep.mubr.bf16.mxu0 0
    %1135 = vmatmul.mubr.bf16.gmra.mrb[0].mxu0 %v910
    %v1136 = vpop.f32.mrb[0].mxu0
    %v1137 = vadd.f32 %v932, %v1136
    %v1138 = vpop.f32.mrb[0].mxu0
    %v1139 = vpop.f32.mrb[0].mxu0
    %v1140 = vadd.f32 %v932, %v1139
    %v1141 = vpop.f32.mrb[0].mxu0
    %1142 = vdwg.mxu0
    %1143 = vmax.xlane.f32.xlu0 %v1017
    %v1144 = vpop.xlane.xlu0 %1143
    %1145 = vmax.xlane.f32.xlu0 %v1020
    %v1146 = vpop.xlane.xlu0 %1145
    %1147 = vmax.xlane.f32.xlu0 %v1025
    %v1148 = vpop.xlane.xlu0 %1147
    %1149 = vmax.xlane.f32.xlu0 %v1028
    %v1150 = vpop.xlane.xlu0 %1149
    %1151 = vmax.xlane.f32.xlu0 %v1033
    %v1152 = vpop.xlane.xlu0 %1151
    %1153 = vmax.xlane.f32.xlu0 %v1036
    %v1154 = vpop.xlane.xlu0 %1153
    %1155 = vmax.xlane.f32.xlu0 %v1041
    %v1156 = vpop.xlane.xlu0 %1155
    %1157 = vmax.xlane.f32.xlu0 %v1044
    %v1158 = vpop.xlane.xlu0 %1157
    %1159 = vmax.xlane.f32.xlu0 %v1049
    %v1160 = vpop.xlane.xlu0 %1159
    %1161 = vmax.xlane.f32.xlu0 %v1052
    %v1162 = vpop.xlane.xlu0 %1161
    %1163 = vmax.xlane.f32.xlu0 %v1057
    %v1164 = vpop.xlane.xlu0 %1163
    %1165 = vmax.xlane.f32.xlu0 %v1060
    %v1166 = vpop.xlane.xlu0 %1165
    %1167 = vmax.xlane.f32.xlu0 %v1065
    %v1168 = vpop.xlane.xlu0 %1167
    %1169 = vmax.xlane.f32.xlu0 %v1068
    %v1170 = vpop.xlane.xlu0 %1169
    %1171 = vmax.xlane.f32.xlu0 %v1073
    %v1172 = vpop.xlane.xlu0 %1171
    %1173 = vmax.xlane.f32.xlu0 %v1076
    %v1174 = vpop.xlane.xlu0 %1173
    %1175 = vmax.xlane.f32.xlu0 %v1081
    %v1176 = vpop.xlane.xlu0 %1175
    %1177 = vmax.xlane.f32.xlu0 %v1084
    %v1178 = vpop.xlane.xlu0 %1177
    %1179 = vmax.xlane.f32.xlu0 %v1089
    %v1180 = vpop.xlane.xlu0 %1179
    %1181 = vmax.xlane.f32.xlu0 %v1092
    %v1182 = vpop.xlane.xlu0 %1181
    %1183 = vmax.xlane.f32.xlu0 %v1097
    %v1184 = vpop.xlane.xlu0 %1183
    %1185 = vmax.xlane.f32.xlu0 %v1100
    %v1186 = vpop.xlane.xlu0 %1185
    %1187 = vmax.xlane.f32.xlu0 %v1105
    %v1188 = vpop.xlane.xlu0 %1187
    %1189 = vmax.xlane.f32.xlu0 %v1108
    %v1190 = vpop.xlane.xlu0 %1189
    %1191 = vmax.xlane.f32.xlu0 %v1113
    %v1192 = vpop.xlane.xlu0 %1191
    %1193 = vmax.xlane.f32.xlu0 %v1116
    %v1194 = vpop.xlane.xlu0 %1193
    %1195 = vmax.xlane.f32.xlu0 %v1121
    %v1196 = vpop.xlane.xlu0 %1195
    %1197 = vmax.xlane.f32.xlu0 %v1124
    %v1198 = vpop.xlane.xlu0 %1197
    %1199 = vmax.xlane.f32.xlu0 %v1129
    %v1200 = vpop.xlane.xlu0 %1199
    %1201 = vmax.xlane.f32.xlu0 %v1132
    %v1202 = vpop.xlane.xlu0 %1201
    %1203 = vmax.xlane.f32.xlu0 %v1137
    %v1204 = vpop.xlane.xlu0 %1203
    %1205 = vmax.xlane.f32.xlu0 %v1140
    %v1206 = vpop.xlane.xlu0 %1205
    %v1207 = vsub.f32 %v1017, %v1144
    %v1208 = vsub.f32 %v1020, %v1146
    %v1209 = vsub.f32 %v1025, %v1148
    %v1210 = vsub.f32 %v1028, %v1150
    %v1211 = vsub.f32 %v1033, %v1152
    %v1212 = vsub.f32 %v1036, %v1154
    %v1213 = vsub.f32 %v1041, %v1156
    %v1214 = vsub.f32 %v1044, %v1158
    %v1215 = vsub.f32 %v1049, %v1160
    %v1216 = vsub.f32 %v1052, %v1162
    %v1217 = vsub.f32 %v1057, %v1164
    %v1218 = vsub.f32 %v1060, %v1166
    %v1219 = vsub.f32 %v1065, %v1168
    %v1220 = vsub.f32 %v1068, %v1170
    %v1221 = vsub.f32 %v1073, %v1172
    %v1222 = vsub.f32 %v1076, %v1174
    %v1223 = vsub.f32 %v1081, %v1176
    %v1224 = vsub.f32 %v1084, %v1178
    %v1225 = vsub.f32 %v1089, %v1180
    %v1226 = vsub.f32 %v1092, %v1182
    %v1227 = vsub.f32 %v1097, %v1184
    %v1228 = vsub.f32 %v1100, %v1186
    %v1229 = vsub.f32 %v1105, %v1188
    %v1230 = vsub.f32 %v1108, %v1190
    %v1231 = vsub.f32 %v1113, %v1192
    %v1232 = vsub.f32 %v1116, %v1194
    %v1233 = vsub.f32 %v1121, %v1196
    %v1234 = vsub.f32 %v1124, %v1198
    %v1235 = vsub.f32 %v1129, %v1200
    %v1236 = vsub.f32 %v1132, %v1202
    %v1237 = vsub.f32 %v1137, %v1204
    %v1238 = vsub.f32 %v1140, %v1206
    %v1239 = vmul.f32 %v1207, 1.442695
    %v1240 = vpow.pop %v1239
    %v1241 = vmul.f32 %v1208, 1.442695
    %v1242 = vpow.pop %v1241
    %v1243 = vmul.f32 %v1209, 1.442695
    %v1244 = vpow.pop %v1243
    %v1245 = vmul.f32 %v1210, 1.442695
    %v1246 = vpow.pop %v1245
    %v1247 = vmul.f32 %v1211, 1.442695
    %v1248 = vpow.pop %v1247
    %v1249 = vmul.f32 %v1212, 1.442695
    %v1250 = vpow.pop %v1249
    %v1251 = vmul.f32 %v1213, 1.442695
    %v1252 = vpow.pop %v1251
    %v1253 = vmul.f32 %v1214, 1.442695
    %v1254 = vpow.pop %v1253
    %v1255 = vmul.f32 %v1215, 1.442695
    %v1256 = vpow.pop %v1255
    %v1257 = vmul.f32 %v1216, 1.442695
    %v1258 = vpow.pop %v1257
    %v1259 = vmul.f32 %v1217, 1.442695
    %v1260 = vpow.pop %v1259
    %v1261 = vmul.f32 %v1218, 1.442695
    %v1262 = vpow.pop %v1261
    %v1263 = vmul.f32 %v1219, 1.442695
    %v1264 = vpow.pop %v1263
    %v1265 = vmul.f32 %v1220, 1.442695
    %v1266 = vpow.pop %v1265
    %v1267 = vmul.f32 %v1221, 1.442695
    %v1268 = vpow.pop %v1267
    %v1269 = vmul.f32 %v1222, 1.442695
    %v1270 = vpow.pop %v1269
    %v1271 = vmul.f32 %v1223, 1.442695
    %v1272 = vpow.pop %v1271
    %v1273 = vmul.f32 %v1224, 1.442695
    %v1274 = vpow.pop %v1273
    %v1275 = vmul.f32 %v1225, 1.442695
    %v1276 = vpow.pop %v1275
    %v1277 = vmul.f32 %v1226, 1.442695
    %v1278 = vpow.pop %v1277
    %v1279 = vmul.f32 %v1227, 1.442695
    %v1280 = vpow.pop %v1279
    %v1281 = vmul.f32 %v1228, 1.442695
    %v1282 = vpow.pop %v1281
    %v1283 = vmul.f32 %v1229, 1.442695
    %v1284 = vpow.pop %v1283
    %v1285 = vmul.f32 %v1230, 1.442695
    %v1286 = vpow.pop %v1285
    %v1287 = vmul.f32 %v1231, 1.442695
    %v1288 = vpow.pop %v1287
    %v1289 = vmul.f32 %v1232, 1.442695
    %v1290 = vpow.pop %v1289
    %v1291 = vmul.f32 %v1233, 1.442695
    %v1292 = vpow.pop %v1291
    %v1293 = vmul.f32 %v1234, 1.442695
    %v1294 = vpow.pop %v1293
    %v1295 = vmul.f32 %v1235, 1.442695
    %v1296 = vpow.pop %v1295
    %v1297 = vmul.f32 %v1236, 1.442695
    %v1298 = vpow.pop %v1297
    %v1299 = vmul.f32 %v1237, 1.442695
    %v1300 = vpow.pop %v1299
    %v1301 = vmul.f32 %v1238, 1.442695
    %v1302 = vpow.pop %v1301
    %1303 = vadd.xlane.f32.xlu0 %v1240
    %v1304 = vpop.xlane.xlu0 %1303
    %1305 = vadd.xlane.f32.xlu0 %v1242
    %v1306 = vpop.xlane.xlu0 %1305
    %1307 = vadd.xlane.f32.xlu0 %v1244
    %v1308 = vpop.xlane.xlu0 %1307
    %1309 = vadd.xlane.f32.xlu0 %v1246
    %v1310 = vpop.xlane.xlu0 %1309
    %1311 = vadd.xlane.f32.xlu0 %v1248
    %v1312 = vpop.xlane.xlu0 %1311
    %1313 = vadd.xlane.f32.xlu0 %v1250
    %v1314 = vpop.xlane.xlu0 %1313
    %1315 = vadd.xlane.f32.xlu0 %v1252
    %v1316 = vpop.xlane.xlu0 %1315
    %1317 = vadd.xlane.f32.xlu0 %v1254
    %v1318 = vpop.xlane.xlu0 %1317
    %1319 = vadd.xlane.f32.xlu0 %v1256
    %v1320 = vpop.xlane.xlu0 %1319
    %1321 = vadd.xlane.f32.xlu0 %v1258
    %v1322 = vpop.xlane.xlu0 %1321
    %1323 = vadd.xlane.f32.xlu0 %v1260
    %v1324 = vpop.xlane.xlu0 %1323
    %1325 = vadd.xlane.f32.xlu0 %v1262
    %v1326 = vpop.xlane.xlu0 %1325
    %1327 = vadd.xlane.f32.xlu0 %v1264
    %v1328 = vpop.xlane.xlu0 %1327
    %1329 = vadd.xlane.f32.xlu0 %v1266
    %v1330 = vpop.xlane.xlu0 %1329
    %1331 = vadd.xlane.f32.xlu0 %v1268
    %v1332 = vpop.xlane.xlu0 %1331
    %1333 = vadd.xlane.f32.xlu0 %v1270
    %v1334 = vpop.xlane.xlu0 %1333
    %1335 = vadd.xlane.f32.xlu0 %v1272
    %v1336 = vpop.xlane.xlu0 %1335
    %1337 = vadd.xlane.f32.xlu0 %v1274
    %v1338 = vpop.xlane.xlu0 %1337
    %1339 = vadd.xlane.f32.xlu0 %v1276
    %v1340 = vpop.xlane.xlu0 %1339
    %1341 = vadd.xlane.f32.xlu0 %v1278
    %v1342 = vpop.xlane.xlu0 %1341
    %1343 = vadd.xlane.f32.xlu0 %v1280
    %v1344 = vpop.xlane.xlu0 %1343
    %1345 = vadd.xlane.f32.xlu0 %v1282
    %v1346 = vpop.xlane.xlu0 %1345
    %1347 = vadd.xlane.f32.xlu0 %v1284
    %v1348 = vpop.xlane.xlu0 %1347
    %1349 = vadd.xlane.f32.xlu0 %v1286
    %v1350 = vpop.xlane.xlu0 %1349
    %1351 = vadd.xlane.f32.xlu0 %v1288
    %v1352 = vpop.xlane.xlu0 %1351
    %1353 = vadd.xlane.f32.xlu0 %v1290
    %v1354 = vpop.xlane.xlu0 %1353
    %1355 = vadd.xlane.f32.xlu0 %v1292
    %v1356 = vpop.xlane.xlu0 %1355
    %1357 = vadd.xlane.f32.xlu0 %v1294
    %v1358 = vpop.xlane.xlu0 %1357
    %1359 = vadd.xlane.f32.xlu0 %v1296
    %v1360 = vpop.xlane.xlu0 %1359
    %1361 = vadd.xlane.f32.xlu0 %v1298
    %v1362 = vpop.xlane.xlu0 %1361
    %1363 = vadd.xlane.f32.xlu0 %v1300
    %v1364 = vpop.xlane.xlu0 %1363
    %1365 = vadd.xlane.f32.xlu0 %v1302
    %v1366 = vpop.xlane.xlu0 %1365
    %v1367 = vrcp.pop %v1304
    %v1368 = vrcp.pop %v1306
    %v1369 = vrcp.pop %v1308
    %v1370 = vrcp.pop %v1310
    %v1371 = vrcp.pop %v1312
    %v1372 = vrcp.pop %v1314
    %v1373 = vrcp.pop %v1316
    %v1374 = vrcp.pop %v1318
    %v1375 = vrcp.pop %v1320
    %v1376 = vrcp.pop %v1322
    %v1377 = vrcp.pop %v1324
    %v1378 = vrcp.pop %v1326
    %v1379 = vrcp.pop %v1328
    %v1380 = vrcp.pop %v1330
    %v1381 = vrcp.pop %v1332
    %v1382 = vrcp.pop %v1334
    %v1383 = vrcp.pop %v1336
    %v1384 = vrcp.pop %v1338
    %v1385 = vrcp.pop %v1340
    %v1386 = vrcp.pop %v1342
    %v1387 = vrcp.pop %v1344
    %v1388 = vrcp.pop %v1346
    %v1389 = vrcp.pop %v1348
    %v1390 = vrcp.pop %v1350
    %v1391 = vrcp.pop %v1352
    %v1392 = vrcp.pop %v1354
    %v1393 = vrcp.pop %v1356
    %v1394 = vrcp.pop %v1358
    %v1395 = vrcp.pop %v1360
    %v1396 = vrcp.pop %v1362
    %v1397 = vrcp.pop %v1364
    %v1398 = vrcp.pop %v1366
    %v1399 = vmul.f32 %v1240, %v1367
    %v1400 = vmul.f32 %v1242, %v1368
    %v1401 = vmul.f32 %v1244, %v1369
    %v1402 = vmul.f32 %v1246, %v1370
    %v1403 = vmul.f32 %v1248, %v1371
    %v1404 = vmul.f32 %v1250, %v1372
    %v1405 = vmul.f32 %v1252, %v1373
    %v1406 = vmul.f32 %v1254, %v1374
    %v1407 = vmul.f32 %v1256, %v1375
    %v1408 = vmul.f32 %v1258, %v1376
    %v1409 = vmul.f32 %v1260, %v1377
    %v1410 = vmul.f32 %v1262, %v1378
    %v1411 = vmul.f32 %v1264, %v1379
    %v1412 = vmul.f32 %v1266, %v1380
    %v1413 = vmul.f32 %v1268, %v1381
    %v1414 = vmul.f32 %v1270, %v1382
    %v1415 = vmul.f32 %v1272, %v1383
    %v1416 = vmul.f32 %v1274, %v1384
    %v1417 = vmul.f32 %v1276, %v1385
    %v1418 = vmul.f32 %v1278, %v1386
    %v1419 = vmul.f32 %v1280, %v1387
    %v1420 = vmul.f32 %v1282, %v1388
    %v1421 = vmul.f32 %v1284, %v1389
    %v1422 = vmul.f32 %v1286, %v1390
    %v1423 = vmul.f32 %v1288, %v1391
    %v1424 = vmul.f32 %v1290, %v1392
    %v1425 = vmul.f32 %v1292, %v1393
    %v1426 = vmul.f32 %v1294, %v1394
    %v1427 = vmul.f32 %v1296, %v1395
    %v1428 = vmul.f32 %v1298, %v1396
    %v1429 = vmul.f32 %v1300, %v1397
    %v1430 = vmul.f32 %v1302, %v1398
    %v1431 = vpack.c.bf16 %v1400, %v1399
    %v1432 = vpack.c.bf16 %v1402, %v1401
    %v1433 = vpack.c.bf16 %v1404, %v1403
    %v1434 = vpack.c.bf16 %v1406, %v1405
    %v1435 = vpack.c.bf16 %v1408, %v1407
    %v1436 = vpack.c.bf16 %v1410, %v1409
    %v1437 = vpack.c.bf16 %v1412, %v1411
    %v1438 = vpack.c.bf16 %v1414, %v1413
    %v1439 = vpack.c.bf16 %v1416, %v1415
    %v1440 = vpack.c.bf16 %v1418, %v1417
    %v1441 = vpack.c.bf16 %v1420, %v1419
    %v1442 = vpack.c.bf16 %v1422, %v1421
    %v1443 = vpack.c.bf16 %v1424, %v1423
    %v1444 = vpack.c.bf16 %v1426, %v1425
    %v1445 = vpack.c.bf16 %v1428, %v1427
    %v1446 = vpack.c.bf16 %v1430, %v1429
    %v1463 = vunpack.c.l.b16 %v1431
    %v1464 = vunpack.c.h.b16 %v1431
    %v1465 = vunpack.c.l.b16 %v1432
    %v1466 = vunpack.c.h.b16 %v1432
    %v1467 = vunpack.c.l.b16 %v1433
    %v1468 = vunpack.c.h.b16 %v1433
    %v1469 = vunpack.c.l.b16 %v1434
    %v1470 = vunpack.c.h.b16 %v1434
    %v1471 = vunpack.c.l.b16 %v1435
    %v1472 = vunpack.c.h.b16 %v1435
    %v1473 = vunpack.c.l.b16 %v1436
    %v1474 = vunpack.c.h.b16 %v1436
    %v1475 = vunpack.c.l.b16 %v1437
    %v1476 = vunpack.c.h.b16 %v1437
    %v1477 = vunpack.c.l.b16 %v1438
    %v1478 = vunpack.c.h.b16 %v1438
    %v1479 = vunpack.c.l.b16 %v1439
    %v1480 = vunpack.c.h.b16 %v1439
    %v1481 = vunpack.c.l.b16 %v1440
    %v1482 = vunpack.c.h.b16 %v1440
    %v1483 = vunpack.c.l.b16 %v1441
    %v1484 = vunpack.c.h.b16 %v1441
    %v1485 = vunpack.c.l.b16 %v1442
    %v1486 = vunpack.c.h.b16 %v1442
    %v1487 = vunpack.c.l.b16 %v1443
    %v1488 = vunpack.c.h.b16 %v1443
    %v1489 = vunpack.c.l.b16 %v1444
    %v1490 = vunpack.c.h.b16 %v1444
    %v1491 = vunpack.c.l.b16 %v1445
    %v1492 = vunpack.c.h.b16 %v1445
    %v1493 = vunpack.c.l.b16 %v1446
    %v1494 = vunpack.c.h.b16 %v1446
    %v1495 = vpack.c.b16 %v1463, %v1463
    %v1496 = vpack.c.b16 %v1464, %v1464
    %v1497 = vpack.c.b16 %v1465, %v1465
    %v1498 = vpack.c.b16 %v1466, %v1466
    %v1499 = vpack.c.b16 %v1467, %v1467
    %v1500 = vpack.c.b16 %v1468, %v1468
    %v1501 = vpack.c.b16 %v1469, %v1469
    %v1502 = vpack.c.b16 %v1470, %v1470
    %v1503 = vpack.c.b16 %v1471, %v1471
    %v1504 = vpack.c.b16 %v1472, %v1472
    %v1505 = vpack.c.b16 %v1473, %v1473
    %v1506 = vpack.c.b16 %v1474, %v1474
    %v1507 = vpack.c.b16 %v1475, %v1475
    %v1508 = vpack.c.b16 %v1476, %v1476
    %v1509 = vpack.c.b16 %v1477, %v1477
    %v1510 = vpack.c.b16 %v1478, %v1478
    %v1511 = vpack.c.b16 %v1479, %v1479
    %v1512 = vpack.c.b16 %v1480, %v1480
    %v1513 = vpack.c.b16 %v1481, %v1481
    %v1514 = vpack.c.b16 %v1482, %v1482
    %v1515 = vpack.c.b16 %v1483, %v1483
    %v1516 = vpack.c.b16 %v1484, %v1484
    %v1517 = vpack.c.b16 %v1485, %v1485
    %v1518 = vpack.c.b16 %v1486, %v1486
    %v1519 = vpack.c.b16 %v1487, %v1487
    %v1520 = vpack.c.b16 %v1488, %v1488
    %v1521 = vpack.c.b16 %v1489, %v1489
    %v1522 = vpack.c.b16 %v1490, %v1490
    %v1523 = vpack.c.b16 %v1491, %v1491
    %v1524 = vpack.c.b16 %v1492, %v1492
    %v1525 = vpack.c.b16 %v1493, %v1493
    %v1526 = vpack.c.b16 %v1494, %v1494
    %1559 = vst [vmem:[#allocation2] sm:$0xf] %v1495
    %1560 = vst [vmem:[#allocation2 + $0x4] sm:$0xf] %v1496
    %1561 = vst [vmem:[#allocation2 + $0x8] sm:$0xf] %v1497
    %1562 = vst [vmem:[#allocation2 + $0xc] sm:$0xf] %v1498
    %1563 = vst [vmem:[#allocation2 + $0x10] sm:$0xf] %v1499
    %1564 = vst [vmem:[#allocation2 + $0x14] sm:$0xf] %v1500
    %1565 = vst [vmem:[#allocation2 + $0x18] sm:$0xf] %v1501
    %1566 = vst [vmem:[#allocation2 + $0x1c] sm:$0xf] %v1502
    %1567 = vst [vmem:[#allocation2 + $0x20] sm:$0xf] %v1503
    %1568 = vst [vmem:[#allocation2 + $0x24] sm:$0xf] %v1504
    %1569 = vst [vmem:[#allocation2 + $0x28] sm:$0xf] %v1505
    %1570 = vst [vmem:[#allocation2 + $0x2c] sm:$0xf] %v1506
    %1571 = vst [vmem:[#allocation2 + $0x30] sm:$0xf] %v1507
    %1572 = vst [vmem:[#allocation2 + $0x34] sm:$0xf] %v1508
    %1573 = vst [vmem:[#allocation2 + $0x38] sm:$0xf] %v1509
    %1574 = vst [vmem:[#allocation2 + $0x3c] sm:$0xf] %v1510
    %1575 = vst [vmem:[#allocation2 + $0x40] sm:$0xf] %v1511
    %1576 = vst [vmem:[#allocation2 + $0x44] sm:$0xf] %v1512
    %1577 = vst [vmem:[#allocation2 + $0x48] sm:$0xf] %v1513
    %1578 = vst [vmem:[#allocation2 + $0x4c] sm:$0xf] %v1514
    %1579 = vst [vmem:[#allocation2 + $0x50] sm:$0xf] %v1515
    %1580 = vst [vmem:[#allocation2 + $0x54] sm:$0xf] %v1516
    %1581 = vst [vmem:[#allocation2 + $0x58] sm:$0xf] %v1517
    %1582 = vst [vmem:[#allocation2 + $0x5c] sm:$0xf] %v1518
    %1583 = vst [vmem:[#allocation2 + $0x60] sm:$0xf] %v1519
    %1584 = vst [vmem:[#allocation2 + $0x64] sm:$0xf] %v1520
    %1585 = vst [vmem:[#allocation2 + $0x68] sm:$0xf] %v1521
    %1586 = vst [vmem:[#allocation2 + $0x6c] sm:$0xf] %v1522
    %1587 = vst [vmem:[#allocation2 + $0x70] sm:$0xf] %v1523
    %1588 = vst [vmem:[#allocation2 + $0x74] sm:$0xf] %v1524
    %1589 = vst [vmem:[#allocation2 + $0x78] sm:$0xf] %v1525
    %1590 = vst [vmem:[#allocation2 + $0x7c] sm:$0xf] %v1526
    // Predicated region
    $region30: #{tpu_custom_call.1} parent=1 // pred_check
      _
    $region31: #{tpu_custom_call.1} parent=1 // pred_check_branch
      %1592 = sbr.rel (0) target = $region33
    $region32: #{tpu_custom_call.1} parent=1 // pred_region
      %s1594 = ssub.s32 2048, 2048
      %1595 = vsyncadd [#allocation3], %s1594
      %s1596 = sshll.u32 [#allocation2], 4
      %s1597 = int_to_ptr.vmem [resolvable:$true] %s1596
      %1602 = dma.vmem_to_hbm [thread:$0]  %s1597, 2048, %s7, [#allocation3], 64, 64, 4
    $region33: #{tpu_custom_call.1} parent=1 // pred_fallthru
      _
    // Predicated region
    $region34: #{tpu_custom_call.1} parent=1 // pred_check
      _
    $region35: #{tpu_custom_call.1} parent=1 // pred_check_branch
      %1604 = sbr.rel (0) target = $region37
    $region36: #{tpu_custom_call.1} parent=1 // pred_region
      %1605 = dma.done [#allocation3], 2048
    $region37: #{tpu_custom_call.1} parent=1 // pred_fallthru
      _
    %1606 = vsyncpa [#allocation3], 1

</llo_original>
